<compile_context>
chip_gen: v7x
topology: tpu7x:2x2x1
jax: 0.10.0
libtpu: 0.0.40
codegen_flags: <defaults>
</compile_context>

<pallas_src>
import functools
import math

import numpy as np
import jax
import jax.numpy as jnp
from jax.experimental import pallas as pl
from jax.experimental.pallas import tpu as pltpu

# ----------------------- scaled LSTFE configuration ------------------------
REP     = 128            # representation_size / feat_dim
GROUP   = 4              # attention groups
DIMG    = REP // GROUP   # per-group dim (32)
EMB     = DIMG           # embed_dim (== dim_group, as 64 == 1024/16 originally)
IN_SIZE = 256            # output_channel * pooler_resolution**2
STAGE   = 2              # local attention stages
WAVE    = 1000.0

NFREQ = EMB // 8
DIM_MAT_NP = np.power(WAVE, (8.0 / EMB) * np.arange(NFREQ, dtype=np.float64)).astype(np.float32)
DIM_VALS = [float(v) for v in DIM_MAT_NP]

# Kernel lane-block order for the embedding channels is blk = sc*4*NFREQ + f*4 + comp
# (sin/cos major, then frequency, then delta component); the original Wg channel
# order is e = comp*2*NFREQ + sc*NFREQ + f.  _WG_PERM maps blk -> e.
_WG_PERM = np.array([c * (2 * NFREQ) + sc * NFREQ + f
                     for sc in range(2) for f in range(NFREQ) for c in range(4)],
                    dtype=np.int32)


# ============================ fused Pallas kernel ===========================

def _fused_kernel(
    x_pooled_ref, x_ref_ref, x_ref_dis_ref,
    rois_key_ref, rois_ref_dis_ref, rois_ref_t_ref, rois_ref_dis_t_ref,
    fc_w0_ref, fc_b0_ref, fc_w1_ref, fc_b1_ref,
    wgbig0_ref, wgb0_ref, wq0_ref, qb0_ref, wk0_ref, kb0_ref, wvt0_ref, vb0_ref,
    wgbig1_ref, wgb1_ref, wq1_ref, qb1_ref, wk1_ref, kb1_ref, wvt1_ref, vb1_ref,
    o_ref, *, nk, mr, md):
    f32 = jnp.float32
    bf16 = jnp.bfloat16

    def mm(a, w):                                   # bf16 MXU matmul, f32 accumulate
        return jnp.dot(a.astype(bf16), w, preferred_element_type=f32)

    def pos_logw(cur, reft, wgbig, wgb_wide):
        """log(relu(Wg . pos_embedding) + 1e-6), lane-blocked [Nc, GROUP*Ms]."""
        xmin, ymin = cur[:, 0:1], cur[:, 1:2]
        xmax, ymax = cur[:, 2:3], cur[:, 3:4]
        w = xmax - xmin + 1.0
        h = ymax - ymin + 1.0
        cx = 0.5 * (xmin + xmax)
        cy = 0.5 * (ymin + ymax)
        xmin_r, ymin_r = reft[0:1, :], reft[1:2, :]
        xmax_r, ymax_r = reft[2:3, :], reft[3:4, :]
        w_r = xmax_r - xmin_r + 1.0
        h_r = ymax_r - ymin_r + 1.0
        cx_r = 0.5 * (xmin_r + xmax_r)
        cy_r = 0.5 * (ymin_r + ymax_r)

        dx = jnp.log(jnp.abs((cx - cx_r) / w) + 1e-3)         # [Nc, Ms]
        dy = jnp.log(jnp.abs((cy - cy_r) / h) + 1e-3)
        dw = jnp.log(w / w_r)
        dh = jnp.log(h / h_r)

        # lane-dense embedding: [Nc, 4*Ms] -> [Nc, 4*NFREQ*Ms] -> [Nc, EMB*Ms]
        d_all = jnp.concatenate([dx, dy, dw, dh], axis=1)
        d_frq = jnp.concatenate([d_all * (100.0 / dv) for dv in DIM_VALS], axis=1)
        emb = jnp.concatenate([jnp.sin(d_frq), jnp.cos(d_frq)], axis=1)
        # one MXU matmul replaces the GROUP x EMB scalar accumulation
        aw = jnp.dot(emb, wgbig, preferred_element_type=f32) + wgb_wide   # [Nc, G*Ms]
        return jnp.log(jnp.maximum(aw, 0.0) + 1e-6)

    def attention(q, k, v, logw, wvt, vb, ms):
        """q already carries the u-fold and 1/sqrt(dg) scale."""
        qb_ = q.astype(bf16)
        kb_ = k.astype(bf16)
        # grouped Wv 1x1 conv re-associated: vw[:, g*DIMG:(g+1)*DIMG] = v @ Wv_g^T
        vw = mm(v, wvt).astype(bf16)                            # [Ms, REP]
        nt = (((1,), (1,)), ((), ()))            # contract last dims ("NT" matmul)
        out_blocks = []
        for g in range(GROUP):
            qg = qb_[:, g * DIMG:(g + 1) * DIMG]
            kg = kb_[:, g * DIMG:(g + 1) * DIMG]
            aff = jax.lax.dot_general(qg, kg, nt, preferred_element_type=f32)
            logits = logw[:, g * ms:(g + 1) * ms] + aff
            logits = logits - jnp.max(logits, axis=1, keepdims=True)
            p = jnp.exp(logits)
            s = p * pl.reciprocal(jnp.sum(p, axis=1, keepdims=True), approx=True)
            out_blocks.append(jnp.dot(s.astype(bf16), vw[:, g * DIMG:(g + 1) * DIMG],
                                      preferred_element_type=f32))         # [Nc, DIMG]
        return jnp.concatenate(out_blocks, axis=1) + vb                    # [Nc, REP]

    # ---------------- l_fcs[0] on the pooled key features ----------------
    x = jnp.maximum(mm(x_pooled_ref[...], fc_w0_ref[...]) + fc_b0_ref[...], 0.0)

    feats_cur = jnp.concatenate([x, x_ref_dis_ref[...]], axis=0)            # [Nk+Md, REP]
    rois_cur = jnp.concatenate([rois_key_ref[...], rois_ref_dis_ref[...]], axis=0)

    # ---------------- stage 0: (key + distilled refs) attend over all refs
    logw0 = pos_logw(rois_cur, rois_ref_t_ref[...], wgbig0_ref[...], wgb0_ref[...])
    q0 = mm(feats_cur, wq0_ref[...]) + qb0_ref[...]   # bias includes u and 1/sqrt(dg)
    k0 = mm(x_ref_ref[...], wk0_ref[...]) + kb0_ref[...]
    att0 = attention(q0, k0, x_ref_ref[...], logw0, wvt0_ref[...], vb0_ref[...], mr)
    feats = feats_cur + att0
    feats = jnp.maximum(mm(feats, fc_w1_ref[...]) + fc_b1_ref[...], 0.0)    # i != stage-1

    # ---------------- stage 1: key proposals attend over distilled refs ---
    cur = feats[:nk]
    ref = feats[nk:]
    logw1 = pos_logw(rois_key_ref[...], rois_ref_dis_t_ref[...],
                     wgbig1_ref[...], wgb1_ref[...])
    q1 = mm(cur, wq1_ref[...]) + qb1_ref[...]
    k1 = mm(ref, wk1_ref[...]) + kb1_ref[...]
    att1 = attention(q1, k1, ref, logw1, wvt1_ref[...], vb1_ref[...], md)
    o_ref[...] = cur + att1


# ==================== host-side (trace-time) weight glue ====================

def _wg_big(wg_w, ms):
    """Kronecker-expand Wg so the lane-blocked embedding needs one MXU matmul.

    WG_BIG[blk*ms + m, g*ms + n] = wg_w[g, perm[blk]] * (m == n).
    """
    wg_perm = wg_w[:, _WG_PERM]                        # [G, EMB] in lane-block order
    eye = jnp.eye(ms, dtype=wg_w.dtype)
    big = jnp.einsum('ge,mn->emgn', wg_perm, eye)
    return big.reshape(EMB * ms, GROUP * ms)


def lstfe_forward(x_pooled, rois_key, rois_ref, rois_ref_dis, x_ref, x_ref_dis, p):
    """Mirrors LSTFEFeatureExtractor._forward_test after pooler+flatten (fused)."""
    nk = x_pooled.shape[0]
    mr = rois_ref.shape[0]
    md = rois_ref_dis.shape[0]
    bf16 = jnp.bfloat16
    inv_sqrt = 1.0 / math.sqrt(DIMG)

    # Weight re-layout (pure glue, folded once per jit):
    #   bf16 casts for MXU operands, Kronecker-expanded Wg, transposed grouped Wv,
    #   u and 1/sqrt(dg) folded into Wq (aff_a + aff_c == (q + u) . k).
    fc_w0 = p['fc_w'][0].astype(bf16)
    fc_b0 = p['fc_b'][0][None, :]
    fc_w1 = p['fc_w'][1].astype(bf16)
    fc_b1 = p['fc_b'][1][None, :]

    stage_inputs = []
    for s, ms in ((0, mr), (1, md)):
        wgbig = _wg_big(p['wg_w'][s], ms)
        wgb = jnp.repeat(p['wg_b'][s], ms)[None, :]
        wq = (p['wq_w'][s] * inv_sqrt).astype(bf16)
        qb = ((p['wq_b'][s] + p['u'][s].reshape(-1)) * inv_sqrt)[None, :]
        wk = p['wk_w'][s].astype(bf16)
        kb = p['wk_b'][s][None, :]
        wvt = jnp.transpose(p['wv_w'][s]).astype(bf16)     # [REP, REP]
        vb = p['wv_b'][s][None, :]
        stage_inputs += [wgbig, wgb, wq, qb, wk, kb, wvt, vb]

    inputs = [x_pooled, x_ref, x_ref_dis,
              rois_key, rois_ref_dis,
              jnp.transpose(rois_ref), jnp.transpose(rois_ref_dis),
              fc_w0, fc_b0, fc_w1, fc_b1] + stage_inputs

    vmem_specs = [pl.BlockSpec(memory_space=pltpu.MemorySpace.VMEM) for _ in inputs]
    return pl.pallas_call(
        functools.partial(_fused_kernel, nk=nk, mr=mr, md=md),
        out_shape=jax.ShapeDtypeStruct((nk, REP), jnp.float32),
        in_specs=vmem_specs,
        out_specs=pl.BlockSpec(memory_space=pltpu.MemorySpace.VMEM),
    )(*inputs)


# ===================== pure-JAX reference (PyTorch semantics) ==============

def _ref_linear(x, w, b, relu=False):
    y = x @ w + b
    return jnp.maximum(y, 0.0) if relu else y


def _ref_pos_embedding(rois_cur, rois_ref):
    xmin_r, ymin_r, xmax_r, ymax_r = jnp.split(rois_ref, 4, axis=1)
    w_r = xmax_r - xmin_r + 1.0
    h_r = ymax_r - ymin_r + 1.0
    cx_r = 0.5 * (xmin_r + xmax_r)
    cy_r = 0.5 * (ymin_r + ymax_r)
    xmin, ymin, xmax, ymax = jnp.split(rois_cur, 4, axis=1)
    w = xmax - xmin + 1.0
    h = ymax - ymin + 1.0
    cx = 0.5 * (xmin + xmax)
    cy = 0.5 * (ymin + ymax)
    dx = jnp.log(jnp.abs((cx - cx_r.T) / w) + 1e-3)
    dy = jnp.log(jnp.abs((cy - cy_r.T) / h) + 1e-3)
    dw = jnp.log(w / w_r.T)
    dh = jnp.log(h / h_r.T)
    pm = jnp.stack([dx, dy, dw, dh], axis=2)                    # [N, M, 4]
    div = pm[..., None] * 100.0 / jnp.asarray(DIM_MAT_NP)       # [N, M, 4, nfreq]
    emb = jnp.concatenate([jnp.sin(div), jnp.cos(div)], axis=3)
    emb = emb.reshape(emb.shape[0], emb.shape[1], -1)           # [N, M, EMB]
    return jnp.transpose(emb, (2, 0, 1))[None]                  # [1, E, N, M]


def _ref_attention(roi_feat, ref_feat, pe, wg_w, wg_b, wq_w, wq_b,
                   wk_w, wk_b, wv_w, wv_b, u):
    pf = jnp.maximum(jnp.einsum('oenm,ge->ognm', pe, wg_w)
                     + wg_b[None, :, None, None], 0.0)
    aff_weight = jnp.transpose(pf, (2, 1, 3, 0))[..., 0]        # [N, G, M]
    q = roi_feat @ wq_w + wq_b
    qb = jnp.transpose(q.reshape(-1, GROUP, DIMG), (1, 0, 2))
    k = ref_feat @ wk_w + wk_b
    kb = jnp.transpose(k.reshape(-1, GROUP, DIMG), (1, 0, 2))
    v = ref_feat
    aff_a = jnp.einsum('gnd,gmd->gnm', qb, kb)
    aff_c = jnp.einsum('god,gmd->gom', u, kb)
    aff = (aff_a + aff_c) / math.sqrt(DIMG)
    aff = jnp.transpose(aff, (1, 0, 2))                         # [N, G, M]
    weighted = jnp.log(aff_weight + 1e-6) + aff
    soft = jax.nn.softmax(weighted, axis=2)
    ot = soft.reshape(-1, soft.shape[2]) @ v                    # [N*G, REP]
    otg = ot.reshape(-1, GROUP, REP)
    wv_r = wv_w.reshape(GROUP, DIMG, REP)
    out = jnp.einsum('ngd,gjd->ngj', otg, wv_r).reshape(-1, REP) + wv_b
    return out


def ref_forward(x_pooled, rois_key, rois_ref, rois_ref_dis, x_ref, x_ref_dis, p):
    nk = x_pooled.shape[0]
    x = _ref_linear(x_pooled, p['fc_w'][0], p['fc_b'][0], relu=True)
    feats_cur = jnp.concatenate([x, x_ref_dis], axis=0)
    rois_cur = jnp.concatenate([rois_key, rois_ref_dis], axis=0)
    pe0 = _ref_pos_embedding(rois_cur, rois_ref)
    att0 = _ref_attention(feats_cur, x_ref, pe0,
                          p['wg_w'][0], p['wg_b'][0], p['wq_w'][0], p['wq_b'][0],
                          p['wk_w'][0], p['wk_b'][0], p['wv_w'][0], p['wv_b'][0],
                          p['u'][0])
    feats = feats_cur + att0
    feats = _ref_linear(feats, p['fc_w'][1], p['fc_b'][1], relu=True)
    cur, ref = feats[:nk], feats[nk:]
    pe1 = _ref_pos_embedding(rois_key, rois_ref_dis)
    att1 = _ref_attention(cur, ref, pe1,
                          p['wg_w'][1], p['wg_b'][1], p['wq_w'][1], p['wq_b'][1],
                          p['wk_w'][1], p['wk_b'][1], p['wv_w'][1], p['wv_b'][1],
                          p['u'][1])
    return cur + att1


# ============================ parameter init ================================

def init_params(key):
    ks = iter(jax.random.split(key, 4 + 10 * STAGE))

    def nrm(shape, std):
        return std * jax.random.normal(next(ks), shape, dtype=jnp.float32)

    p = {
        'fc_w': [nrm((IN_SIZE, REP), (2.0 / IN_SIZE) ** 0.5),
                 nrm((REP, REP), (2.0 / REP) ** 0.5)],
        'fc_b': [jnp.zeros((REP,), jnp.float32), jnp.zeros((REP,), jnp.float32)],
        'wg_w': [], 'wg_b': [], 'wq_w': [], 'wq_b': [],
        'wk_w': [], 'wk_b': [], 'wv_w': [], 'wv_b': [], 'u': [],
    }
    for _ in range(STAGE):
        p['wg_w'].append(nrm((GROUP, EMB), 0.01))
        p['wg_b'].append(jnp.zeros((GROUP,), jnp.float32))
        p['wq_w'].append(nrm((REP, REP), (2.0 / REP) ** 0.5))
        p['wq_b'].append(jnp.zeros((REP,), jnp.float32))
        p['wk_w'].append(nrm((REP, REP), (2.0 / REP) ** 0.5))
        p['wk_b'].append(jnp.zeros((REP,), jnp.float32))
        p['wv_w'].append(nrm((REP, REP), 0.01))
        p['wv_b'].append(jnp.zeros((REP,), jnp.float32))
        p['u'].append(nrm((GROUP, 1, EMB), 0.01))
    return p


def make_rois(key, n):
    k1, k2 = jax.random.split(key)
    xy = jax.random.uniform(k1, (n, 2), dtype=jnp.float32) * 60.0
    wh = jax.random.uniform(k2, (n, 2), dtype=jnp.float32) * 40.0 + 4.0
    return jnp.concatenate([xy, xy + wh], axis=1)    # xmin, ymin, xmax, ymax


# ================================== main ====================================

if __name__ == "__main__":
    key = jax.random.PRNGKey(0)
    kp, kx, kr1, kr2, kr3, kf1, kf2 = jax.random.split(key, 7)

    Nk, Mr, Md = 8, 16, 8                            # key / ref / distilled-ref rois
    params = init_params(kp)
    x_pooled = jax.random.normal(kx, (Nk, IN_SIZE), dtype=jnp.float32)
    rois_key = make_rois(kr1, Nk)
    rois_ref = make_rois(kr2, Mr)
    rois_ref_dis = make_rois(kr3, Md)
    x_ref = jnp.maximum(jax.random.normal(kf1, (Mr, REP), dtype=jnp.float32), 0.0)
    x_ref_dis = jnp.maximum(jax.random.normal(kf2, (Md, REP), dtype=jnp.float32), 0.0)

    out = jax.jit(lstfe_forward)(x_pooled, rois_key, rois_ref, rois_ref_dis,
                                 x_ref, x_ref_dis, params)
    out = jax.block_until_ready(out)

    ref = jax.block_until_ready(
        ref_forward(x_pooled, rois_key, rois_ref, rois_ref_dis, x_ref, x_ref_dis, params))

    assert out.shape == (Nk, REP)
    assert bool(jnp.all(jnp.isfinite(out)))
    err = float(jnp.max(jnp.abs(out - ref)))
    scale = float(jnp.max(jnp.abs(ref)))
    assert err <= 5e-2 * max(1.0, scale), (err, scale)
    print("KERNEL_OK")
</pallas_src>

<mosaic_0001>
module attributes {stable_mosaic.version = 11 : i64} {
  func.func @_fused_kernel(%arg0: memref<8x256xf32, #tpu.memory_space<vmem>>, %arg1: memref<16x128xf32, #tpu.memory_space<vmem>>, %arg2: memref<8x128xf32, #tpu.memory_space<vmem>>, %arg3: memref<8x4xf32, #tpu.memory_space<vmem>>, %arg4: memref<8x4xf32, #tpu.memory_space<vmem>>, %arg5: memref<4x16xf32, #tpu.memory_space<vmem>>, %arg6: memref<4x8xf32, #tpu.memory_space<vmem>>, %arg7: memref<256x128xbf16, #tpu.memory_space<vmem>>, %arg8: memref<1x128xf32, #tpu.memory_space<vmem>>, %arg9: memref<128x128xbf16, #tpu.memory_space<vmem>>, %arg10: memref<1x128xf32, #tpu.memory_space<vmem>>, %arg11: memref<512x64xf32, #tpu.memory_space<vmem>>, %arg12: memref<1x64xf32, #tpu.memory_space<vmem>>, %arg13: memref<128x128xbf16, #tpu.memory_space<vmem>>, %arg14: memref<1x128xf32, #tpu.memory_space<vmem>>, %arg15: memref<128x128xbf16, #tpu.memory_space<vmem>>, %arg16: memref<1x128xf32, #tpu.memory_space<vmem>>, %arg17: memref<128x128xbf16, #tpu.memory_space<vmem>>, %arg18: memref<1x128xf32, #tpu.memory_space<vmem>>, %arg19: memref<256x32xf32, #tpu.memory_space<vmem>>, %arg20: memref<1x32xf32, #tpu.memory_space<vmem>>, %arg21: memref<128x128xbf16, #tpu.memory_space<vmem>>, %arg22: memref<1x128xf32, #tpu.memory_space<vmem>>, %arg23: memref<128x128xbf16, #tpu.memory_space<vmem>>, %arg24: memref<1x128xf32, #tpu.memory_space<vmem>>, %arg25: memref<128x128xbf16, #tpu.memory_space<vmem>>, %arg26: memref<1x128xf32, #tpu.memory_space<vmem>>, %arg27: memref<8x128xf32, #tpu.memory_space<vmem>>) attributes {dimension_semantics = [], scalar_prefetch = 0 : i64, scratch_operands = 0 : i64, tpu.core_type = #tpu.core_type<tc>} {
    %c0 = arith.constant 0 : index
    %c0_0 = arith.constant 0 : index
    %0 = vector.load %arg0[%c0, %c0_0] : memref<8x256xf32, #tpu.memory_space<vmem>>, vector<8x256xf32>
    %c0_1 = arith.constant 0 : index
    %c0_2 = arith.constant 0 : index
    %1 = vector.load %arg7[%c0_1, %c0_2] : memref<256x128xbf16, #tpu.memory_space<vmem>>, vector<256x128xbf16>
    %2 = arith.truncf %0 : vector<8x256xf32> to vector<8x256xbf16>
    %cst = arith.constant dense<0.000000e+00> : vector<8x128xf32>
    %3 = tpu.matmul %2, %1, %cst {dimension_numbers = #tpu.dot_dimension_numbers<[1], [0], [0], [1], [0, 0, 1, 1], [], []>} : vector<8x256xbf16>, vector<256x128xbf16>, vector<8x128xf32> -> vector<8x128xf32>
    %c0_3 = arith.constant 0 : index
    %c0_4 = arith.constant 0 : index
    %4 = vector.load %arg8[%c0_3, %c0_4] : memref<1x128xf32, #tpu.memory_space<vmem>>, vector<1x128xf32>
    %5 = vector.broadcast %4 : vector<1x128xf32> to vector<8x128xf32>
    %6 = arith.addf %3, %5 : vector<8x128xf32>
    %cst_5 = arith.constant 0.000000e+00 : f32
    %7 = vector.broadcast %cst_5 : f32 to vector<8x128xf32>
    %8 = arith.maximumf %6, %7 : vector<8x128xf32>
    %c0_6 = arith.constant 0 : index
    %c0_7 = arith.constant 0 : index
    %9 = vector.load %arg2[%c0_6, %c0_7] : memref<8x128xf32, #tpu.memory_space<vmem>>, vector<8x128xf32>
    %10 = tpu.concatenate %8, %9 in 0 : vector<8x128xf32>, vector<8x128xf32> -> vector<16x128xf32>
    %c0_8 = arith.constant 0 : index
    %c0_9 = arith.constant 0 : index
    %11 = vector.load %arg3[%c0_8, %c0_9] : memref<8x4xf32, #tpu.memory_space<vmem>>, vector<8x4xf32>
    %c0_10 = arith.constant 0 : index
    %c0_11 = arith.constant 0 : index
    %12 = vector.load %arg4[%c0_10, %c0_11] : memref<8x4xf32, #tpu.memory_space<vmem>>, vector<8x4xf32>
    %13 = tpu.concatenate %11, %12 in 0 : vector<8x4xf32>, vector<8x4xf32> -> vector<16x4xf32>
    %c0_12 = arith.constant 0 : index
    %c0_13 = arith.constant 0 : index
    %14 = vector.load %arg5[%c0_12, %c0_13] : memref<4x16xf32, #tpu.memory_space<vmem>>, vector<4x16xf32>
    %c0_14 = arith.constant 0 : index
    %c0_15 = arith.constant 0 : index
    %15 = vector.load %arg11[%c0_14, %c0_15] : memref<512x64xf32, #tpu.memory_space<vmem>>, vector<512x64xf32>
    %c0_16 = arith.constant 0 : index
    %c0_17 = arith.constant 0 : index
    %16 = vector.load %arg12[%c0_16, %c0_17] : memref<1x64xf32, #tpu.memory_space<vmem>>, vector<1x64xf32>
    %17 = vector.extract_strided_slice %13 {offsets = [0, 0], sizes = [16, 1], strides = [1, 1]} : vector<16x4xf32> to vector<16x1xf32>
    %18 = vector.extract_strided_slice %13 {offsets = [0, 1], sizes = [16, 1], strides = [1, 1]} : vector<16x4xf32> to vector<16x1xf32>
    %19 = vector.extract_strided_slice %13 {offsets = [0, 2], sizes = [16, 1], strides = [1, 1]} : vector<16x4xf32> to vector<16x1xf32>
    %20 = vector.extract_strided_slice %13 {offsets = [0, 3], sizes = [16, 1], strides = [1, 1]} : vector<16x4xf32> to vector<16x1xf32>
    %21 = arith.subf %19, %17 : vector<16x1xf32>
    %cst_18 = arith.constant 1.000000e+00 : f32
    %22 = vector.broadcast %cst_18 : f32 to vector<16x1xf32>
    %23 = arith.addf %21, %22 : vector<16x1xf32>
    %24 = arith.subf %20, %18 : vector<16x1xf32>
    %cst_19 = arith.constant 1.000000e+00 : f32
    %25 = vector.broadcast %cst_19 : f32 to vector<16x1xf32>
    %26 = arith.addf %24, %25 : vector<16x1xf32>
    %27 = arith.addf %17, %19 : vector<16x1xf32>
    %cst_20 = arith.constant 5.000000e-01 : f32
    %28 = vector.broadcast %cst_20 : f32 to vector<16x1xf32>
    %29 = arith.mulf %28, %27 : vector<16x1xf32>
    %30 = arith.addf %18, %20 : vector<16x1xf32>
    %cst_21 = arith.constant 5.000000e-01 : f32
    %31 = vector.broadcast %cst_21 : f32 to vector<16x1xf32>
    %32 = arith.mulf %31, %30 : vector<16x1xf32>
    %33 = vector.extract_strided_slice %14 {offsets = [0, 0], sizes = [1, 16], strides = [1, 1]} : vector<4x16xf32> to vector<1x16xf32>
    %34 = vector.extract_strided_slice %14 {offsets = [1, 0], sizes = [1, 16], strides = [1, 1]} : vector<4x16xf32> to vector<1x16xf32>
    %35 = vector.extract_strided_slice %14 {offsets = [2, 0], sizes = [1, 16], strides = [1, 1]} : vector<4x16xf32> to vector<1x16xf32>
    %36 = vector.extract_strided_slice %14 {offsets = [3, 0], sizes = [1, 16], strides = [1, 1]} : vector<4x16xf32> to vector<1x16xf32>
    %37 = arith.subf %35, %33 : vector<1x16xf32>
    %cst_22 = arith.constant 1.000000e+00 : f32
    %38 = vector.broadcast %cst_22 : f32 to vector<1x16xf32>
    %39 = arith.addf %37, %38 : vector<1x16xf32>
    %40 = arith.subf %36, %34 : vector<1x16xf32>
    %cst_23 = arith.constant 1.000000e+00 : f32
    %41 = vector.broadcast %cst_23 : f32 to vector<1x16xf32>
    %42 = arith.addf %40, %41 : vector<1x16xf32>
    %43 = arith.addf %33, %35 : vector<1x16xf32>
    %cst_24 = arith.constant 5.000000e-01 : f32
    %44 = vector.broadcast %cst_24 : f32 to vector<1x16xf32>
    %45 = arith.mulf %44, %43 : vector<1x16xf32>
    %46 = arith.addf %34, %36 : vector<1x16xf32>
    %cst_25 = arith.constant 5.000000e-01 : f32
    %47 = vector.broadcast %cst_25 : f32 to vector<1x16xf32>
    %48 = arith.mulf %47, %46 : vector<1x16xf32>
    %49 = vector.broadcast %29 : vector<16x1xf32> to vector<16x16xf32>
    %50 = vector.broadcast %45 : vector<1x16xf32> to vector<16x16xf32>
    %51 = arith.subf %49, %50 : vector<16x16xf32>
    %52 = vector.broadcast %23 : vector<16x1xf32> to vector<16x16xf32>
    %53 = arith.divf %51, %52 : vector<16x16xf32>
    %54 = math.absf %53 : vector<16x16xf32>
    %cst_26 = arith.constant 1.000000e-03 : f32
    %55 = vector.broadcast %cst_26 : f32 to vector<16x16xf32>
    %56 = arith.addf %54, %55 : vector<16x16xf32>
    %57 = math.log %56 : vector<16x16xf32>
    %58 = vector.broadcast %32 : vector<16x1xf32> to vector<16x16xf32>
    %59 = vector.broadcast %48 : vector<1x16xf32> to vector<16x16xf32>
    %60 = arith.subf %58, %59 : vector<16x16xf32>
    %61 = vector.broadcast %26 : vector<16x1xf32> to vector<16x16xf32>
    %62 = arith.divf %60, %61 : vector<16x16xf32>
    %63 = math.absf %62 : vector<16x16xf32>
    %cst_27 = arith.constant 1.000000e-03 : f32
    %64 = vector.broadcast %cst_27 : f32 to vector<16x16xf32>
    %65 = arith.addf %63, %64 : vector<16x16xf32>
    %66 = math.log %65 : vector<16x16xf32>
    %67 = vector.broadcast %23 : vector<16x1xf32> to vector<16x16xf32>
    %68 = vector.broadcast %39 : vector<1x16xf32> to vector<16x16xf32>
    %69 = arith.divf %67, %68 : vector<16x16xf32>
    %70 = math.log %69 : vector<16x16xf32>
    %71 = vector.broadcast %26 : vector<16x1xf32> to vector<16x16xf32>
    %72 = vector.broadcast %42 : vector<1x16xf32> to vector<16x16xf32>
    %73 = arith.divf %71, %72 : vector<16x16xf32>
    %74 = math.log %73 : vector<16x16xf32>
    %75 = tpu.concatenate %57, %66, %70, %74 in 1 : vector<16x16xf32>, vector<16x16xf32>, vector<16x16xf32>, vector<16x16xf32> -> vector<16x64xf32>
    %cst_28 = arith.constant 1.000000e+02 : f32
    %76 = vector.broadcast %cst_28 : f32 to vector<16x64xf32>
    %77 = arith.mulf %75, %76 : vector<16x64xf32>
    %cst_29 = arith.constant 17.782795 : f32
    %78 = vector.broadcast %cst_29 : f32 to vector<16x64xf32>
    %79 = arith.mulf %75, %78 : vector<16x64xf32>
    %cst_30 = arith.constant 3.1622777 : f32
    %80 = vector.broadcast %cst_30 : f32 to vector<16x64xf32>
    %81 = arith.mulf %75, %80 : vector<16x64xf32>
    %cst_31 = arith.constant 0.562341332 : f32
    %82 = vector.broadcast %cst_31 : f32 to vector<16x64xf32>
    %83 = arith.mulf %75, %82 : vector<16x64xf32>
    %84 = tpu.concatenate %77, %79, %81, %83 in 1 : vector<16x64xf32>, vector<16x64xf32>, vector<16x64xf32>, vector<16x64xf32> -> vector<16x256xf32>
    %85 = math.sin %84 : vector<16x256xf32>
    %86 = math.cos %84 : vector<16x256xf32>
    %87 = tpu.concatenate %85, %86 in 1 : vector<16x256xf32>, vector<16x256xf32> -> vector<16x512xf32>
    %cst_32 = arith.constant dense<0.000000e+00> : vector<16x64xf32>
    %88 = tpu.matmul %87, %15, %cst_32 {dimension_numbers = #tpu.dot_dimension_numbers<[1], [0], [0], [1], [0, 0, 1, 1], [], []>} : vector<16x512xf32>, vector<512x64xf32>, vector<16x64xf32> -> vector<16x64xf32>
    %89 = vector.broadcast %16 : vector<1x64xf32> to vector<16x64xf32>
    %90 = arith.addf %88, %89 : vector<16x64xf32>
    %cst_33 = arith.constant 0.000000e+00 : f32
    %91 = vector.broadcast %cst_33 : f32 to vector<16x64xf32>
    %92 = arith.maximumf %90, %91 : vector<16x64xf32>
    %cst_34 = arith.constant 9.99999997E-7 : f32
    %93 = vector.broadcast %cst_34 : f32 to vector<16x64xf32>
    %94 = arith.addf %92, %93 : vector<16x64xf32>
    %95 = math.log %94 : vector<16x64xf32>
    %c0_35 = arith.constant 0 : index
    %c0_36 = arith.constant 0 : index
    %96 = vector.load %arg13[%c0_35, %c0_36] : memref<128x128xbf16, #tpu.memory_space<vmem>>, vector<128x128xbf16>
    %97 = arith.truncf %10 : vector<16x128xf32> to vector<16x128xbf16>
    %cst_37 = arith.constant dense<0.000000e+00> : vector<16x128xf32>
    %98 = tpu.matmul %97, %96, %cst_37 {dimension_numbers = #tpu.dot_dimension_numbers<[1], [0], [0], [1], [0, 0, 1, 1], [], []>} : vector<16x128xbf16>, vector<128x128xbf16>, vector<16x128xf32> -> vector<16x128xf32>
    %c0_38 = arith.constant 0 : index
    %c0_39 = arith.constant 0 : index
    %99 = vector.load %arg14[%c0_38, %c0_39] : memref<1x128xf32, #tpu.memory_space<vmem>>, vector<1x128xf32>
    %100 = vector.broadcast %99 : vector<1x128xf32> to vector<16x128xf32>
    %101 = arith.addf %98, %100 : vector<16x128xf32>
    %c0_40 = arith.constant 0 : index
    %c0_41 = arith.constant 0 : index
    %102 = vector.load %arg1[%c0_40, %c0_41] : memref<16x128xf32, #tpu.memory_space<vmem>>, vector<16x128xf32>
    %c0_42 = arith.constant 0 : index
    %c0_43 = arith.constant 0 : index
    %103 = vector.load %arg15[%c0_42, %c0_43] : memref<128x128xbf16, #tpu.memory_space<vmem>>, vector<128x128xbf16>
    %104 = arith.truncf %102 : vector<16x128xf32> to vector<16x128xbf16>
    %cst_44 = arith.constant dense<0.000000e+00> : vector<16x128xf32>
    %105 = tpu.matmul %104, %103, %cst_44 {dimension_numbers = #tpu.dot_dimension_numbers<[1], [0], [0], [1], [0, 0, 1, 1], [], []>} : vector<16x128xbf16>, vector<128x128xbf16>, vector<16x128xf32> -> vector<16x128xf32>
    %c0_45 = arith.constant 0 : index
    %c0_46 = arith.constant 0 : index
    %106 = vector.load %arg16[%c0_45, %c0_46] : memref<1x128xf32, #tpu.memory_space<vmem>>, vector<1x128xf32>
    %107 = vector.broadcast %106 : vector<1x128xf32> to vector<16x128xf32>
    %108 = arith.addf %105, %107 : vector<16x128xf32>
    %c0_47 = arith.constant 0 : index
    %c0_48 = arith.constant 0 : index
    %109 = vector.load %arg1[%c0_47, %c0_48] : memref<16x128xf32, #tpu.memory_space<vmem>>, vector<16x128xf32>
    %c0_49 = arith.constant 0 : index
    %c0_50 = arith.constant 0 : index
    %110 = vector.load %arg17[%c0_49, %c0_50] : memref<128x128xbf16, #tpu.memory_space<vmem>>, vector<128x128xbf16>
    %c0_51 = arith.constant 0 : index
    %c0_52 = arith.constant 0 : index
    %111 = vector.load %arg18[%c0_51, %c0_52] : memref<1x128xf32, #tpu.memory_space<vmem>>, vector<1x128xf32>
    %112 = arith.truncf %101 : vector<16x128xf32> to vector<16x128xbf16>
    %113 = arith.truncf %108 : vector<16x128xf32> to vector<16x128xbf16>
    %114 = arith.truncf %109 : vector<16x128xf32> to vector<16x128xbf16>
    %cst_53 = arith.constant dense<0.000000e+00> : vector<16x128xf32>
    %115 = tpu.matmul %114, %110, %cst_53 {dimension_numbers = #tpu.dot_dimension_numbers<[1], [0], [0], [1], [0, 0, 1, 1], [], []>} : vector<16x128xbf16>, vector<128x128xbf16>, vector<16x128xf32> -> vector<16x128xf32>
    %116 = arith.truncf %115 : vector<16x128xf32> to vector<16x128xbf16>
    %117 = vector.extract_strided_slice %112 {offsets = [0, 0], sizes = [16, 32], strides = [1, 1]} : vector<16x128xbf16> to vector<16x32xbf16>
    %118 = vector.extract_strided_slice %113 {offsets = [0, 0], sizes = [16, 32], strides = [1, 1]} : vector<16x128xbf16> to vector<16x32xbf16>
    %cst_54 = arith.constant dense<0.000000e+00> : vector<16x16xf32>
    %119 = tpu.matmul %117, %118, %cst_54 {dimension_numbers = #tpu.dot_dimension_numbers<[1], [1], [0], [0], [0, 0, 1, 0], [], []>} : vector<16x32xbf16>, vector<16x32xbf16>, vector<16x16xf32> -> vector<16x16xf32>
    %120 = vector.extract_strided_slice %95 {offsets = [0, 0], sizes = [16, 16], strides = [1, 1]} : vector<16x64xf32> to vector<16x16xf32>
    %121 = arith.addf %120, %119 : vector<16x16xf32>
    %cst_55 = arith.constant dense<0xFF800000> : vector<16xf32>
    %122 = vector.multi_reduction <maximumf>, %121, %cst_55 [1] : vector<16x16xf32> to vector<16xf32>
    %123 = vector.shape_cast %122 : vector<16xf32> to vector<16x1xf32>
    %124 = vector.broadcast %123 : vector<16x1xf32> to vector<16x16xf32>
    %125 = arith.subf %121, %124 : vector<16x16xf32>
    %126 = math.exp %125 : vector<16x16xf32>
    %cst_56 = arith.constant dense<0.000000e+00> : vector<16xf32>
    %127 = vector.multi_reduction <add>, %126, %cst_56 [1] : vector<16x16xf32> to vector<16xf32>
    %128 = vector.shape_cast %127 : vector<16xf32> to vector<16x1xf32>
    %129 = tpu.reciprocal %128 {approx = true} : vector<16x1xf32> -> vector<16x1xf32>
    %130 = vector.broadcast %129 : vector<16x1xf32> to vector<16x16xf32>
    %131 = arith.mulf %126, %130 : vector<16x16xf32>
    %132 = arith.truncf %131 : vector<16x16xf32> to vector<16x16xbf16>
    %133 = vector.extract_strided_slice %116 {offsets = [0, 0], sizes = [16, 32], strides = [1, 1]} : vector<16x128xbf16> to vector<16x32xbf16>
    %cst_57 = arith.constant dense<0.000000e+00> : vector<16x32xf32>
    %134 = tpu.matmul %132, %133, %cst_57 {dimension_numbers = #tpu.dot_dimension_numbers<[1], [0], [0], [1], [0, 0, 1, 1], [], []>} : vector<16x16xbf16>, vector<16x32xbf16>, vector<16x32xf32> -> vector<16x32xf32>
    %135 = vector.extract_strided_slice %112 {offsets = [0, 32], sizes = [16, 32], strides = [1, 1]} : vector<16x128xbf16> to vector<16x32xbf16>
    %136 = vector.extract_strided_slice %113 {offsets = [0, 32], sizes = [16, 32], strides = [1, 1]} : vector<16x128xbf16> to vector<16x32xbf16>
    %cst_58 = arith.constant dense<0.000000e+00> : vector<16x16xf32>
    %137 = tpu.matmul %135, %136, %cst_58 {dimension_numbers = #tpu.dot_dimension_numbers<[1], [1], [0], [0], [0, 0, 1, 0], [], []>} : vector<16x32xbf16>, vector<16x32xbf16>, vector<16x16xf32> -> vector<16x16xf32>
    %138 = vector.extract_strided_slice %95 {offsets = [0, 16], sizes = [16, 16], strides = [1, 1]} : vector<16x64xf32> to vector<16x16xf32>
    %139 = arith.addf %138, %137 : vector<16x16xf32>
    %cst_59 = arith.constant dense<0xFF800000> : vector<16xf32>
    %140 = vector.multi_reduction <maximumf>, %139, %cst_59 [1] : vector<16x16xf32> to vector<16xf32>
    %141 = vector.shape_cast %140 : vector<16xf32> to vector<16x1xf32>
    %142 = vector.broadcast %141 : vector<16x1xf32> to vector<16x16xf32>
    %143 = arith.subf %139, %142 : vector<16x16xf32>
    %144 = math.exp %143 : vector<16x16xf32>
    %cst_60 = arith.constant dense<0.000000e+00> : vector<16xf32>
    %145 = vector.multi_reduction <add>, %144, %cst_60 [1] : vector<16x16xf32> to vector<16xf32>
    %146 = vector.shape_cast %145 : vector<16xf32> to vector<16x1xf32>
    %147 = tpu.reciprocal %146 {approx = true} : vector<16x1xf32> -> vector<16x1xf32>
    %148 = vector.broadcast %147 : vector<16x1xf32> to vector<16x16xf32>
    %149 = arith.mulf %144, %148 : vector<16x16xf32>
    %150 = arith.truncf %149 : vector<16x16xf32> to vector<16x16xbf16>
    %151 = vector.extract_strided_slice %116 {offsets = [0, 32], sizes = [16, 32], strides = [1, 1]} : vector<16x128xbf16> to vector<16x32xbf16>
    %cst_61 = arith.constant dense<0.000000e+00> : vector<16x32xf32>
    %152 = tpu.matmul %150, %151, %cst_61 {dimension_numbers = #tpu.dot_dimension_numbers<[1], [0], [0], [1], [0, 0, 1, 1], [], []>} : vector<16x16xbf16>, vector<16x32xbf16>, vector<16x32xf32> -> vector<16x32xf32>
    %153 = vector.extract_strided_slice %112 {offsets = [0, 64], sizes = [16, 32], strides = [1, 1]} : vector<16x128xbf16> to vector<16x32xbf16>
    %154 = vector.extract_strided_slice %113 {offsets = [0, 64], sizes = [16, 32], strides = [1, 1]} : vector<16x128xbf16> to vector<16x32xbf16>
    %cst_62 = arith.constant dense<0.000000e+00> : vector<16x16xf32>
    %155 = tpu.matmul %153, %154, %cst_62 {dimension_numbers = #tpu.dot_dimension_numbers<[1], [1], [0], [0], [0, 0, 1, 0], [], []>} : vector<16x32xbf16>, vector<16x32xbf16>, vector<16x16xf32> -> vector<16x16xf32>
    %156 = vector.extract_strided_slice %95 {offsets = [0, 32], sizes = [16, 16], strides = [1, 1]} : vector<16x64xf32> to vector<16x16xf32>
    %157 = arith.addf %156, %155 : vector<16x16xf32>
    %cst_63 = arith.constant dense<0xFF800000> : vector<16xf32>
    %158 = vector.multi_reduction <maximumf>, %157, %cst_63 [1] : vector<16x16xf32> to vector<16xf32>
    %159 = vector.shape_cast %158 : vector<16xf32> to vector<16x1xf32>
    %160 = vector.broadcast %159 : vector<16x1xf32> to vector<16x16xf32>
    %161 = arith.subf %157, %160 : vector<16x16xf32>
    %162 = math.exp %161 : vector<16x16xf32>
    %cst_64 = arith.constant dense<0.000000e+00> : vector<16xf32>
    %163 = vector.multi_reduction <add>, %162, %cst_64 [1] : vector<16x16xf32> to vector<16xf32>
    %164 = vector.shape_cast %163 : vector<16xf32> to vector<16x1xf32>
    %165 = tpu.reciprocal %164 {approx = true} : vector<16x1xf32> -> vector<16x1xf32>
    %166 = vector.broadcast %165 : vector<16x1xf32> to vector<16x16xf32>
    %167 = arith.mulf %162, %166 : vector<16x16xf32>
    %168 = arith.truncf %167 : vector<16x16xf32> to vector<16x16xbf16>
    %169 = vector.extract_strided_slice %116 {offsets = [0, 64], sizes = [16, 32], strides = [1, 1]} : vector<16x128xbf16> to vector<16x32xbf16>
    %cst_65 = arith.constant dense<0.000000e+00> : vector<16x32xf32>
    %170 = tpu.matmul %168, %169, %cst_65 {dimension_numbers = #tpu.dot_dimension_numbers<[1], [0], [0], [1], [0, 0, 1, 1], [], []>} : vector<16x16xbf16>, vector<16x32xbf16>, vector<16x32xf32> -> vector<16x32xf32>
    %171 = vector.extract_strided_slice %112 {offsets = [0, 96], sizes = [16, 32], strides = [1, 1]} : vector<16x128xbf16> to vector<16x32xbf16>
    %172 = vector.extract_strided_slice %113 {offsets = [0, 96], sizes = [16, 32], strides = [1, 1]} : vector<16x128xbf16> to vector<16x32xbf16>
    %cst_66 = arith.constant dense<0.000000e+00> : vector<16x16xf32>
    %173 = tpu.matmul %171, %172, %cst_66 {dimension_numbers = #tpu.dot_dimension_numbers<[1], [1], [0], [0], [0, 0, 1, 0], [], []>} : vector<16x32xbf16>, vector<16x32xbf16>, vector<16x16xf32> -> vector<16x16xf32>
    %174 = vector.extract_strided_slice %95 {offsets = [0, 48], sizes = [16, 16], strides = [1, 1]} : vector<16x64xf32> to vector<16x16xf32>
    %175 = arith.addf %174, %173 : vector<16x16xf32>
    %cst_67 = arith.constant dense<0xFF800000> : vector<16xf32>
    %176 = vector.multi_reduction <maximumf>, %175, %cst_67 [1] : vector<16x16xf32> to vector<16xf32>
    %177 = vector.shape_cast %176 : vector<16xf32> to vector<16x1xf32>
    %178 = vector.broadcast %177 : vector<16x1xf32> to vector<16x16xf32>
    %179 = arith.subf %175, %178 : vector<16x16xf32>
    %180 = math.exp %179 : vector<16x16xf32>
    %cst_68 = arith.constant dense<0.000000e+00> : vector<16xf32>
    %181 = vector.multi_reduction <add>, %180, %cst_68 [1] : vector<16x16xf32> to vector<16xf32>
    %182 = vector.shape_cast %181 : vector<16xf32> to vector<16x1xf32>
    %183 = tpu.reciprocal %182 {approx = true} : vector<16x1xf32> -> vector<16x1xf32>
    %184 = vector.broadcast %183 : vector<16x1xf32> to vector<16x16xf32>
    %185 = arith.mulf %180, %184 : vector<16x16xf32>
    %186 = arith.truncf %185 : vector<16x16xf32> to vector<16x16xbf16>
    %187 = vector.extract_strided_slice %116 {offsets = [0, 96], sizes = [16, 32], strides = [1, 1]} : vector<16x128xbf16> to vector<16x32xbf16>
    %cst_69 = arith.constant dense<0.000000e+00> : vector<16x32xf32>
    %188 = tpu.matmul %186, %187, %cst_69 {dimension_numbers = #tpu.dot_dimension_numbers<[1], [0], [0], [1], [0, 0, 1, 1], [], []>} : vector<16x16xbf16>, vector<16x32xbf16>, vector<16x32xf32> -> vector<16x32xf32>
    %189 = tpu.concatenate %134, %152, %170, %188 in 1 : vector<16x32xf32>, vector<16x32xf32>, vector<16x32xf32>, vector<16x32xf32> -> vector<16x128xf32>
    %190 = vector.broadcast %111 : vector<1x128xf32> to vector<16x128xf32>
    %191 = arith.addf %189, %190 : vector<16x128xf32>
    %192 = arith.addf %10, %191 : vector<16x128xf32>
    %c0_70 = arith.constant 0 : index
    %c0_71 = arith.constant 0 : index
    %193 = vector.load %arg9[%c0_70, %c0_71] : memref<128x128xbf16, #tpu.memory_space<vmem>>, vector<128x128xbf16>
    %194 = arith.truncf %192 : vector<16x128xf32> to vector<16x128xbf16>
    %cst_72 = arith.constant dense<0.000000e+00> : vector<16x128xf32>
    %195 = tpu.matmul %194, %193, %cst_72 {dimension_numbers = #tpu.dot_dimension_numbers<[1], [0], [0], [1], [0, 0, 1, 1], [], []>} : vector<16x128xbf16>, vector<128x128xbf16>, vector<16x128xf32> -> vector<16x128xf32>
    %c0_73 = arith.constant 0 : index
    %c0_74 = arith.constant 0 : index
    %196 = vector.load %arg10[%c0_73, %c0_74] : memref<1x128xf32, #tpu.memory_space<vmem>>, vector<1x128xf32>
    %197 = vector.broadcast %196 : vector<1x128xf32> to vector<16x128xf32>
    %198 = arith.addf %195, %197 : vector<16x128xf32>
    %cst_75 = arith.constant 0.000000e+00 : f32
    %199 = vector.broadcast %cst_75 : f32 to vector<16x128xf32>
    %200 = arith.maximumf %198, %199 : vector<16x128xf32>
    %201 = vector.extract_strided_slice %200 {offsets = [0, 0], sizes = [8, 128], strides = [1, 1]} : vector<16x128xf32> to vector<8x128xf32>
    %202 = vector.extract_strided_slice %200 {offsets = [8, 0], sizes = [8, 128], strides = [1, 1]} : vector<16x128xf32> to vector<8x128xf32>
    %c0_76 = arith.constant 0 : index
    %c0_77 = arith.constant 0 : index
    %203 = vector.load %arg3[%c0_76, %c0_77] : memref<8x4xf32, #tpu.memory_space<vmem>>, vector<8x4xf32>
    %c0_78 = arith.constant 0 : index
    %c0_79 = arith.constant 0 : index
    %204 = vector.load %arg6[%c0_78, %c0_79] : memref<4x8xf32, #tpu.memory_space<vmem>>, vector<4x8xf32>
    %c0_80 = arith.constant 0 : index
    %c0_81 = arith.constant 0 : index
    %205 = vector.load %arg19[%c0_80, %c0_81] : memref<256x32xf32, #tpu.memory_space<vmem>>, vector<256x32xf32>
    %c0_82 = arith.constant 0 : index
    %c0_83 = arith.constant 0 : index
    %206 = vector.load %arg20[%c0_82, %c0_83] : memref<1x32xf32, #tpu.memory_space<vmem>>, vector<1x32xf32>
    %207 = vector.extract_strided_slice %203 {offsets = [0, 0], sizes = [8, 1], strides = [1, 1]} : vector<8x4xf32> to vector<8x1xf32>
    %208 = vector.extract_strided_slice %203 {offsets = [0, 1], sizes = [8, 1], strides = [1, 1]} : vector<8x4xf32> to vector<8x1xf32>
    %209 = vector.extract_strided_slice %203 {offsets = [0, 2], sizes = [8, 1], strides = [1, 1]} : vector<8x4xf32> to vector<8x1xf32>
    %210 = vector.extract_strided_slice %203 {offsets = [0, 3], sizes = [8, 1], strides = [1, 1]} : vector<8x4xf32> to vector<8x1xf32>
    %211 = arith.subf %209, %207 : vector<8x1xf32>
    %cst_84 = arith.constant 1.000000e+00 : f32
    %212 = vector.broadcast %cst_84 : f32 to vector<8x1xf32>
    %213 = arith.addf %211, %212 : vector<8x1xf32>
    %214 = arith.subf %210, %208 : vector<8x1xf32>
    %cst_85 = arith.constant 1.000000e+00 : f32
    %215 = vector.broadcast %cst_85 : f32 to vector<8x1xf32>
    %216 = arith.addf %214, %215 : vector<8x1xf32>
    %217 = arith.addf %207, %209 : vector<8x1xf32>
    %cst_86 = arith.constant 5.000000e-01 : f32
    %218 = vector.broadcast %cst_86 : f32 to vector<8x1xf32>
    %219 = arith.mulf %218, %217 : vector<8x1xf32>
    %220 = arith.addf %208, %210 : vector<8x1xf32>
    %cst_87 = arith.constant 5.000000e-01 : f32
    %221 = vector.broadcast %cst_87 : f32 to vector<8x1xf32>
    %222 = arith.mulf %221, %220 : vector<8x1xf32>
    %223 = vector.extract_strided_slice %204 {offsets = [0, 0], sizes = [1, 8], strides = [1, 1]} : vector<4x8xf32> to vector<1x8xf32>
    %224 = vector.extract_strided_slice %204 {offsets = [1, 0], sizes = [1, 8], strides = [1, 1]} : vector<4x8xf32> to vector<1x8xf32>
    %225 = vector.extract_strided_slice %204 {offsets = [2, 0], sizes = [1, 8], strides = [1, 1]} : vector<4x8xf32> to vector<1x8xf32>
    %226 = vector.extract_strided_slice %204 {offsets = [3, 0], sizes = [1, 8], strides = [1, 1]} : vector<4x8xf32> to vector<1x8xf32>
    %227 = arith.subf %225, %223 : vector<1x8xf32>
    %cst_88 = arith.constant 1.000000e+00 : f32
    %228 = vector.broadcast %cst_88 : f32 to vector<1x8xf32>
    %229 = arith.addf %227, %228 : vector<1x8xf32>
    %230 = arith.subf %226, %224 : vector<1x8xf32>
    %cst_89 = arith.constant 1.000000e+00 : f32
    %231 = vector.broadcast %cst_89 : f32 to vector<1x8xf32>
    %232 = arith.addf %230, %231 : vector<1x8xf32>
    %233 = arith.addf %223, %225 : vector<1x8xf32>
    %cst_90 = arith.constant 5.000000e-01 : f32
    %234 = vector.broadcast %cst_90 : f32 to vector<1x8xf32>
    %235 = arith.mulf %234, %233 : vector<1x8xf32>
    %236 = arith.addf %224, %226 : vector<1x8xf32>
    %cst_91 = arith.constant 5.000000e-01 : f32
    %237 = vector.broadcast %cst_91 : f32 to vector<1x8xf32>
    %238 = arith.mulf %237, %236 : vector<1x8xf32>
    %239 = vector.broadcast %219 : vector<8x1xf32> to vector<8x8xf32>
    %240 = vector.broadcast %235 : vector<1x8xf32> to vector<8x8xf32>
    %241 = arith.subf %239, %240 : vector<8x8xf32>
    %242 = vector.broadcast %213 : vector<8x1xf32> to vector<8x8xf32>
    %243 = arith.divf %241, %242 : vector<8x8xf32>
    %244 = math.absf %243 : vector<8x8xf32>
    %cst_92 = arith.constant 1.000000e-03 : f32
    %245 = vector.broadcast %cst_92 : f32 to vector<8x8xf32>
    %246 = arith.addf %244, %245 : vector<8x8xf32>
    %247 = math.log %246 : vector<8x8xf32>
    %248 = vector.broadcast %222 : vector<8x1xf32> to vector<8x8xf32>
    %249 = vector.broadcast %238 : vector<1x8xf32> to vector<8x8xf32>
    %250 = arith.subf %248, %249 : vector<8x8xf32>
    %251 = vector.broadcast %216 : vector<8x1xf32> to vector<8x8xf32>
    %252 = arith.divf %250, %251 : vector<8x8xf32>
    %253 = math.absf %252 : vector<8x8xf32>
    %cst_93 = arith.constant 1.000000e-03 : f32
    %254 = vector.broadcast %cst_93 : f32 to vector<8x8xf32>
    %255 = arith.addf %253, %254 : vector<8x8xf32>
    %256 = math.log %255 : vector<8x8xf32>
    %257 = vector.broadcast %213 : vector<8x1xf32> to vector<8x8xf32>
    %258 = vector.broadcast %229 : vector<1x8xf32> to vector<8x8xf32>
    %259 = arith.divf %257, %258 : vector<8x8xf32>
    %260 = math.log %259 : vector<8x8xf32>
    %261 = vector.broadcast %216 : vector<8x1xf32> to vector<8x8xf32>
    %262 = vector.broadcast %232 : vector<1x8xf32> to vector<8x8xf32>
    %263 = arith.divf %261, %262 : vector<8x8xf32>
    %264 = math.log %263 : vector<8x8xf32>
    %265 = tpu.concatenate %247, %256, %260, %264 in 1 : vector<8x8xf32>, vector<8x8xf32>, vector<8x8xf32>, vector<8x8xf32> -> vector<8x32xf32>
    %cst_94 = arith.constant 1.000000e+02 : f32
    %266 = vector.broadcast %cst_94 : f32 to vector<8x32xf32>
    %267 = arith.mulf %265, %266 : vector<8x32xf32>
    %cst_95 = arith.constant 17.782795 : f32
    %268 = vector.broadcast %cst_95 : f32 to vector<8x32xf32>
    %269 = arith.mulf %265, %268 : vector<8x32xf32>
    %cst_96 = arith.constant 3.1622777 : f32
    %270 = vector.broadcast %cst_96 : f32 to vector<8x32xf32>
    %271 = arith.mulf %265, %270 : vector<8x32xf32>
    %cst_97 = arith.constant 0.562341332 : f32
    %272 = vector.broadcast %cst_97 : f32 to vector<8x32xf32>
    %273 = arith.mulf %265, %272 : vector<8x32xf32>
    %274 = tpu.concatenate %267, %269, %271, %273 in 1 : vector<8x32xf32>, vector<8x32xf32>, vector<8x32xf32>, vector<8x32xf32> -> vector<8x128xf32>
    %275 = math.sin %274 : vector<8x128xf32>
    %276 = math.cos %274 : vector<8x128xf32>
    %277 = tpu.concatenate %275, %276 in 1 : vector<8x128xf32>, vector<8x128xf32> -> vector<8x256xf32>
    %cst_98 = arith.constant dense<0.000000e+00> : vector<8x32xf32>
    %278 = tpu.matmul %277, %205, %cst_98 {dimension_numbers = #tpu.dot_dimension_numbers<[1], [0], [0], [1], [0, 0, 1, 1], [], []>} : vector<8x256xf32>, vector<256x32xf32>, vector<8x32xf32> -> vector<8x32xf32>
    %279 = vector.broadcast %206 : vector<1x32xf32> to vector<8x32xf32>
    %280 = arith.addf %278, %279 : vector<8x32xf32>
    %cst_99 = arith.constant 0.000000e+00 : f32
    %281 = vector.broadcast %cst_99 : f32 to vector<8x32xf32>
    %282 = arith.maximumf %280, %281 : vector<8x32xf32>
    %cst_100 = arith.constant 9.99999997E-7 : f32
    %283 = vector.broadcast %cst_100 : f32 to vector<8x32xf32>
    %284 = arith.addf %282, %283 : vector<8x32xf32>
    %285 = math.log %284 : vector<8x32xf32>
    %c0_101 = arith.constant 0 : index
    %c0_102 = arith.constant 0 : index
    %286 = vector.load %arg21[%c0_101, %c0_102] : memref<128x128xbf16, #tpu.memory_space<vmem>>, vector<128x128xbf16>
    %287 = arith.truncf %201 : vector<8x128xf32> to vector<8x128xbf16>
    %cst_103 = arith.constant dense<0.000000e+00> : vector<8x128xf32>
    %288 = tpu.matmul %287, %286, %cst_103 {dimension_numbers = #tpu.dot_dimension_numbers<[1], [0], [0], [1], [0, 0, 1, 1], [], []>} : vector<8x128xbf16>, vector<128x128xbf16>, vector<8x128xf32> -> vector<8x128xf32>
    %c0_104 = arith.constant 0 : index
    %c0_105 = arith.constant 0 : index
    %289 = vector.load %arg22[%c0_104, %c0_105] : memref<1x128xf32, #tpu.memory_space<vmem>>, vector<1x128xf32>
    %290 = vector.broadcast %289 : vector<1x128xf32> to vector<8x128xf32>
    %291 = arith.addf %288, %290 : vector<8x128xf32>
    %c0_106 = arith.constant 0 : index
    %c0_107 = arith.constant 0 : index
    %292 = vector.load %arg23[%c0_106, %c0_107] : memref<128x128xbf16, #tpu.memory_space<vmem>>, vector<128x128xbf16>
    %293 = arith.truncf %202 : vector<8x128xf32> to vector<8x128xbf16>
    %cst_108 = arith.constant dense<0.000000e+00> : vector<8x128xf32>
    %294 = tpu.matmul %293, %292, %cst_108 {dimension_numbers = #tpu.dot_dimension_numbers<[1], [0], [0], [1], [0, 0, 1, 1], [], []>} : vector<8x128xbf16>, vector<128x128xbf16>, vector<8x128xf32> -> vector<8x128xf32>
    %c0_109 = arith.constant 0 : index
    %c0_110 = arith.constant 0 : index
    %295 = vector.load %arg24[%c0_109, %c0_110] : memref<1x128xf32, #tpu.memory_space<vmem>>, vector<1x128xf32>
    %296 = vector.broadcast %295 : vector<1x128xf32> to vector<8x128xf32>
    %297 = arith.addf %294, %296 : vector<8x128xf32>
    %c0_111 = arith.constant 0 : index
    %c0_112 = arith.constant 0 : index
    %298 = vector.load %arg25[%c0_111, %c0_112] : memref<128x128xbf16, #tpu.memory_space<vmem>>, vector<128x128xbf16>
    %c0_113 = arith.constant 0 : index
    %c0_114 = arith.constant 0 : index
    %299 = vector.load %arg26[%c0_113, %c0_114] : memref<1x128xf32, #tpu.memory_space<vmem>>, vector<1x128xf32>
    %300 = arith.truncf %291 : vector<8x128xf32> to vector<8x128xbf16>
    %301 = arith.truncf %297 : vector<8x128xf32> to vector<8x128xbf16>
    %302 = arith.truncf %202 : vector<8x128xf32> to vector<8x128xbf16>
    %cst_115 = arith.constant dense<0.000000e+00> : vector<8x128xf32>
    %303 = tpu.matmul %302, %298, %cst_115 {dimension_numbers = #tpu.dot_dimension_numbers<[1], [0], [0], [1], [0, 0, 1, 1], [], []>} : vector<8x128xbf16>, vector<128x128xbf16>, vector<8x128xf32> -> vector<8x128xf32>
    %304 = arith.truncf %303 : vector<8x128xf32> to vector<8x128xbf16>
    %305 = vector.extract_strided_slice %300 {offsets = [0, 0], sizes = [8, 32], strides = [1, 1]} : vector<8x128xbf16> to vector<8x32xbf16>
    %306 = vector.extract_strided_slice %301 {offsets = [0, 0], sizes = [8, 32], strides = [1, 1]} : vector<8x128xbf16> to vector<8x32xbf16>
    %cst_116 = arith.constant dense<0.000000e+00> : vector<8x8xf32>
    %307 = tpu.matmul %305, %306, %cst_116 {dimension_numbers = #tpu.dot_dimension_numbers<[1], [1], [0], [0], [0, 0, 1, 0], [], []>} : vector<8x32xbf16>, vector<8x32xbf16>, vector<8x8xf32> -> vector<8x8xf32>
    %308 = vector.extract_strided_slice %285 {offsets = [0, 0], sizes = [8, 8], strides = [1, 1]} : vector<8x32xf32> to vector<8x8xf32>
    %309 = arith.addf %308, %307 : vector<8x8xf32>
    %cst_117 = arith.constant dense<0xFF800000> : vector<8xf32>
    %310 = vector.multi_reduction <maximumf>, %309, %cst_117 [1] : vector<8x8xf32> to vector<8xf32>
    %311 = vector.shape_cast %310 : vector<8xf32> to vector<8x1xf32>
    %312 = vector.broadcast %311 : vector<8x1xf32> to vector<8x8xf32>
    %313 = arith.subf %309, %312 : vector<8x8xf32>
    %314 = math.exp %313 : vector<8x8xf32>
    %cst_118 = arith.constant dense<0.000000e+00> : vector<8xf32>
    %315 = vector.multi_reduction <add>, %314, %cst_118 [1] : vector<8x8xf32> to vector<8xf32>
    %316 = vector.shape_cast %315 : vector<8xf32> to vector<8x1xf32>
    %317 = tpu.reciprocal %316 {approx = true} : vector<8x1xf32> -> vector<8x1xf32>
    %318 = vector.broadcast %317 : vector<8x1xf32> to vector<8x8xf32>
    %319 = arith.mulf %314, %318 : vector<8x8xf32>
    %320 = arith.truncf %319 : vector<8x8xf32> to vector<8x8xbf16>
    %321 = vector.extract_strided_slice %304 {offsets = [0, 0], sizes = [8, 32], strides = [1, 1]} : vector<8x128xbf16> to vector<8x32xbf16>
    %cst_119 = arith.constant dense<0.000000e+00> : vector<8x32xf32>
    %322 = tpu.matmul %320, %321, %cst_119 {dimension_numbers = #tpu.dot_dimension_numbers<[1], [0], [0], [1], [0, 0, 1, 1], [], []>} : vector<8x8xbf16>, vector<8x32xbf16>, vector<8x32xf32> -> vector<8x32xf32>
    %323 = vector.extract_strided_slice %300 {offsets = [0, 32], sizes = [8, 32], strides = [1, 1]} : vector<8x128xbf16> to vector<8x32xbf16>
    %324 = vector.extract_strided_slice %301 {offsets = [0, 32], sizes = [8, 32], strides = [1, 1]} : vector<8x128xbf16> to vector<8x32xbf16>
    %cst_120 = arith.constant dense<0.000000e+00> : vector<8x8xf32>
    %325 = tpu.matmul %323, %324, %cst_120 {dimension_numbers = #tpu.dot_dimension_numbers<[1], [1], [0], [0], [0, 0, 1, 0], [], []>} : vector<8x32xbf16>, vector<8x32xbf16>, vector<8x8xf32> -> vector<8x8xf32>
    %326 = vector.extract_strided_slice %285 {offsets = [0, 8], sizes = [8, 8], strides = [1, 1]} : vector<8x32xf32> to vector<8x8xf32>
    %327 = arith.addf %326, %325 : vector<8x8xf32>
    %cst_121 = arith.constant dense<0xFF800000> : vector<8xf32>
    %328 = vector.multi_reduction <maximumf>, %327, %cst_121 [1] : vector<8x8xf32> to vector<8xf32>
    %329 = vector.shape_cast %328 : vector<8xf32> to vector<8x1xf32>
    %330 = vector.broadcast %329 : vector<8x1xf32> to vector<8x8xf32>
    %331 = arith.subf %327, %330 : vector<8x8xf32>
    %332 = math.exp %331 : vector<8x8xf32>
    %cst_122 = arith.constant dense<0.000000e+00> : vector<8xf32>
    %333 = vector.multi_reduction <add>, %332, %cst_122 [1] : vector<8x8xf32> to vector<8xf32>
    %334 = vector.shape_cast %333 : vector<8xf32> to vector<8x1xf32>
    %335 = tpu.reciprocal %334 {approx = true} : vector<8x1xf32> -> vector<8x1xf32>
    %336 = vector.broadcast %335 : vector<8x1xf32> to vector<8x8xf32>
    %337 = arith.mulf %332, %336 : vector<8x8xf32>
    %338 = arith.truncf %337 : vector<8x8xf32> to vector<8x8xbf16>
    %339 = vector.extract_strided_slice %304 {offsets = [0, 32], sizes = [8, 32], strides = [1, 1]} : vector<8x128xbf16> to vector<8x32xbf16>
    %cst_123 = arith.constant dense<0.000000e+00> : vector<8x32xf32>
    %340 = tpu.matmul %338, %339, %cst_123 {dimension_numbers = #tpu.dot_dimension_numbers<[1], [0], [0], [1], [0, 0, 1, 1], [], []>} : vector<8x8xbf16>, vector<8x32xbf16>, vector<8x32xf32> -> vector<8x32xf32>
    %341 = vector.extract_strided_slice %300 {offsets = [0, 64], sizes = [8, 32], strides = [1, 1]} : vector<8x128xbf16> to vector<8x32xbf16>
    %342 = vector.extract_strided_slice %301 {offsets = [0, 64], sizes = [8, 32], strides = [1, 1]} : vector<8x128xbf16> to vector<8x32xbf16>
    %cst_124 = arith.constant dense<0.000000e+00> : vector<8x8xf32>
    %343 = tpu.matmul %341, %342, %cst_124 {dimension_numbers = #tpu.dot_dimension_numbers<[1], [1], [0], [0], [0, 0, 1, 0], [], []>} : vector<8x32xbf16>, vector<8x32xbf16>, vector<8x8xf32> -> vector<8x8xf32>
    %344 = vector.extract_strided_slice %285 {offsets = [0, 16], sizes = [8, 8], strides = [1, 1]} : vector<8x32xf32> to vector<8x8xf32>
    %345 = arith.addf %344, %343 : vector<8x8xf32>
    %cst_125 = arith.constant dense<0xFF800000> : vector<8xf32>
    %346 = vector.multi_reduction <maximumf>, %345, %cst_125 [1] : vector<8x8xf32> to vector<8xf32>
    %347 = vector.shape_cast %346 : vector<8xf32> to vector<8x1xf32>
    %348 = vector.broadcast %347 : vector<8x1xf32> to vector<8x8xf32>
    %349 = arith.subf %345, %348 : vector<8x8xf32>
    %350 = math.exp %349 : vector<8x8xf32>
    %cst_126 = arith.constant dense<0.000000e+00> : vector<8xf32>
    %351 = vector.multi_reduction <add>, %350, %cst_126 [1] : vector<8x8xf32> to vector<8xf32>
    %352 = vector.shape_cast %351 : vector<8xf32> to vector<8x1xf32>
    %353 = tpu.reciprocal %352 {approx = true} : vector<8x1xf32> -> vector<8x1xf32>
    %354 = vector.broadcast %353 : vector<8x1xf32> to vector<8x8xf32>
    %355 = arith.mulf %350, %354 : vector<8x8xf32>
    %356 = arith.truncf %355 : vector<8x8xf32> to vector<8x8xbf16>
    %357 = vector.extract_strided_slice %304 {offsets = [0, 64], sizes = [8, 32], strides = [1, 1]} : vector<8x128xbf16> to vector<8x32xbf16>
    %cst_127 = arith.constant dense<0.000000e+00> : vector<8x32xf32>
    %358 = tpu.matmul %356, %357, %cst_127 {dimension_numbers = #tpu.dot_dimension_numbers<[1], [0], [0], [1], [0, 0, 1, 1], [], []>} : vector<8x8xbf16>, vector<8x32xbf16>, vector<8x32xf32> -> vector<8x32xf32>
    %359 = vector.extract_strided_slice %300 {offsets = [0, 96], sizes = [8, 32], strides = [1, 1]} : vector<8x128xbf16> to vector<8x32xbf16>
    %360 = vector.extract_strided_slice %301 {offsets = [0, 96], sizes = [8, 32], strides = [1, 1]} : vector<8x128xbf16> to vector<8x32xbf16>
    %cst_128 = arith.constant dense<0.000000e+00> : vector<8x8xf32>
    %361 = tpu.matmul %359, %360, %cst_128 {dimension_numbers = #tpu.dot_dimension_numbers<[1], [1], [0], [0], [0, 0, 1, 0], [], []>} : vector<8x32xbf16>, vector<8x32xbf16>, vector<8x8xf32> -> vector<8x8xf32>
    %362 = vector.extract_strided_slice %285 {offsets = [0, 24], sizes = [8, 8], strides = [1, 1]} : vector<8x32xf32> to vector<8x8xf32>
    %363 = arith.addf %362, %361 : vector<8x8xf32>
    %cst_129 = arith.constant dense<0xFF800000> : vector<8xf32>
    %364 = vector.multi_reduction <maximumf>, %363, %cst_129 [1] : vector<8x8xf32> to vector<8xf32>
    %365 = vector.shape_cast %364 : vector<8xf32> to vector<8x1xf32>
    %366 = vector.broadcast %365 : vector<8x1xf32> to vector<8x8xf32>
    %367 = arith.subf %363, %366 : vector<8x8xf32>
    %368 = math.exp %367 : vector<8x8xf32>
    %cst_130 = arith.constant dense<0.000000e+00> : vector<8xf32>
    %369 = vector.multi_reduction <add>, %368, %cst_130 [1] : vector<8x8xf32> to vector<8xf32>
    %370 = vector.shape_cast %369 : vector<8xf32> to vector<8x1xf32>
    %371 = tpu.reciprocal %370 {approx = true} : vector<8x1xf32> -> vector<8x1xf32>
    %372 = vector.broadcast %371 : vector<8x1xf32> to vector<8x8xf32>
    %373 = arith.mulf %368, %372 : vector<8x8xf32>
    %374 = arith.truncf %373 : vector<8x8xf32> to vector<8x8xbf16>
    %375 = vector.extract_strided_slice %304 {offsets = [0, 96], sizes = [8, 32], strides = [1, 1]} : vector<8x128xbf16> to vector<8x32xbf16>
    %cst_131 = arith.constant dense<0.000000e+00> : vector<8x32xf32>
    %376 = tpu.matmul %374, %375, %cst_131 {dimension_numbers = #tpu.dot_dimension_numbers<[1], [0], [0], [1], [0, 0, 1, 1], [], []>} : vector<8x8xbf16>, vector<8x32xbf16>, vector<8x32xf32> -> vector<8x32xf32>
    %377 = tpu.concatenate %322, %340, %358, %376 in 1 : vector<8x32xf32>, vector<8x32xf32>, vector<8x32xf32>, vector<8x32xf32> -> vector<8x128xf32>
    %378 = vector.broadcast %299 : vector<1x128xf32> to vector<8x128xf32>
    %379 = arith.addf %377, %378 : vector<8x128xf32>
    %380 = arith.addf %201, %379 : vector<8x128xf32>
    %c0_132 = arith.constant 0 : index
    %c0_133 = arith.constant 0 : index
    %381 = vector.load %arg27[%c0_132, %c0_133] : memref<8x128xf32, #tpu.memory_space<vmem>>, vector<8x128xf32>
    tpu.vector_store %arg27[%c0_132, %c0_133], %380 {strides = array<i32>} : memref<8x128xf32, #tpu.memory_space<vmem>>, vector<8x128xf32>,
    return
  }
}

</mosaic_0001>

<llo_original>
// kernel: lstfe_forward.1
$region0: #{lstfe_forward.1}
  #allocation0 [shape = 'u32[]', space=smem, size = 0x4, offset = 0x4, fixed_abs, tag = 'smem constant byte address 0x4 - core index']
  #allocation1 [shape = 'u32[144,128]{1,0:T(1,128)}', space=vmem, size = 0x12000, scoped, tag = 'internal scratch']
  %s0 = inlined_call_operand.vmem [shape: f32[8,256], index: 0, kind: input, shape index: {}]
  %s1 = inlined_call_operand.vmem [shape: f32[16,128], index: 1, kind: input, shape index: {}]
  %s2 = inlined_call_operand.vmem [shape: f32[8,128], index: 2, kind: input, shape index: {}]
  %s3 = inlined_call_operand.vmem [shape: f32[8,4], index: 3, kind: input, shape index: {}]
  %s4 = inlined_call_operand.vmem [shape: f32[8,4], index: 4, kind: input, shape index: {}]
  %s5 = inlined_call_operand.vmem [shape: f32[4,16], index: 5, kind: input, shape index: {}]
  %s6 = inlined_call_operand.vmem [shape: f32[4,8], index: 6, kind: input, shape index: {}]
  %s7 = inlined_call_operand.vmem [shape: bf16[256,128], index: 7, kind: input, shape index: {}]
  %s8 = inlined_call_operand.vmem [shape: f32[1,128], index: 8, kind: input, shape index: {}]
  %s9 = inlined_call_operand.vmem [shape: bf16[128,128], index: 9, kind: input, shape index: {}]
  %s10 = inlined_call_operand.vmem [shape: f32[1,128], index: 10, kind: input, shape index: {}]
  %s11 = inlined_call_operand.vmem [shape: f32[512,64], index: 11, kind: input, shape index: {}]
  %s12 = inlined_call_operand.vmem [shape: f32[1,64], index: 12, kind: input, shape index: {}]
  %s13 = inlined_call_operand.vmem [shape: bf16[128,128], index: 13, kind: input, shape index: {}]
  %s14 = inlined_call_operand.vmem [shape: f32[1,128], index: 14, kind: input, shape index: {}]
  %s15 = inlined_call_operand.vmem [shape: bf16[128,128], index: 15, kind: input, shape index: {}]
  %s16 = inlined_call_operand.vmem [shape: f32[1,128], index: 16, kind: input, shape index: {}]
  %s17 = inlined_call_operand.vmem [shape: bf16[128,128], index: 17, kind: input, shape index: {}]
  %s18 = inlined_call_operand.vmem [shape: f32[1,128], index: 18, kind: input, shape index: {}]
  %s19 = inlined_call_operand.vmem [shape: f32[256,32], index: 19, kind: input, shape index: {}]
  %s20 = inlined_call_operand.vmem [shape: f32[1,32], index: 20, kind: input, shape index: {}]
  %s21 = inlined_call_operand.vmem [shape: bf16[128,128], index: 21, kind: input, shape index: {}]
  %s22 = inlined_call_operand.vmem [shape: f32[1,128], index: 22, kind: input, shape index: {}]
  %s23 = inlined_call_operand.vmem [shape: bf16[128,128], index: 23, kind: input, shape index: {}]
  %s24 = inlined_call_operand.vmem [shape: f32[1,128], index: 24, kind: input, shape index: {}]
  %s25 = inlined_call_operand.vmem [shape: bf16[128,128], index: 25, kind: input, shape index: {}]
  %s26 = inlined_call_operand.vmem [shape: f32[1,128], index: 26, kind: input, shape index: {}]
  %s27 = inlined_call_operand.hbm [shape: f32[8,128], index: 27, kind: output, shape index: {}]
  %s28 = sld [smem:[#allocation0]]
  $region118: #{lstfe_forward.1} parent=0
    _
  %s30 = ssub.s32 1, %s28
  %s31 = scalar_select 0, %s30, %s28
  $region1: #{lstfe_forward.1} parent=0
    #allocation2 [shape = 'u8[4096]{0}', space=vmem, size = 0x1000, scoped, tag = 'output window, operand 0, single buffered']
    #allocation3 [shape = 's32[1]{0}', space=sflag, size = 0x4, scoped, tag = 'scoped memory for lstfe_forward.1']
    %32 = vsyncpa [#allocation3], 0
    // Predicated region
    $region2: #{lstfe_forward.1} parent=1 // pred_check
      _
    $region3: #{lstfe_forward.1} parent=1 // pred_check_branch
      %34 = sbr.rel (0) target = $region5
    $region4: #{lstfe_forward.1} parent=1 // pred_region
      _
    $region5: #{lstfe_forward.1} parent=1 // pred_fallthru
      _
    // Predicated region
    $region6: #{lstfe_forward.1} parent=1 // pred_check
      _
    $region7: #{lstfe_forward.1} parent=1 // pred_check_branch
      %36 = sbr.rel (0) target = $region9
    $region8: #{lstfe_forward.1} parent=1 // pred_region
      _
    $region9: #{lstfe_forward.1} parent=1 // pred_fallthru
      _
    // Predicated region
    $region10: #{lstfe_forward.1} parent=1 // pred_check
      _
    $region11: #{lstfe_forward.1} parent=1 // pred_check_branch
      %38 = sbr.rel (0) target = $region13
    $region12: #{lstfe_forward.1} parent=1 // pred_region
      _
    $region13: #{lstfe_forward.1} parent=1 // pred_fallthru
      _
    // Predicated region
    $region14: #{lstfe_forward.1} parent=1 // pred_check
      _
    $region15: #{lstfe_forward.1} parent=1 // pred_check_branch
      %40 = sbr.rel (0) target = $region17
    $region16: #{lstfe_forward.1} parent=1 // pred_region
      _
    $region17: #{lstfe_forward.1} parent=1 // pred_fallthru
      _
    // Predicated region
    $region18: #{lstfe_forward.1} parent=1 // pred_check
      _
    $region19: #{lstfe_forward.1} parent=1 // pred_check_branch
      %42 = sbr.rel (0) target = $region21
    $region20: #{lstfe_forward.1} parent=1 // pred_region
      _
    $region21: #{lstfe_forward.1} parent=1 // pred_fallthru
      _
    // Predicated region
    $region22: #{lstfe_forward.1} parent=1 // pred_check
      _
    $region23: #{lstfe_forward.1} parent=1 // pred_check_branch
      %44 = sbr.rel (0) target = $region25
    $region24: #{lstfe_forward.1} parent=1 // pred_region
      _
    $region25: #{lstfe_forward.1} parent=1 // pred_fallthru
      _
    // Predicated region
    $region26: #{lstfe_forward.1} parent=1 // pred_check
      _
    $region27: #{lstfe_forward.1} parent=1 // pred_check_branch
      %46 = sbr.rel (0) target = $region29
    $region28: #{lstfe_forward.1} parent=1 // pred_region
      _
    $region29: #{lstfe_forward.1} parent=1 // pred_fallthru
      _
    // Predicated region
    $region30: #{lstfe_forward.1} parent=1 // pred_check
      _
    $region31: #{lstfe_forward.1} parent=1 // pred_check_branch
      %48 = sbr.rel (0) target = $region33
    $region32: #{lstfe_forward.1} parent=1 // pred_region
      _
    $region33: #{lstfe_forward.1} parent=1 // pred_fallthru
      _
    // Predicated region
    $region34: #{lstfe_forward.1} parent=1 // pred_check
      _
    $region35: #{lstfe_forward.1} parent=1 // pred_check_branch
      %50 = sbr.rel (0) target = $region37
    $region36: #{lstfe_forward.1} parent=1 // pred_region
      _
    $region37: #{lstfe_forward.1} parent=1 // pred_fallthru
      _
    // Predicated region
    $region38: #{lstfe_forward.1} parent=1 // pred_check
      _
    $region39: #{lstfe_forward.1} parent=1 // pred_check_branch
      %52 = sbr.rel (0) target = $region41
    $region40: #{lstfe_forward.1} parent=1 // pred_region
      _
    $region41: #{lstfe_forward.1} parent=1 // pred_fallthru
      _
    // Predicated region
    $region42: #{lstfe_forward.1} parent=1 // pred_check
      _
    $region43: #{lstfe_forward.1} parent=1 // pred_check_branch
      %54 = sbr.rel (0) target = $region45
    $region44: #{lstfe_forward.1} parent=1 // pred_region
      _
    $region45: #{lstfe_forward.1} parent=1 // pred_fallthru
      _
    // Predicated region
    $region46: #{lstfe_forward.1} parent=1 // pred_check
      _
    $region47: #{lstfe_forward.1} parent=1 // pred_check_branch
      %56 = sbr.rel (0) target = $region49
    $region48: #{lstfe_forward.1} parent=1 // pred_region
      _
    $region49: #{lstfe_forward.1} parent=1 // pred_fallthru
      _
    // Predicated region
    $region50: #{lstfe_forward.1} parent=1 // pred_check
      _
    $region51: #{lstfe_forward.1} parent=1 // pred_check_branch
      %58 = sbr.rel (0) target = $region53
    $region52: #{lstfe_forward.1} parent=1 // pred_region
      _
    $region53: #{lstfe_forward.1} parent=1 // pred_fallthru
      _
    // Predicated region
    $region54: #{lstfe_forward.1} parent=1 // pred_check
      _
    $region55: #{lstfe_forward.1} parent=1 // pred_check_branch
      %60 = sbr.rel (0) target = $region57
    $region56: #{lstfe_forward.1} parent=1 // pred_region
      _
    $region57: #{lstfe_forward.1} parent=1 // pred_fallthru
      _
    // Predicated region
    $region58: #{lstfe_forward.1} parent=1 // pred_check
      _
    $region59: #{lstfe_forward.1} parent=1 // pred_check_branch
      %62 = sbr.rel (0) target = $region61
    $region60: #{lstfe_forward.1} parent=1 // pred_region
      _
    $region61: #{lstfe_forward.1} parent=1 // pred_fallthru
      _
    // Predicated region
    $region62: #{lstfe_forward.1} parent=1 // pred_check
      _
    $region63: #{lstfe_forward.1} parent=1 // pred_check_branch
      %64 = sbr.rel (0) target = $region65
    $region64: #{lstfe_forward.1} parent=1 // pred_region
      _
    $region65: #{lstfe_forward.1} parent=1 // pred_fallthru
      _
    // Predicated region
    $region66: #{lstfe_forward.1} parent=1 // pred_check
      _
    $region67: #{lstfe_forward.1} parent=1 // pred_check_branch
      %66 = sbr.rel (0) target = $region69
    $region68: #{lstfe_forward.1} parent=1 // pred_region
      _
    $region69: #{lstfe_forward.1} parent=1 // pred_fallthru
      _
    // Predicated region
    $region70: #{lstfe_forward.1} parent=1 // pred_check
      _
    $region71: #{lstfe_forward.1} parent=1 // pred_check_branch
      %68 = sbr.rel (0) target = $region73
    $region72: #{lstfe_forward.1} parent=1 // pred_region
      _
    $region73: #{lstfe_forward.1} parent=1 // pred_fallthru
      _
    // Predicated region
    $region74: #{lstfe_forward.1} parent=1 // pred_check
      _
    $region75: #{lstfe_forward.1} parent=1 // pred_check_branch
      %70 = sbr.rel (0) target = $region77
    $region76: #{lstfe_forward.1} parent=1 // pred_region
      _
    $region77: #{lstfe_forward.1} parent=1 // pred_fallthru
      _
    // Predicated region
    $region78: #{lstfe_forward.1} parent=1 // pred_check
      _
    $region79: #{lstfe_forward.1} parent=1 // pred_check_branch
      %72 = sbr.rel (0) target = $region81
    $region80: #{lstfe_forward.1} parent=1 // pred_region
      _
    $region81: #{lstfe_forward.1} parent=1 // pred_fallthru
      _
    // Predicated region
    $region82: #{lstfe_forward.1} parent=1 // pred_check
      _
    $region83: #{lstfe_forward.1} parent=1 // pred_check_branch
      %74 = sbr.rel (0) target = $region85
    $region84: #{lstfe_forward.1} parent=1 // pred_region
      _
    $region85: #{lstfe_forward.1} parent=1 // pred_fallthru
      _
    // Predicated region
    $region86: #{lstfe_forward.1} parent=1 // pred_check
      _
    $region87: #{lstfe_forward.1} parent=1 // pred_check_branch
      %76 = sbr.rel (0) target = $region89
    $region88: #{lstfe_forward.1} parent=1 // pred_region
      _
    $region89: #{lstfe_forward.1} parent=1 // pred_fallthru
      _
    // Predicated region
    $region90: #{lstfe_forward.1} parent=1 // pred_check
      _
    $region91: #{lstfe_forward.1} parent=1 // pred_check_branch
      %78 = sbr.rel (0) target = $region93
    $region92: #{lstfe_forward.1} parent=1 // pred_region
      _
    $region93: #{lstfe_forward.1} parent=1 // pred_fallthru
      _
    // Predicated region
    $region94: #{lstfe_forward.1} parent=1 // pred_check
      _
    $region95: #{lstfe_forward.1} parent=1 // pred_check_branch
      %80 = sbr.rel (0) target = $region97
    $region96: #{lstfe_forward.1} parent=1 // pred_region
      _
    $region97: #{lstfe_forward.1} parent=1 // pred_fallthru
      _
    // Predicated region
    $region98: #{lstfe_forward.1} parent=1 // pred_check
      _
    $region99: #{lstfe_forward.1} parent=1 // pred_check_branch
      %82 = sbr.rel (0) target = $region101
    $region100: #{lstfe_forward.1} parent=1 // pred_region
      _
    $region101: #{lstfe_forward.1} parent=1 // pred_fallthru
      _
    // Predicated region
    $region102: #{lstfe_forward.1} parent=1 // pred_check
      _
    $region103: #{lstfe_forward.1} parent=1 // pred_check_branch
      %84 = sbr.rel (0) target = $region105
    $region104: #{lstfe_forward.1} parent=1 // pred_region
      _
    $region105: #{lstfe_forward.1} parent=1 // pred_fallthru
      _
    // Predicated region
    $region106: #{lstfe_forward.1} parent=1 // pred_check
      _
    $region107: #{lstfe_forward.1} parent=1 // pred_check_branch
      %86 = sbr.rel (0) target = $region109
    $region108: #{lstfe_forward.1} parent=1 // pred_region
      _
    $region109: #{lstfe_forward.1} parent=1 // pred_fallthru
      _
    %v88 = vld [vmem:[%s0] sm:$0xff]
    %v89 = vld [vmem:[%s0 + $0x8] sm:$0xff]
    %v90 = vld [vmem:[%s7] sm:$0xf]
    %v91 = vld [vmem:[%s7 + $0x4] sm:$0xf]
    %v92 = vld [vmem:[%s7 + $0x8] sm:$0xf]
    %v93 = vld [vmem:[%s7 + $0xc] sm:$0xf]
    %v94 = vld [vmem:[%s7 + $0x10] sm:$0xf]
    %v95 = vld [vmem:[%s7 + $0x14] sm:$0xf]
    %v96 = vld [vmem:[%s7 + $0x18] sm:$0xf]
    %v97 = vld [vmem:[%s7 + $0x1c] sm:$0xf]
    %v98 = vld [vmem:[%s7 + $0x20] sm:$0xf]
    %v99 = vld [vmem:[%s7 + $0x24] sm:$0xf]
    %v100 = vld [vmem:[%s7 + $0x28] sm:$0xf]
    %v101 = vld [vmem:[%s7 + $0x2c] sm:$0xf]
    %v102 = vld [vmem:[%s7 + $0x30] sm:$0xf]
    %v103 = vld [vmem:[%s7 + $0x34] sm:$0xf]
    %v104 = vld [vmem:[%s7 + $0x38] sm:$0xf]
    %v105 = vld [vmem:[%s7 + $0x3c] sm:$0xf]
    %v106 = vld [vmem:[%s7 + $0x40] sm:$0xf]
    %v107 = vld [vmem:[%s7 + $0x44] sm:$0xf]
    %v108 = vld [vmem:[%s7 + $0x48] sm:$0xf]
    %v109 = vld [vmem:[%s7 + $0x4c] sm:$0xf]
    %v110 = vld [vmem:[%s7 + $0x50] sm:$0xf]
    %v111 = vld [vmem:[%s7 + $0x54] sm:$0xf]
    %v112 = vld [vmem:[%s7 + $0x58] sm:$0xf]
    %v113 = vld [vmem:[%s7 + $0x5c] sm:$0xf]
    %v114 = vld [vmem:[%s7 + $0x60] sm:$0xf]
    %v115 = vld [vmem:[%s7 + $0x64] sm:$0xf]
    %v116 = vld [vmem:[%s7 + $0x68] sm:$0xf]
    %v117 = vld [vmem:[%s7 + $0x6c] sm:$0xf]
    %v118 = vld [vmem:[%s7 + $0x70] sm:$0xf]
    %v119 = vld [vmem:[%s7 + $0x74] sm:$0xf]
    %v120 = vld [vmem:[%s7 + $0x78] sm:$0xf]
    %v121 = vld [vmem:[%s7 + $0x7c] sm:$0xf]
    %v122 = vpack.c.bf16 %v88, %v88
    %v123 = vpack.c.bf16 %v89, %v89
    %v124 = vld [vmem:[%s8] sm:$0x1]
    %v126 = vlaneseq
    %v127 = vshrl.u32 %v126, 7
    %v128 = vsub.s32 0, %v127
    %v129 = vrot.slane %v124, %v128
    %v163 = vunpack.c.l.b16 %v90
    %v164 = vunpack.c.l.b16 %v91
    %v165 = vunpack.c.l.b16 %v92
    %v166 = vunpack.c.l.b16 %v93
    %v167 = vunpack.c.l.b16 %v94
    %v168 = vunpack.c.l.b16 %v95
    %v169 = vunpack.c.l.b16 %v96
    %v170 = vunpack.c.l.b16 %v97
    %v171 = vunpack.c.l.b16 %v98
    %v172 = vunpack.c.l.b16 %v99
    %v173 = vunpack.c.l.b16 %v100
    %v174 = vunpack.c.l.b16 %v101
    %v175 = vunpack.c.l.b16 %v102
    %v176 = vunpack.c.l.b16 %v103
    %v177 = vunpack.c.l.b16 %v104
    %v178 = vunpack.c.l.b16 %v105
    %v179 = vunpack.c.l.b16 %v106
    %v180 = vunpack.c.l.b16 %v107
    %v181 = vunpack.c.l.b16 %v108
    %v182 = vunpack.c.l.b16 %v109
    %v183 = vunpack.c.l.b16 %v110
    %v184 = vunpack.c.l.b16 %v111
    %v185 = vunpack.c.l.b16 %v112
    %v186 = vunpack.c.l.b16 %v113
    %v187 = vunpack.c.l.b16 %v114
    %v188 = vunpack.c.l.b16 %v115
    %v189 = vunpack.c.l.b16 %v116
    %v190 = vunpack.c.l.b16 %v117
    %v191 = vunpack.c.l.b16 %v118
    %v192 = vunpack.c.l.b16 %v119
    %v193 = vunpack.c.l.b16 %v120
    %v194 = vunpack.c.l.b16 %v121
    %v195 = vpack.c.b16 %v164, %v163
    %v196 = vpack.c.b16 %v166, %v165
    %v197 = vpack.c.b16 %v168, %v167
    %v198 = vpack.c.b16 %v170, %v169
    %v199 = vpack.c.b16 %v172, %v171
    %v200 = vpack.c.b16 %v174, %v173
    %v201 = vpack.c.b16 %v176, %v175
    %v202 = vpack.c.b16 %v178, %v177
    %v203 = vpack.c.b16 %v180, %v179
    %v204 = vpack.c.b16 %v182, %v181
    %v205 = vpack.c.b16 %v184, %v183
    %v206 = vpack.c.b16 %v186, %v185
    %v207 = vpack.c.b16 %v188, %v187
    %v208 = vpack.c.b16 %v190, %v189
    %v209 = vpack.c.b16 %v192, %v191
    %v210 = vpack.c.b16 %v194, %v193
    %227 = vmatprep.subr.bf16.mxu0 0
    %228 = vmatpush1.bf16.msra.mxu0 %v195
    %229 = vmatprep.subr.bf16.mxu0 0
    %230 = vmatpush1.bf16.msra.mxu0 %v196
    %231 = vmatprep.subr.bf16.mxu0 0
    %232 = vmatpush1.bf16.msra.mxu0 %v197
    %233 = vmatprep.subr.bf16.mxu0 0
    %234 = vmatpush1.bf16.msra.mxu0 %v198
    %235 = vmatprep.subr.bf16.mxu0 0
    %236 = vmatpush1.bf16.msra.mxu0 %v199
    %237 = vmatprep.subr.bf16.mxu0 0
    %238 = vmatpush1.bf16.msra.mxu0 %v200
    %239 = vmatprep.subr.bf16.mxu0 0
    %240 = vmatpush1.bf16.msra.mxu0 %v201
    %241 = vmatprep.subr.bf16.mxu0 0
    %242 = vmatpush1.bf16.msra.mxu0 %v202
    %243 = vmatprep.subr.bf16.mxu0 0
    %244 = vmatpush1.bf16.msra.mxu0 %v203
    %245 = vmatprep.subr.bf16.mxu0 0
    %246 = vmatpush1.bf16.msra.mxu0 %v204
    %247 = vmatprep.subr.bf16.mxu0 0
    %248 = vmatpush1.bf16.msra.mxu0 %v205
    %249 = vmatprep.subr.bf16.mxu0 0
    %250 = vmatpush1.bf16.msra.mxu0 %v206
    %251 = vmatprep.subr.bf16.mxu0 0
    %252 = vmatpush1.bf16.msra.mxu0 %v207
    %253 = vmatprep.subr.bf16.mxu0 0
    %254 = vmatpush1.bf16.msra.mxu0 %v208
    %255 = vmatprep.subr.bf16.mxu0 0
    %256 = vmatpush1.bf16.msra.mxu0 %v209
    %257 = vmatprep.subr.bf16.mxu0 0
    %258 = vmatpush1.bf16.msra.mxu0 %v210
    %259 = vmatprep.mubr.bf16.mxu0 %v123
    %260 = vmatmul.mubr.bf16.gmra.mrb[0].mxu0 %v122
    %v261 = vpop.f32.mrb[0].mxu0
    %v262 = vadd.f32 %v129, %v261
    %v263 = vpop.f32.mrb[0].mxu0
    %v264 = vpop.f32.mrb[0].mxu0
    %v265 = vpop.f32.mrb[0].mxu0
    %266 = vdwg.mxu0
    %v267 = vmax.f32 %v262, 0.0
    %v268 = vld [vmem:[%s2] sm:$0xff]
    %v269 = vld [vmem:[%s3] sm:$0xff]
    %v270 = vld [vmem:[%s4] sm:$0xff]
    %v271 = vld [vmem:[%s5] sm:$0xf]
    %v272 = vld [vmem:[%s11] sm:$0xff]
    %v273 = vld [vmem:[%s11 + $0x8] sm:$0xff]
    %v274 = vld [vmem:[%s11 + $0x10] sm:$0xff]
    %v275 = vld [vmem:[%s11 + $0x18] sm:$0xff]
    %v276 = vld [vmem:[%s11 + $0x20] sm:$0xff]
    %v277 = vld [vmem:[%s11 + $0x28] sm:$0xff]
    %v278 = vld [vmem:[%s11 + $0x30] sm:$0xff]
    %v279 = vld [vmem:[%s11 + $0x38] sm:$0xff]
    %v280 = vld [vmem:[%s11 + $0x40] sm:$0xff]
    %v281 = vld [vmem:[%s11 + $0x48] sm:$0xff]
    %v282 = vld [vmem:[%s11 + $0x50] sm:$0xff]
    %v283 = vld [vmem:[%s11 + $0x58] sm:$0xff]
    %v284 = vld [vmem:[%s11 + $0x60] sm:$0xff]
    %v285 = vld [vmem:[%s11 + $0x68] sm:$0xff]
    %v286 = vld [vmem:[%s11 + $0x70] sm:$0xff]
    %v287 = vld [vmem:[%s11 + $0x78] sm:$0xff]
    %v288 = vld [vmem:[%s11 + $0x80] sm:$0xff]
    %v289 = vld [vmem:[%s11 + $0x88] sm:$0xff]
    %v290 = vld [vmem:[%s11 + $0x90] sm:$0xff]
    %v291 = vld [vmem:[%s11 + $0x98] sm:$0xff]
    %v292 = vld [vmem:[%s11 + $0xa0] sm:$0xff]
    %v293 = vld [vmem:[%s11 + $0xa8] sm:$0xff]
    %v294 = vld [vmem:[%s11 + $0xb0] sm:$0xff]
    %v295 = vld [vmem:[%s11 + $0xb8] sm:$0xff]
    %v296 = vld [vmem:[%s11 + $0xc0] sm:$0xff]
    %v297 = vld [vmem:[%s11 + $0xc8] sm:$0xff]
    %v298 = vld [vmem:[%s11 + $0xd0] sm:$0xff]
    %v299 = vld [vmem:[%s11 + $0xd8] sm:$0xff]
    %v300 = vld [vmem:[%s11 + $0xe0] sm:$0xff]
    %v301 = vld [vmem:[%s11 + $0xe8] sm:$0xff]
    %v302 = vld [vmem:[%s11 + $0xf0] sm:$0xff]
    %v303 = vld [vmem:[%s11 + $0xf8] sm:$0xff]
    %v304 = vld [vmem:[%s11 + $0x100] sm:$0xff]
    %v305 = vld [vmem:[%s11 + $0x108] sm:$0xff]
    %v306 = vld [vmem:[%s11 + $0x110] sm:$0xff]
    %v307 = vld [vmem:[%s11 + $0x118] sm:$0xff]
    %v308 = vld [vmem:[%s11 + $0x120] sm:$0xff]
    %v309 = vld [vmem:[%s11 + $0x128] sm:$0xff]
    %v310 = vld [vmem:[%s11 + $0x130] sm:$0xff]
    %v311 = vld [vmem:[%s11 + $0x138] sm:$0xff]
    %v312 = vld [vmem:[%s11 + $0x140] sm:$0xff]
    %v313 = vld [vmem:[%s11 + $0x148] sm:$0xff]
    %v314 = vld [vmem:[%s11 + $0x150] sm:$0xff]
    %v315 = vld [vmem:[%s11 + $0x158] sm:$0xff]
    %v316 = vld [vmem:[%s11 + $0x160] sm:$0xff]
    %v317 = vld [vmem:[%s11 + $0x168] sm:$0xff]
    %v318 = vld [vmem:[%s11 + $0x170] sm:$0xff]
    %v319 = vld [vmem:[%s11 + $0x178] sm:$0xff]
    %v320 = vld [vmem:[%s11 + $0x180] sm:$0xff]
    %v321 = vld [vmem:[%s11 + $0x188] sm:$0xff]
    %v322 = vld [vmem:[%s11 + $0x190] sm:$0xff]
    %v323 = vld [vmem:[%s11 + $0x198] sm:$0xff]
    %v324 = vld [vmem:[%s11 + $0x1a0] sm:$0xff]
    %v325 = vld [vmem:[%s11 + $0x1a8] sm:$0xff]
    %v326 = vld [vmem:[%s11 + $0x1b0] sm:$0xff]
    %v327 = vld [vmem:[%s11 + $0x1b8] sm:$0xff]
    %v328 = vld [vmem:[%s11 + $0x1c0] sm:$0xff]
    %v329 = vld [vmem:[%s11 + $0x1c8] sm:$0xff]
    %v330 = vld [vmem:[%s11 + $0x1d0] sm:$0xff]
    %v331 = vld [vmem:[%s11 + $0x1d8] sm:$0xff]
    %v332 = vld [vmem:[%s11 + $0x1e0] sm:$0xff]
    %v333 = vld [vmem:[%s11 + $0x1e8] sm:$0xff]
    %v334 = vld [vmem:[%s11 + $0x1f0] sm:$0xff]
    %v335 = vld [vmem:[%s11 + $0x1f8] sm:$0xff]
    %v336 = vld [vmem:[%s12] sm:$0x1]
    %339 = vrot.lane.b32.xlu0 %v269, 2
    %v340 = vpop.permute.xlu0 %339
    %341 = vrot.lane.b32.xlu0 %v270, 2
    %v342 = vpop.permute.xlu0 %341
    %v345 = vsub.f32 %v269, %v340
    %v346 = vsub.f32 %v270, %v342
    %v347 = vadd.f32 %v345, 1.0
    %v348 = vadd.f32 %v346, 1.0
    %349 = vrot.lane.b32.xlu0 %v269, 126
    %v350 = vpop.permute.xlu0 %349
    %351 = vrot.lane.b32.xlu0 %v270, 126
    %v352 = vpop.permute.xlu0 %351
    %v355 = vadd.f32 %v269, %v350
    %v356 = vadd.f32 %v270, %v352
    %v357 = vmul.f32 %v355, 0.5
    %v358 = vmul.f32 %v356, 0.5
    %v360 = vrot.slane %v271, 6
    %v362 = vsub.f32 %v271, %v360
    %v363 = vadd.f32 %v362, 1.0
    %v364 = vrot.slane %v271, 2
    %v366 = vadd.f32 %v271, %v364
    %v367 = vmul.f32 %v366, 0.5
    %369 = vset.pattern.permute.xlu0 0
    %370 = vperm.xlu0 %369, %v357
    %v371 = vpop.permute.xlu0 %370
    %374 = vset.pattern.permute.xlu0 0
    %375 = vperm.xlu0 %374, %v358
    %v376 = vpop.permute.xlu0 %375
    %v378 = vlaneseq
    %v379 = vshrl.u32 %v378, 7
    %v380 = vsub.s32 0, %v379
    %v381 = vrot.slane %v367, %v380
    %v382 = vsub.f32 %v371, %v381
    %v383 = vsub.f32 %v376, %v381
    %385 = vset.pattern.permute.xlu0 2
    %386 = vperm.xlu0 %385, %v347
    %v387 = vpop.permute.xlu0 %386
    %390 = vset.pattern.permute.xlu0 2
    %391 = vperm.xlu0 %390, %v348
    %v392 = vpop.permute.xlu0 %391
    %v394 = vrcp.pop %v387
    %v395 = vmul.f32 %v382, %v394
    %v396 = vrcp.pop %v392
    %v397 = vmul.f32 %v383, %v396
    %v398 = vand.u32 2147483647, %v395
    %v399 = vand.u32 2147483647, %v397
    %v400 = vadd.f32 %v398, 0.001
    %v401 = vadd.f32 %v399, 0.001
    %v402 = vlog2.pop %v400
    %v403 = vmul.f32 %v402, 0.6931472
    %v404 = vlog2.pop %v401
    %v405 = vmul.f32 %v404, 0.6931472
    %406 = vset.pattern.permute.xlu0 1
    %407 = vperm.xlu0 %406, %v357
    %v408 = vpop.permute.xlu0 %407
    %410 = vset.pattern.permute.xlu0 1
    %411 = vperm.xlu0 %410, %v358
    %v412 = vpop.permute.xlu0 %411
    %v414 = vlaneseq
    %v415 = vshrl.u32 %v414, 7
    %v416 = vsub.s32 1, %v415
    %v417 = vrot.slane %v367, %v416
    %v418 = vsub.f32 %v408, %v417
    %v419 = vsub.f32 %v412, %v417
    %420 = vset.pattern.permute.xlu0 3
    %421 = vperm.xlu0 %420, %v347
    %v422 = vpop.permute.xlu0 %421
    %424 = vset.pattern.permute.xlu0 3
    %425 = vperm.xlu0 %424, %v348
    %v426 = vpop.permute.xlu0 %425
    %v428 = vrcp.pop %v422
    %v429 = vmul.f32 %v418, %v428
    %v430 = vrcp.pop %v426
    %v431 = vmul.f32 %v419, %v430
    %v432 = vand.u32 2147483647, %v429
    %v433 = vand.u32 2147483647, %v431
    %v434 = vadd.f32 %v432, 0.001
    %v435 = vadd.f32 %v433, 0.001
    %v436 = vlog2.pop %v434
    %v437 = vmul.f32 %v436, 0.6931472
    %v438 = vlog2.pop %v435
    %v439 = vmul.f32 %v438, 0.6931472
    %v440 = vlaneseq
    %v441 = vshrl.u32 %v440, 7
    %v442 = vsub.s32 2, %v441
    %v443 = vrot.slane %v363, %v442
    %v444 = vrcp.pop %v443
    %v445 = vmul.f32 %v387, %v444
    %v446 = vmul.f32 %v392, %v444
    %v447 = vlog2.pop %v445
    %v448 = vmul.f32 %v447, 0.6931472
    %v449 = vlog2.pop %v446
    %v450 = vmul.f32 %v449, 0.6931472
    %v451 = vlaneseq
    %v452 = vshrl.u32 %v451, 7
    %v453 = vsub.s32 3, %v452
    %v454 = vrot.slane %v363, %v453
    %v455 = vrcp.pop %v454
    %v456 = vmul.f32 %v422, %v455
    %v457 = vmul.f32 %v426, %v455
    %v458 = vlog2.pop %v456
    %v459 = vmul.f32 %v458, 0.6931472
    %v460 = vlog2.pop %v457
    %v461 = vmul.f32 %v460, 0.6931472
    %464 = vrot.lane.b32.xlu0 %v437, 16
    %v465 = vpop.permute.xlu0 %464
    %466 = vrot.lane.b32.xlu0 %v439, 16
    %v467 = vpop.permute.xlu0 %466
    %472 = vrot.lane.b32.xlu0 %v448, 32
    %v473 = vpop.permute.xlu0 %472
    %474 = vrot.lane.b32.xlu0 %v450, 32
    %v475 = vpop.permute.xlu0 %474
    %480 = vrot.lane.b32.xlu0 %v459, 48
    %v481 = vpop.permute.xlu0 %480
    %482 = vrot.lane.b32.xlu0 %v461, 48
    %v483 = vpop.permute.xlu0 %482
    %vm486 = vcmask 130048
    %v487 = vsel %vm486, %v403, %v465
    %v488 = vsel %vm486, %v405, %v467
    %vm489 = vcmask 261120
    %v490 = vsel %vm489, %v487, %v473
    %v491 = vsel %vm489, %v488, %v475
    %vm492 = vcmask 392192
    %v493 = vsel %vm492, %v490, %v481
    %v494 = vsel %vm492, %v491, %v483
    %v495 = vmul.f32 %v493, 100.0
    %v496 = vmul.f32 %v494, 100.0
    %v497 = vmul.f32 %v493, 17.782795
    %v498 = vmul.f32 %v494, 17.782795
    %v499 = vmul.f32 %v493, 3.1622777
    %v500 = vmul.f32 %v494, 3.1622777
    %v501 = vmul.f32 %v493, 0.56234133
    %v502 = vmul.f32 %v494, 0.56234133
    %505 = vrot.lane.b32.xlu0 %v497, 64
    %v506 = vpop.permute.xlu0 %505
    %507 = vrot.lane.b32.xlu0 %v498, 64
    %v508 = vpop.permute.xlu0 %507
    %513 = vrot.lane.b32.xlu0 %v501, 64
    %v514 = vpop.permute.xlu0 %513
    %515 = vrot.lane.b32.xlu0 %v502, 64
    %v516 = vpop.permute.xlu0 %515
    %vm519 = vcmask 523264
    %v520 = vsel %vm519, %v495, %v506
    %v521 = vsel %vm519, %v496, %v508
    %v522 = vsel %vm519, %v499, %v514
    %v523 = vsel %vm519, %v500, %v516
    %v524 = vand.u32 2147483647, %v520
    %vm525 = vcmp.le.f32.partialorder %v524, 0.7853982
    %vm526 = vcmp.lt.s32.totalorder %v520, 0
    %v527 = vand.u32 %v520, 2139095040
    %v528 = vshrl.u32 %v527, 23
    %v529 = vsub.s32 %v528, 127
    %v530 = vand.u32 2147483647, %v520
    %v531 = vand.u32 %v530, 8388607
    %v532 = vor.u32 %v531, 8388608
    %v533 = vsub.s32 0, %v532
    %v534 = vadd.s32 %v529, 1
    %vm535 = vcmp.gt.s32.totalorder %v534, 0
    %v536 = vsel %vm535, %v534, 0
    %v537 = vshrl.u32 %v536, 5
    %v538 = vand.u32 %v536, 31
    %v539 = vsub.s32 32, %v538
    %v540 = vshrl.u32 683565275, %v539
    %v541 = vshll.u32 683565275, %v538
    %v542 = vshrl.u32 2475754826, %v539
    %v543 = vor.u32 %v541, %v542
    %v544 = vshll.u32 2475754826, %v538
    %v545 = vshrl.u32 2131351028, %v539
    %v546 = vor.u32 %v544, %v545
    %v547 = vshll.u32 2131351028, %v538
    %v548 = vshrl.u32 2102212464, %v539
    %v549 = vor.u32 %v547, %v548
    %v550 = vshll.u32 2102212464, %v538
    %v551 = vshrl.u32 920167782, %v539
    %v552 = vor.u32 %v550, %v551
    %v553 = vshll.u32 920167782, %v538
    %v554 = vshrl.u32 1326507024, %v539
    %v555 = vor.u32 %v553, %v554
    %vm556 = vcmp.lt.s32.totalorder %v537, 1
    %vm557 = vcmp.lt.s32.totalorder %v537, 2
    %vm558 = vcmp.lt.s32.totalorder %v537, 3
    %vm559 = vcmp.lt.s32.totalorder %v537, 4
    %v560 = vsel %vm556, %v540, %v543
    %v561 = vsel %vm559, %v549, 2102212464
    %v562 = vsel %vm558, %v546, %v561
    %v563 = vsel %vm557, %v560, %v562
    %v564 = vsel %vm556, %v543, %v546
    %v565 = vsel %vm559, %v552, 920167782
    %v566 = vsel %vm558, %v549, %v565
    %v567 = vsel %vm557, %v564, %v566
    %v568 = vsel %vm556, %v546, %v549
    %v569 = vsel %vm559, %v555, 1326507024
    %v570 = vsel %vm558, %v552, %v569
    %v571 = vsel %vm557, %v568, %v570
    %v572 = vshll.u32 %v532, 8
    %v573 = vmul.u32.u64.compose %v572, %v571
    %v574 = vextract.low.u32 %v573
    %v575 = vextract.high.u32 %v573
    %v576 = vmul.u32.u64.compose %v572, %v567
    %v577 = vextract.low.u32 %v576
    %v578 = vextract.high.u32 %v576
    %v579 = vmul.u32 %v572, %v563
    %v580 = vadd.s32 %v575, %v577
    %vm581 = vc.u32 %v575, %v577
    %v582 = vadd.s32 %v578, 1
    %v583 = vsel %vm581, %v582, %v578
    %v584 = vadd.s32 %v579, %v583
    %v585 = vadd.s32 %v584, 536870912
    %v586 = vshrl.u32 %v585, 30
    %v587 = vshll.u32 %v586, 30
    %v588 = vsub.s32 %v584, %v587
    %vm589 = vcmp.lt.s32.totalorder %v588, 0
    %v590 = vsub.s32 0, %v588
    %v591 = vsel %vm589, %v590, %v588
    %v592 = vclz %v591
    %v593 = vsub.s32 %v592, 2
    %vm594 = vcmp.gt.s32.totalorder 0, %v593
    %v595 = vsel %vm594, 0, %v593
    %v596 = vsub.s32 32, %v595
    %v597 = vshll.u32 %v588, %v595
    %v598 = vshrl.u32 %v580, %v596
    %v599 = vor.u32 %v597, %v598
    %v600 = vsub.s32 4294967266, %v595
    %v601 = vadd.s32 %v600, 127
    %v602 = vshll.u32 %v601, 23
    %v603 = vor.u32 4788187, %v602
    %v604 = vand.u32 2147483647, %v603
    %v606 = vcvt.s32.f32 %v599
    %v607 = vmul.f32 %v606, %v604
    %v608 = vxor.u32 %v607, 2147483648
    %v609 = vsel %vm526, %v608, %v607
    %v610 = vsub.s32 4, %v586
    %v611 = vsel %vm526, %v610, %v586
    %v612 = vsel %vm525, %v520, %v609
    %v613 = vsel %vm525, 0, %v611
    %v614 = vcosq.f32.pop %v612
    %v615 = vsinq.f32.pop %v612
    %vm616 = vweird.f32 %v520
    %v617 = vadd.s32 %v613, 3
    %v618 = vand.u32 %v617, 3
    %vm619 = vcmp.lt.s32.totalorder %v618, 2
    %vm620 = vcmp.eq.s32.totalorder %v618, 0
    %v621 = vxor.u32 %v615, 2147483648
    %v622 = vsel %vm620, %v614, %v621
    %vm623 = vcmp.eq.s32.totalorder %v618, 2
    %v624 = vxor.u32 %v614, 2147483648
    %v625 = vsel %vm623, %v624, %v615
    %v626 = vsel %vm619, %v622, %v625
    %v627 = vsel %vm616, nan, %v626
    %v628 = vand.u32 2147483647, %v522
    %vm629 = vcmp.le.f32.partialorder %v628, 0.7853982
    %vm630 = vcmp.lt.s32.totalorder %v522, 0
    %v631 = vand.u32 %v522, 2139095040
    %v632 = vshrl.u32 %v631, 23
    %v633 = vsub.s32 %v632, 127
    %v634 = vand.u32 2147483647, %v522
    %v635 = vand.u32 %v634, 8388607
    %v636 = vor.u32 %v635, 8388608
    %v637 = vsub.s32 0, %v636
    %v638 = vadd.s32 %v633, 1
    %vm639 = vcmp.gt.s32.totalorder %v638, 0
    %v640 = vsel %vm639, %v638, 0
    %v641 = vshrl.u32 %v640, 5
    %v642 = vand.u32 %v640, 31
    %v643 = vsub.s32 32, %v642
    %v644 = vshrl.u32 683565275, %v643
    %v645 = vshll.u32 683565275, %v642
    %v646 = vshrl.u32 2475754826, %v643
    %v647 = vor.u32 %v645, %v646
    %v648 = vshll.u32 2475754826, %v642
    %v649 = vshrl.u32 2131351028, %v643
    %v650 = vor.u32 %v648, %v649
    %v651 = vshll.u32 2131351028, %v642
    %v652 = vshrl.u32 2102212464, %v643
    %v653 = vor.u32 %v651, %v652
    %v654 = vshll.u32 2102212464, %v642
    %v655 = vshrl.u32 920167782, %v643
    %v656 = vor.u32 %v654, %v655
    %v657 = vshll.u32 920167782, %v642
    %v658 = vshrl.u32 1326507024, %v643
    %v659 = vor.u32 %v657, %v658
    %vm660 = vcmp.lt.s32.totalorder %v641, 1
    %vm661 = vcmp.lt.s32.totalorder %v641, 2
    %vm662 = vcmp.lt.s32.totalorder %v641, 3
    %vm663 = vcmp.lt.s32.totalorder %v641, 4
    %v664 = vsel %vm660, %v644, %v647
    %v665 = vsel %vm663, %v653, 2102212464
    %v666 = vsel %vm662, %v650, %v665
    %v667 = vsel %vm661, %v664, %v666
    %v668 = vsel %vm660, %v647, %v650
    %v669 = vsel %vm663, %v656, 920167782
    %v670 = vsel %vm662, %v653, %v669
    %v671 = vsel %vm661, %v668, %v670
    %v672 = vsel %vm660, %v650, %v653
    %v673 = vsel %vm663, %v659, 1326507024
    %v674 = vsel %vm662, %v656, %v673
    %v675 = vsel %vm661, %v672, %v674
    %v676 = vshll.u32 %v636, 8
    %v677 = vmul.u32.u64.compose %v676, %v675
    %v678 = vextract.low.u32 %v677
    %v679 = vextract.high.u32 %v677
    %v680 = vmul.u32.u64.compose %v676, %v671
    %v681 = vextract.low.u32 %v680
    %v682 = vextract.high.u32 %v680
    %v683 = vmul.u32 %v676, %v667
    %v684 = vadd.s32 %v679, %v681
    %vm685 = vc.u32 %v679, %v681
    %v686 = vadd.s32 %v682, 1
    %v687 = vsel %vm685, %v686, %v682
    %v688 = vadd.s32 %v683, %v687
    %v689 = vadd.s32 %v688, 536870912
    %v690 = vshrl.u32 %v689, 30
    %v691 = vshll.u32 %v690, 30
    %v692 = vsub.s32 %v688, %v691
    %vm693 = vcmp.lt.s32.totalorder %v692, 0
    %v694 = vsub.s32 0, %v692
    %v695 = vsel %vm693, %v694, %v692
    %v696 = vclz %v695
    %v697 = vsub.s32 %v696, 2
    %vm698 = vcmp.gt.s32.totalorder 0, %v697
    %v699 = vsel %vm698, 0, %v697
    %v700 = vsub.s32 32, %v699
    %v701 = vshll.u32 %v692, %v699
    %v702 = vshrl.u32 %v684, %v700
    %v703 = vor.u32 %v701, %v702
    %v704 = vsub.s32 4294967266, %v699
    %v705 = vadd.s32 %v704, 127
    %v706 = vshll.u32 %v705, 23
    %v707 = vor.u32 4788187, %v706
    %v708 = vand.u32 2147483647, %v707
    %v710 = vcvt.s32.f32 %v703
    %v711 = vmul.f32 %v710, %v708
    %v712 = vxor.u32 %v711, 2147483648
    %v713 = vsel %vm630, %v712, %v711
    %v714 = vsub.s32 4, %v690
    %v715 = vsel %vm630, %v714, %v690
    %v716 = vsel %vm629, %v522, %v713
    %v717 = vsel %vm629, 0, %v715
    %v718 = vcosq.f32.pop %v716
    %v719 = vsinq.f32.pop %v716
    %vm720 = vweird.f32 %v522
    %v721 = vadd.s32 %v717, 3
    %v722 = vand.u32 %v721, 3
    %vm723 = vcmp.lt.s32.totalorder %v722, 2
    %vm724 = vcmp.eq.s32.totalorder %v722, 0
    %v725 = vxor.u32 %v719, 2147483648
    %v726 = vsel %vm724, %v718, %v725
    %vm727 = vcmp.eq.s32.totalorder %v722, 2
    %v728 = vxor.u32 %v718, 2147483648
    %v729 = vsel %vm727, %v728, %v719
    %v730 = vsel %vm723, %v726, %v729
    %v731 = vsel %vm720, nan, %v730
    %v732 = vand.u32 2147483647, %v521
    %vm733 = vcmp.le.f32.partialorder %v732, 0.7853982
    %vm734 = vcmp.lt.s32.totalorder %v521, 0
    %v735 = vand.u32 %v521, 2139095040
    %v736 = vshrl.u32 %v735, 23
    %v737 = vsub.s32 %v736, 127
    %v738 = vand.u32 2147483647, %v521
    %v739 = vand.u32 %v738, 8388607
    %v740 = vor.u32 %v739, 8388608
    %v741 = vsub.s32 0, %v740
    %v742 = vadd.s32 %v737, 1
    %vm743 = vcmp.gt.s32.totalorder %v742, 0
    %v744 = vsel %vm743, %v742, 0
    %v745 = vshrl.u32 %v744, 5
    %v746 = vand.u32 %v744, 31
    %v747 = vsub.s32 32, %v746
    %v748 = vshrl.u32 683565275, %v747
    %v749 = vshll.u32 683565275, %v746
    %v750 = vshrl.u32 2475754826, %v747
    %v751 = vor.u32 %v749, %v750
    %v752 = vshll.u32 2475754826, %v746
    %v753 = vshrl.u32 2131351028, %v747
    %v754 = vor.u32 %v752, %v753
    %v755 = vshll.u32 2131351028, %v746
    %v756 = vshrl.u32 2102212464, %v747
    %v757 = vor.u32 %v755, %v756
    %v758 = vshll.u32 2102212464, %v746
    %v759 = vshrl.u32 920167782, %v747
    %v760 = vor.u32 %v758, %v759
    %v761 = vshll.u32 920167782, %v746
    %v762 = vshrl.u32 1326507024, %v747
    %v763 = vor.u32 %v761, %v762
    %vm764 = vcmp.lt.s32.totalorder %v745, 1
    %vm765 = vcmp.lt.s32.totalorder %v745, 2
    %vm766 = vcmp.lt.s32.totalorder %v745, 3
    %vm767 = vcmp.lt.s32.totalorder %v745, 4
    %v768 = vsel %vm764, %v748, %v751
    %v769 = vsel %vm767, %v757, 2102212464
    %v770 = vsel %vm766, %v754, %v769
    %v771 = vsel %vm765, %v768, %v770
    %v772 = vsel %vm764, %v751, %v754
    %v773 = vsel %vm767, %v760, 920167782
    %v774 = vsel %vm766, %v757, %v773
    %v775 = vsel %vm765, %v772, %v774
    %v776 = vsel %vm764, %v754, %v757
    %v777 = vsel %vm767, %v763, 1326507024
    %v778 = vsel %vm766, %v760, %v777
    %v779 = vsel %vm765, %v776, %v778
    %v780 = vshll.u32 %v740, 8
    %v781 = vmul.u32.u64.compose %v780, %v779
    %v782 = vextract.low.u32 %v781
    %v783 = vextract.high.u32 %v781
    %v784 = vmul.u32.u64.compose %v780, %v775
    %v785 = vextract.low.u32 %v784
    %v786 = vextract.high.u32 %v784
    %v787 = vmul.u32 %v780, %v771
    %v788 = vadd.s32 %v783, %v785
    %vm789 = vc.u32 %v783, %v785
    %v790 = vadd.s32 %v786, 1
    %v791 = vsel %vm789, %v790, %v786
    %v792 = vadd.s32 %v787, %v791
    %v793 = vadd.s32 %v792, 536870912
    %v794 = vshrl.u32 %v793, 30
    %v795 = vshll.u32 %v794, 30
    %v796 = vsub.s32 %v792, %v795
    %vm797 = vcmp.lt.s32.totalorder %v796, 0
    %v798 = vsub.s32 0, %v796
    %v799 = vsel %vm797, %v798, %v796
    %v800 = vclz %v799
    %v801 = vsub.s32 %v800, 2
    %vm802 = vcmp.gt.s32.totalorder 0, %v801
    %v803 = vsel %vm802, 0, %v801
    %v804 = vsub.s32 32, %v803
    %v805 = vshll.u32 %v796, %v803
    %v806 = vshrl.u32 %v788, %v804
    %v807 = vor.u32 %v805, %v806
    %v808 = vsub.s32 4294967266, %v803
    %v809 = vadd.s32 %v808, 127
    %v810 = vshll.u32 %v809, 23
    %v811 = vor.u32 4788187, %v810
    %v812 = vand.u32 2147483647, %v811
    %v814 = vcvt.s32.f32 %v807
    %v815 = vmul.f32 %v814, %v812
    %v816 = vxor.u32 %v815, 2147483648
    %v817 = vsel %vm734, %v816, %v815
    %v818 = vsub.s32 4, %v794
    %v819 = vsel %vm734, %v818, %v794
    %v820 = vsel %vm733, %v521, %v817
    %v821 = vsel %vm733, 0, %v819
    %v822 = vcosq.f32.pop %v820
    %v823 = vsinq.f32.pop %v820
    %vm824 = vweird.f32 %v521
    %v825 = vadd.s32 %v821, 3
    %v826 = vand.u32 %v825, 3
    %vm827 = vcmp.lt.s32.totalorder %v826, 2
    %vm828 = vcmp.eq.s32.totalorder %v826, 0
    %v829 = vxor.u32 %v823, 2147483648
    %v830 = vsel %vm828, %v822, %v829
    %vm831 = vcmp.eq.s32.totalorder %v826, 2
    %v832 = vxor.u32 %v822, 2147483648
    %v833 = vsel %vm831, %v832, %v823
    %v834 = vsel %vm827, %v830, %v833
    %v835 = vsel %vm824, nan, %v834
    %v836 = vand.u32 2147483647, %v523
    %vm837 = vcmp.le.f32.partialorder %v836, 0.7853982
    %vm838 = vcmp.lt.s32.totalorder %v523, 0
    %v839 = vand.u32 %v523, 2139095040
    %v840 = vshrl.u32 %v839, 23
    %v841 = vsub.s32 %v840, 127
    %v842 = vand.u32 2147483647, %v523
    %v843 = vand.u32 %v842, 8388607
    %v844 = vor.u32 %v843, 8388608
    %v845 = vsub.s32 0, %v844
    %v846 = vadd.s32 %v841, 1
    %vm847 = vcmp.gt.s32.totalorder %v846, 0
    %v848 = vsel %vm847, %v846, 0
    %v849 = vshrl.u32 %v848, 5
    %v850 = vand.u32 %v848, 31
    %v851 = vsub.s32 32, %v850
    %v852 = vshrl.u32 683565275, %v851
    %v853 = vshll.u32 683565275, %v850
    %v854 = vshrl.u32 2475754826, %v851
    %v855 = vor.u32 %v853, %v854
    %v856 = vshll.u32 2475754826, %v850
    %v857 = vshrl.u32 2131351028, %v851
    %v858 = vor.u32 %v856, %v857
    %v859 = vshll.u32 2131351028, %v850
    %v860 = vshrl.u32 2102212464, %v851
    %v861 = vor.u32 %v859, %v860
    %v862 = vshll.u32 2102212464, %v850
    %v863 = vshrl.u32 920167782, %v851
    %v864 = vor.u32 %v862, %v863
    %v865 = vshll.u32 920167782, %v850
    %v866 = vshrl.u32 1326507024, %v851
    %v867 = vor.u32 %v865, %v866
    %vm868 = vcmp.lt.s32.totalorder %v849, 1
    %vm869 = vcmp.lt.s32.totalorder %v849, 2
    %vm870 = vcmp.lt.s32.totalorder %v849, 3
    %vm871 = vcmp.lt.s32.totalorder %v849, 4
    %v872 = vsel %vm868, %v852, %v855
    %v873 = vsel %vm871, %v861, 2102212464
    %v874 = vsel %vm870, %v858, %v873
    %v875 = vsel %vm869, %v872, %v874
    %v876 = vsel %vm868, %v855, %v858
    %v877 = vsel %vm871, %v864, 920167782
    %v878 = vsel %vm870, %v861, %v877
    %v879 = vsel %vm869, %v876, %v878
    %v880 = vsel %vm868, %v858, %v861
    %v881 = vsel %vm871, %v867, 1326507024
    %v882 = vsel %vm870, %v864, %v881
    %v883 = vsel %vm869, %v880, %v882
    %v884 = vshll.u32 %v844, 8
    %v885 = vmul.u32.u64.compose %v884, %v883
    %v886 = vextract.low.u32 %v885
    %v887 = vextract.high.u32 %v885
    %v888 = vmul.u32.u64.compose %v884, %v879
    %v889 = vextract.low.u32 %v888
    %v890 = vextract.high.u32 %v888
    %v891 = vmul.u32 %v884, %v875
    %v892 = vadd.s32 %v887, %v889
    %vm893 = vc.u32 %v887, %v889
    %v894 = vadd.s32 %v890, 1
    %v895 = vsel %vm893, %v894, %v890
    %v896 = vadd.s32 %v891, %v895
    %v897 = vadd.s32 %v896, 536870912
    %v898 = vshrl.u32 %v897, 30
    %v899 = vshll.u32 %v898, 30
    %v900 = vsub.s32 %v896, %v899
    %vm901 = vcmp.lt.s32.totalorder %v900, 0
    %v902 = vsub.s32 0, %v900
    %v903 = vsel %vm901, %v902, %v900
    %v904 = vclz %v903
    %v905 = vsub.s32 %v904, 2
    %vm906 = vcmp.gt.s32.totalorder 0, %v905
    %v907 = vsel %vm906, 0, %v905
    %v908 = vsub.s32 32, %v907
    %v909 = vshll.u32 %v900, %v907
    %v910 = vshrl.u32 %v892, %v908
    %v911 = vor.u32 %v909, %v910
    %v912 = vsub.s32 4294967266, %v907
    %v913 = vadd.s32 %v912, 127
    %v914 = vshll.u32 %v913, 23
    %v915 = vor.u32 4788187, %v914
    %v916 = vand.u32 2147483647, %v915
    %v918 = vcvt.s32.f32 %v911
    %v919 = vmul.f32 %v918, %v916
    %v920 = vxor.u32 %v919, 2147483648
    %v921 = vsel %vm838, %v920, %v919
    %v922 = vsub.s32 4, %v898
    %v923 = vsel %vm838, %v922, %v898
    %v924 = vsel %vm837, %v523, %v921
    %v925 = vsel %vm837, 0, %v923
    %v926 = vcosq.f32.pop %v924
    %v927 = vsinq.f32.pop %v924
    %vm928 = vweird.f32 %v523
    %v929 = vadd.s32 %v925, 3
    %v930 = vand.u32 %v929, 3
    %vm931 = vcmp.lt.s32.totalorder %v930, 2
    %vm932 = vcmp.eq.s32.totalorder %v930, 0
    %v933 = vxor.u32 %v927, 2147483648
    %v934 = vsel %vm932, %v926, %v933
    %vm935 = vcmp.eq.s32.totalorder %v930, 2
    %v936 = vxor.u32 %v926, 2147483648
    %v937 = vsel %vm935, %v936, %v927
    %v938 = vsel %vm931, %v934, %v937
    %v939 = vsel %vm928, nan, %v938
    %v940 = vand.u32 2147483647, %v520
    %vm941 = vcmp.le.f32.partialorder %v940, 0.7853982
    %vm942 = vcmp.lt.s32.totalorder %v520, 0
    %v943 = vand.u32 %v520, 2139095040
    %v944 = vshrl.u32 %v943, 23
    %v945 = vsub.s32 %v944, 127
    %v946 = vand.u32 2147483647, %v520
    %v947 = vand.u32 %v946, 8388607
    %v948 = vor.u32 %v947, 8388608
    %v949 = vsub.s32 0, %v948
    %v950 = vadd.s32 %v945, 1
    %vm951 = vcmp.gt.s32.totalorder %v950, 0
    %v952 = vsel %vm951, %v950, 0
    %v953 = vshrl.u32 %v952, 5
    %v954 = vand.u32 %v952, 31
    %v955 = vsub.s32 32, %v954
    %v956 = vshrl.u32 683565275, %v955
    %v957 = vshll.u32 683565275, %v954
    %v958 = vshrl.u32 2475754826, %v955
    %v959 = vor.u32 %v957, %v958
    %v960 = vshll.u32 2475754826, %v954
    %v961 = vshrl.u32 2131351028, %v955
    %v962 = vor.u32 %v960, %v961
    %v963 = vshll.u32 2131351028, %v954
    %v964 = vshrl.u32 2102212464, %v955
    %v965 = vor.u32 %v963, %v964
    %v966 = vshll.u32 2102212464, %v954
    %v967 = vshrl.u32 920167782, %v955
    %v968 = vor.u32 %v966, %v967
    %v969 = vshll.u32 920167782, %v954
    %v970 = vshrl.u32 1326507024, %v955
    %v971 = vor.u32 %v969, %v970
    %vm972 = vcmp.lt.s32.totalorder %v953, 1
    %vm973 = vcmp.lt.s32.totalorder %v953, 2
    %vm974 = vcmp.lt.s32.totalorder %v953, 3
    %vm975 = vcmp.lt.s32.totalorder %v953, 4
    %v976 = vsel %vm972, %v956, %v959
    %v977 = vsel %vm975, %v965, 2102212464
    %v978 = vsel %vm974, %v962, %v977
    %v979 = vsel %vm973, %v976, %v978
    %v980 = vsel %vm972, %v959, %v962
    %v981 = vsel %vm975, %v968, 920167782
    %v982 = vsel %vm974, %v965, %v981
    %v983 = vsel %vm973, %v980, %v982
    %v984 = vsel %vm972, %v962, %v965
    %v985 = vsel %vm975, %v971, 1326507024
    %v986 = vsel %vm974, %v968, %v985
    %v987 = vsel %vm973, %v984, %v986
    %v988 = vshll.u32 %v948, 8
    %v989 = vmul.u32.u64.compose %v988, %v987
    %v990 = vextract.low.u32 %v989
    %v991 = vextract.high.u32 %v989
    %v992 = vmul.u32.u64.compose %v988, %v983
    %v993 = vextract.low.u32 %v992
    %v994 = vextract.high.u32 %v992
    %v995 = vmul.u32 %v988, %v979
    %v996 = vadd.s32 %v991, %v993
    %vm997 = vc.u32 %v991, %v993
    %v998 = vadd.s32 %v994, 1
    %v999 = vsel %vm997, %v998, %v994
    %v1000 = vadd.s32 %v995, %v999
    %v1001 = vadd.s32 %v1000, 536870912
    %v1002 = vshrl.u32 %v1001, 30
    %v1003 = vshll.u32 %v1002, 30
    %v1004 = vsub.s32 %v1000, %v1003
    %vm1005 = vcmp.lt.s32.totalorder %v1004, 0
    %v1006 = vsub.s32 0, %v1004
    %v1007 = vsel %vm1005, %v1006, %v1004
    %v1008 = vclz %v1007
    %v1009 = vsub.s32 %v1008, 2
    %vm1010 = vcmp.gt.s32.totalorder 0, %v1009
    %v1011 = vsel %vm1010, 0, %v1009
    %v1012 = vsub.s32 32, %v1011
    %v1013 = vshll.u32 %v1004, %v1011
    %v1014 = vshrl.u32 %v996, %v1012
    %v1015 = vor.u32 %v1013, %v1014
    %v1016 = vsub.s32 4294967266, %v1011
    %v1017 = vadd.s32 %v1016, 127
    %v1018 = vshll.u32 %v1017, 23
    %v1019 = vor.u32 4788187, %v1018
    %v1020 = vand.u32 2147483647, %v1019
    %v1022 = vcvt.s32.f32 %v1015
    %v1023 = vmul.f32 %v1022, %v1020
    %v1024 = vxor.u32 %v1023, 2147483648
    %v1025 = vsel %vm942, %v1024, %v1023
    %v1026 = vsub.s32 4, %v1002
    %v1027 = vsel %vm942, %v1026, %v1002
    %v1028 = vsel %vm941, %v520, %v1025
    %v1029 = vsel %vm941, 0, %v1027
    %v1030 = vcosq.f32.pop %v1028
    %v1031 = vsinq.f32.pop %v1028
    %vm1032 = vweird.f32 %v520
    %v1033 = vand.u32 %v1029, 3
    %vm1034 = vcmp.lt.s32.totalorder %v1033, 2
    %vm1035 = vcmp.eq.s32.totalorder %v1033, 0
    %v1036 = vxor.u32 %v1031, 2147483648
    %v1037 = vsel %vm1035, %v1030, %v1036
    %vm1038 = vcmp.eq.s32.totalorder %v1033, 2
    %v1039 = vxor.u32 %v1030, 2147483648
    %v1040 = vsel %vm1038, %v1039, %v1031
    %v1041 = vsel %vm1034, %v1037, %v1040
    %v1042 = vsel %vm1032, nan, %v1041
    %v1043 = vand.u32 2147483647, %v522
    %vm1044 = vcmp.le.f32.partialorder %v1043, 0.7853982
    %vm1045 = vcmp.lt.s32.totalorder %v522, 0
    %v1046 = vand.u32 %v522, 2139095040
    %v1047 = vshrl.u32 %v1046, 23
    %v1048 = vsub.s32 %v1047, 127
    %v1049 = vand.u32 2147483647, %v522
    %v1050 = vand.u32 %v1049, 8388607
    %v1051 = vor.u32 %v1050, 8388608
    %v1052 = vsub.s32 0, %v1051
    %v1053 = vadd.s32 %v1048, 1
    %vm1054 = vcmp.gt.s32.totalorder %v1053, 0
    %v1055 = vsel %vm1054, %v1053, 0
    %v1056 = vshrl.u32 %v1055, 5
    %v1057 = vand.u32 %v1055, 31
    %v1058 = vsub.s32 32, %v1057
    %v1059 = vshrl.u32 683565275, %v1058
    %v1060 = vshll.u32 683565275, %v1057
    %v1061 = vshrl.u32 2475754826, %v1058
    %v1062 = vor.u32 %v1060, %v1061
    %v1063 = vshll.u32 2475754826, %v1057
    %v1064 = vshrl.u32 2131351028, %v1058
    %v1065 = vor.u32 %v1063, %v1064
    %v1066 = vshll.u32 2131351028, %v1057
    %v1067 = vshrl.u32 2102212464, %v1058
    %v1068 = vor.u32 %v1066, %v1067
    %v1069 = vshll.u32 2102212464, %v1057
    %v1070 = vshrl.u32 920167782, %v1058
    %v1071 = vor.u32 %v1069, %v1070
    %v1072 = vshll.u32 920167782, %v1057
    %v1073 = vshrl.u32 1326507024, %v1058
    %v1074 = vor.u32 %v1072, %v1073
    %vm1075 = vcmp.lt.s32.totalorder %v1056, 1
    %vm1076 = vcmp.lt.s32.totalorder %v1056, 2
    %vm1077 = vcmp.lt.s32.totalorder %v1056, 3
    %vm1078 = vcmp.lt.s32.totalorder %v1056, 4
    %v1079 = vsel %vm1075, %v1059, %v1062
    %v1080 = vsel %vm1078, %v1068, 2102212464
    %v1081 = vsel %vm1077, %v1065, %v1080
    %v1082 = vsel %vm1076, %v1079, %v1081
    %v1083 = vsel %vm1075, %v1062, %v1065
    %v1084 = vsel %vm1078, %v1071, 920167782
    %v1085 = vsel %vm1077, %v1068, %v1084
    %v1086 = vsel %vm1076, %v1083, %v1085
    %v1087 = vsel %vm1075, %v1065, %v1068
    %v1088 = vsel %vm1078, %v1074, 1326507024
    %v1089 = vsel %vm1077, %v1071, %v1088
    %v1090 = vsel %vm1076, %v1087, %v1089
    %v1091 = vshll.u32 %v1051, 8
    %v1092 = vmul.u32.u64.compose %v1091, %v1090
    %v1093 = vextract.low.u32 %v1092
    %v1094 = vextract.high.u32 %v1092
    %v1095 = vmul.u32.u64.compose %v1091, %v1086
    %v1096 = vextract.low.u32 %v1095
    %v1097 = vextract.high.u32 %v1095
    %v1098 = vmul.u32 %v1091, %v1082
    %v1099 = vadd.s32 %v1094, %v1096
    %vm1100 = vc.u32 %v1094, %v1096
    %v1101 = vadd.s32 %v1097, 1
    %v1102 = vsel %vm1100, %v1101, %v1097
    %v1103 = vadd.s32 %v1098, %v1102
    %v1104 = vadd.s32 %v1103, 536870912
    %v1105 = vshrl.u32 %v1104, 30
    %v1106 = vshll.u32 %v1105, 30
    %v1107 = vsub.s32 %v1103, %v1106
    %vm1108 = vcmp.lt.s32.totalorder %v1107, 0
    %v1109 = vsub.s32 0, %v1107
    %v1110 = vsel %vm1108, %v1109, %v1107
    %v1111 = vclz %v1110
    %v1112 = vsub.s32 %v1111, 2
    %vm1113 = vcmp.gt.s32.totalorder 0, %v1112
    %v1114 = vsel %vm1113, 0, %v1112
    %v1115 = vsub.s32 32, %v1114
    %v1116 = vshll.u32 %v1107, %v1114
    %v1117 = vshrl.u32 %v1099, %v1115
    %v1118 = vor.u32 %v1116, %v1117
    %v1119 = vsub.s32 4294967266, %v1114
    %v1120 = vadd.s32 %v1119, 127
    %v1121 = vshll.u32 %v1120, 23
    %v1122 = vor.u32 4788187, %v1121
    %v1123 = vand.u32 2147483647, %v1122
    %v1125 = vcvt.s32.f32 %v1118
    %v1126 = vmul.f32 %v1125, %v1123
    %v1127 = vxor.u32 %v1126, 2147483648
    %v1128 = vsel %vm1045, %v1127, %v1126
    %v1129 = vsub.s32 4, %v1105
    %v1130 = vsel %vm1045, %v1129, %v1105
    %v1131 = vsel %vm1044, %v522, %v1128
    %v1132 = vsel %vm1044, 0, %v1130
    %v1133 = vcosq.f32.pop %v1131
    %v1134 = vsinq.f32.pop %v1131
    %vm1135 = vweird.f32 %v522
    %v1136 = vand.u32 %v1132, 3
    %vm1137 = vcmp.lt.s32.totalorder %v1136, 2
    %vm1138 = vcmp.eq.s32.totalorder %v1136, 0
    %v1139 = vxor.u32 %v1134, 2147483648
    %v1140 = vsel %vm1138, %v1133, %v1139
    %vm1141 = vcmp.eq.s32.totalorder %v1136, 2
    %v1142 = vxor.u32 %v1133, 2147483648
    %v1143 = vsel %vm1141, %v1142, %v1134
    %v1144 = vsel %vm1137, %v1140, %v1143
    %v1145 = vsel %vm1135, nan, %v1144
    %v1146 = vand.u32 2147483647, %v521
    %vm1147 = vcmp.le.f32.partialorder %v1146, 0.7853982
    %vm1148 = vcmp.lt.s32.totalorder %v521, 0
    %v1149 = vand.u32 %v521, 2139095040
    %v1150 = vshrl.u32 %v1149, 23
    %v1151 = vsub.s32 %v1150, 127
    %v1152 = vand.u32 2147483647, %v521
    %v1153 = vand.u32 %v1152, 8388607
    %v1154 = vor.u32 %v1153, 8388608
    %v1155 = vsub.s32 0, %v1154
    %v1156 = vadd.s32 %v1151, 1
    %vm1157 = vcmp.gt.s32.totalorder %v1156, 0
    %v1158 = vsel %vm1157, %v1156, 0
    %v1159 = vshrl.u32 %v1158, 5
    %v1160 = vand.u32 %v1158, 31
    %v1161 = vsub.s32 32, %v1160
    %v1162 = vshrl.u32 683565275, %v1161
    %v1163 = vshll.u32 683565275, %v1160
    %v1164 = vshrl.u32 2475754826, %v1161
    %v1165 = vor.u32 %v1163, %v1164
    %v1166 = vshll.u32 2475754826, %v1160
    %v1167 = vshrl.u32 2131351028, %v1161
    %v1168 = vor.u32 %v1166, %v1167
    %v1169 = vshll.u32 2131351028, %v1160
    %v1170 = vshrl.u32 2102212464, %v1161
    %v1171 = vor.u32 %v1169, %v1170
    %v1172 = vshll.u32 2102212464, %v1160
    %v1173 = vshrl.u32 920167782, %v1161
    %v1174 = vor.u32 %v1172, %v1173
    %v1175 = vshll.u32 920167782, %v1160
    %v1176 = vshrl.u32 1326507024, %v1161
    %v1177 = vor.u32 %v1175, %v1176
    %vm1178 = vcmp.lt.s32.totalorder %v1159, 1
    %vm1179 = vcmp.lt.s32.totalorder %v1159, 2
    %vm1180 = vcmp.lt.s32.totalorder %v1159, 3
    %vm1181 = vcmp.lt.s32.totalorder %v1159, 4
    %v1182 = vsel %vm1178, %v1162, %v1165
    %v1183 = vsel %vm1181, %v1171, 2102212464
    %v1184 = vsel %vm1180, %v1168, %v1183
    %v1185 = vsel %vm1179, %v1182, %v1184
    %v1186 = vsel %vm1178, %v1165, %v1168
    %v1187 = vsel %vm1181, %v1174, 920167782
    %v1188 = vsel %vm1180, %v1171, %v1187
    %v1189 = vsel %vm1179, %v1186, %v1188
    %v1190 = vsel %vm1178, %v1168, %v1171
    %v1191 = vsel %vm1181, %v1177, 1326507024
    %v1192 = vsel %vm1180, %v1174, %v1191
    %v1193 = vsel %vm1179, %v1190, %v1192
    %v1194 = vshll.u32 %v1154, 8
    %v1195 = vmul.u32.u64.compose %v1194, %v1193
    %v1196 = vextract.low.u32 %v1195
    %v1197 = vextract.high.u32 %v1195
    %v1198 = vmul.u32.u64.compose %v1194, %v1189
    %v1199 = vextract.low.u32 %v1198
    %v1200 = vextract.high.u32 %v1198
    %v1201 = vmul.u32 %v1194, %v1185
    %v1202 = vadd.s32 %v1197, %v1199
    %vm1203 = vc.u32 %v1197, %v1199
    %v1204 = vadd.s32 %v1200, 1
    %v1205 = vsel %vm1203, %v1204, %v1200
    %v1206 = vadd.s32 %v1201, %v1205
    %v1207 = vadd.s32 %v1206, 536870912
    %v1208 = vshrl.u32 %v1207, 30
    %v1209 = vshll.u32 %v1208, 30
    %v1210 = vsub.s32 %v1206, %v1209
    %vm1211 = vcmp.lt.s32.totalorder %v1210, 0
    %v1212 = vsub.s32 0, %v1210
    %v1213 = vsel %vm1211, %v1212, %v1210
    %v1214 = vclz %v1213
    %v1215 = vsub.s32 %v1214, 2
    %vm1216 = vcmp.gt.s32.totalorder 0, %v1215
    %v1217 = vsel %vm1216, 0, %v1215
    %v1218 = vsub.s32 32, %v1217
    %v1219 = vshll.u32 %v1210, %v1217
    %v1220 = vshrl.u32 %v1202, %v1218
    %v1221 = vor.u32 %v1219, %v1220
    %v1222 = vsub.s32 4294967266, %v1217
    %v1223 = vadd.s32 %v1222, 127
    %v1224 = vshll.u32 %v1223, 23
    %v1225 = vor.u32 4788187, %v1224
    %v1226 = vand.u32 2147483647, %v1225
    %v1228 = vcvt.s32.f32 %v1221
    %v1229 = vmul.f32 %v1228, %v1226
    %v1230 = vxor.u32 %v1229, 2147483648
    %v1231 = vsel %vm1148, %v1230, %v1229
    %v1232 = vsub.s32 4, %v1208
    %v1233 = vsel %vm1148, %v1232, %v1208
    %v1234 = vsel %vm1147, %v521, %v1231
    %v1235 = vsel %vm1147, 0, %v1233
    %v1236 = vcosq.f32.pop %v1234
    %v1237 = vsinq.f32.pop %v1234
    %vm1238 = vweird.f32 %v521
    %v1239 = vand.u32 %v1235, 3
    %vm1240 = vcmp.lt.s32.totalorder %v1239, 2
    %vm1241 = vcmp.eq.s32.totalorder %v1239, 0
    %v1242 = vxor.u32 %v1237, 2147483648
    %v1243 = vsel %vm1241, %v1236, %v1242
    %vm1244 = vcmp.eq.s32.totalorder %v1239, 2
    %v1245 = vxor.u32 %v1236, 2147483648
    %v1246 = vsel %vm1244, %v1245, %v1237
    %v1247 = vsel %vm1240, %v1243, %v1246
    %v1248 = vsel %vm1238, nan, %v1247
    %v1249 = vand.u32 2147483647, %v523
    %vm1250 = vcmp.le.f32.partialorder %v1249, 0.7853982
    %vm1251 = vcmp.lt.s32.totalorder %v523, 0
    %v1252 = vand.u32 %v523, 2139095040
    %v1253 = vshrl.u32 %v1252, 23
    %v1254 = vsub.s32 %v1253, 127
    %v1255 = vand.u32 2147483647, %v523
    %v1256 = vand.u32 %v1255, 8388607
    %v1257 = vor.u32 %v1256, 8388608
    %v1258 = vsub.s32 0, %v1257
    %v1259 = vadd.s32 %v1254, 1
    %vm1260 = vcmp.gt.s32.totalorder %v1259, 0
    %v1261 = vsel %vm1260, %v1259, 0
    %v1262 = vshrl.u32 %v1261, 5
    %v1263 = vand.u32 %v1261, 31
    %v1264 = vsub.s32 32, %v1263
    %v1265 = vshrl.u32 683565275, %v1264
    %v1266 = vshll.u32 683565275, %v1263
    %v1267 = vshrl.u32 2475754826, %v1264
    %v1268 = vor.u32 %v1266, %v1267
    %v1269 = vshll.u32 2475754826, %v1263
    %v1270 = vshrl.u32 2131351028, %v1264
    %v1271 = vor.u32 %v1269, %v1270
    %v1272 = vshll.u32 2131351028, %v1263
    %v1273 = vshrl.u32 2102212464, %v1264
    %v1274 = vor.u32 %v1272, %v1273
    %v1275 = vshll.u32 2102212464, %v1263
    %v1276 = vshrl.u32 920167782, %v1264
    %v1277 = vor.u32 %v1275, %v1276
    %v1278 = vshll.u32 920167782, %v1263
    %v1279 = vshrl.u32 1326507024, %v1264
    %v1280 = vor.u32 %v1278, %v1279
    %vm1281 = vcmp.lt.s32.totalorder %v1262, 1
    %vm1282 = vcmp.lt.s32.totalorder %v1262, 2
    %vm1283 = vcmp.lt.s32.totalorder %v1262, 3
    %vm1284 = vcmp.lt.s32.totalorder %v1262, 4
    %v1285 = vsel %vm1281, %v1265, %v1268
    %v1286 = vsel %vm1284, %v1274, 2102212464
    %v1287 = vsel %vm1283, %v1271, %v1286
    %v1288 = vsel %vm1282, %v1285, %v1287
    %v1289 = vsel %vm1281, %v1268, %v1271
    %v1290 = vsel %vm1284, %v1277, 920167782
    %v1291 = vsel %vm1283, %v1274, %v1290
    %v1292 = vsel %vm1282, %v1289, %v1291
    %v1293 = vsel %vm1281, %v1271, %v1274
    %v1294 = vsel %vm1284, %v1280, 1326507024
    %v1295 = vsel %vm1283, %v1277, %v1294
    %v1296 = vsel %vm1282, %v1293, %v1295
    %v1297 = vshll.u32 %v1257, 8
    %v1298 = vmul.u32.u64.compose %v1297, %v1296
    %v1299 = vextract.low.u32 %v1298
    %v1300 = vextract.high.u32 %v1298
    %v1301 = vmul.u32.u64.compose %v1297, %v1292
    %v1302 = vextract.low.u32 %v1301
    %v1303 = vextract.high.u32 %v1301
    %v1304 = vmul.u32 %v1297, %v1288
    %v1305 = vadd.s32 %v1300, %v1302
    %vm1306 = vc.u32 %v1300, %v1302
    %v1307 = vadd.s32 %v1303, 1
    %v1308 = vsel %vm1306, %v1307, %v1303
    %v1309 = vadd.s32 %v1304, %v1308
    %v1310 = vadd.s32 %v1309, 536870912
    %v1311 = vshrl.u32 %v1310, 30
    %v1312 = vshll.u32 %v1311, 30
    %v1313 = vsub.s32 %v1309, %v1312
    %vm1314 = vcmp.lt.s32.totalorder %v1313, 0
    %v1315 = vsub.s32 0, %v1313
    %v1316 = vsel %vm1314, %v1315, %v1313
    %v1317 = vclz %v1316
    %v1318 = vsub.s32 %v1317, 2
    %vm1319 = vcmp.gt.s32.totalorder 0, %v1318
    %v1320 = vsel %vm1319, 0, %v1318
    %v1321 = vsub.s32 32, %v1320
    %v1322 = vshll.u32 %v1313, %v1320
    %v1323 = vshrl.u32 %v1305, %v1321
    %v1324 = vor.u32 %v1322, %v1323
    %v1325 = vsub.s32 4294967266, %v1320
    %v1326 = vadd.s32 %v1325, 127
    %v1327 = vshll.u32 %v1326, 23
    %v1328 = vor.u32 4788187, %v1327
    %v1329 = vand.u32 2147483647, %v1328
    %v1331 = vcvt.s32.f32 %v1324
    %v1332 = vmul.f32 %v1331, %v1329
    %v1333 = vxor.u32 %v1332, 2147483648
    %v1334 = vsel %vm1251, %v1333, %v1332
    %v1335 = vsub.s32 4, %v1311
    %v1336 = vsel %vm1251, %v1335, %v1311
    %v1337 = vsel %vm1250, %v523, %v1334
    %v1338 = vsel %vm1250, 0, %v1336
    %v1339 = vcosq.f32.pop %v1337
    %v1340 = vsinq.f32.pop %v1337
    %vm1341 = vweird.f32 %v523
    %v1342 = vand.u32 %v1338, 3
    %vm1343 = vcmp.lt.s32.totalorder %v1342, 2
    %vm1344 = vcmp.eq.s32.totalorder %v1342, 0
    %v1345 = vxor.u32 %v1340, 2147483648
    %v1346 = vsel %vm1344, %v1339, %v1345
    %vm1347 = vcmp.eq.s32.totalorder %v1342, 2
    %v1348 = vxor.u32 %v1339, 2147483648
    %v1349 = vsel %vm1347, %v1348, %v1340
    %v1350 = vsel %vm1343, %v1346, %v1349
    %v1351 = vsel %vm1341, nan, %v1350
    %v1353 = vlaneseq
    %v1354 = vshrl.u32 %v1353, 7
    %v1355 = vsub.s32 0, %v1354
    %v1356 = vrot.slane %v336, %v1355
    %1358 = vmatprep.subr.mxu0 0.0
    %1359 = vmatpush1.msra.mxu0 %v272
    %1360 = vmatprep.subr.mxu0 0.0
    %1361 = vmatpush1.msra.mxu0 %v273
    %1362 = vmatprep.subr.mxu0 0.0
    %1363 = vmatpush1.msra.mxu0 %v274
    %1364 = vmatprep.subr.mxu0 0.0
    %1365 = vmatpush1.msra.mxu0 %v275
    %1366 = vmatprep.subr.mxu0 0.0
    %1367 = vmatpush1.msra.mxu0 %v276
    %1368 = vmatprep.subr.mxu0 0.0
    %1369 = vmatpush1.msra.mxu0 %v277
    %1370 = vmatprep.subr.mxu0 0.0
    %1371 = vmatpush1.msra.mxu0 %v278
    %1372 = vmatprep.subr.mxu0 0.0
    %1373 = vmatpush1.msra.mxu0 %v279
    %1374 = vmatprep.subr.mxu0 0.0
    %1375 = vmatpush1.msra.mxu0 %v280
    %1376 = vmatprep.subr.mxu0 0.0
    %1377 = vmatpush1.msra.mxu0 %v281
    %1378 = vmatprep.subr.mxu0 0.0
    %1379 = vmatpush1.msra.mxu0 %v282
    %1380 = vmatprep.subr.mxu0 0.0
    %1381 = vmatpush1.msra.mxu0 %v283
    %1382 = vmatprep.subr.mxu0 0.0
    %1383 = vmatpush1.msra.mxu0 %v284
    %1384 = vmatprep.subr.mxu0 0.0
    %1385 = vmatpush1.msra.mxu0 %v285
    %1386 = vmatprep.subr.mxu0 0.0
    %1387 = vmatpush1.msra.mxu0 %v286
    %1388 = vmatprep.subr.mxu0 0.0
    %1389 = vmatpush1.msra.mxu0 %v287
    %1390 = vmatprep.subr.mxu0 0.0
    %1391 = vmatpush1.msra.mxu0 %v288
    %1392 = vmatprep.subr.mxu0 0.0
    %1393 = vmatpush1.msra.mxu0 %v289
    %1394 = vmatprep.subr.mxu0 0.0
    %1395 = vmatpush1.msra.mxu0 %v290
    %1396 = vmatprep.subr.mxu0 0.0
    %1397 = vmatpush1.msra.mxu0 %v291
    %1398 = vmatprep.subr.mxu0 0.0
    %1399 = vmatpush1.msra.mxu0 %v292
    %1400 = vmatprep.subr.mxu0 0.0
    %1401 = vmatpush1.msra.mxu0 %v293
    %1402 = vmatprep.subr.mxu0 0.0
    %1403 = vmatpush1.msra.mxu0 %v294
    %1404 = vmatprep.subr.mxu0 0.0
    %1405 = vmatpush1.msra.mxu0 %v295
    %1406 = vmatprep.subr.mxu0 0.0
    %1407 = vmatpush1.msra.mxu0 %v296
    %1408 = vmatprep.subr.mxu0 0.0
    %1409 = vmatpush1.msra.mxu0 %v297
    %1410 = vmatprep.subr.mxu0 0.0
    %1411 = vmatpush1.msra.mxu0 %v298
    %1412 = vmatprep.subr.mxu0 0.0
    %1413 = vmatpush1.msra.mxu0 %v299
    %1414 = vmatprep.subr.mxu0 0.0
    %1415 = vmatpush1.msra.mxu0 %v300
    %1416 = vmatprep.subr.mxu0 0.0
    %1417 = vmatpush1.msra.mxu0 %v301
    %1418 = vmatprep.subr.mxu0 0.0
    %1419 = vmatpush1.msra.mxu0 %v302
    %1420 = vmatprep.subr.mxu0 0.0
    %1421 = vmatpush1.msra.mxu0 %v303
    %1422 = vmatprep.mubr.f32.mxu0 %v731
    %1423 = vmatmul.mubr.f32.gmra.mrb[0].mxu0 %v627
    %v1424 = vpop.f32.mrb[0].mxu0
    %v1425 = vadd.f32 %v1356, %v1424
    %v1426 = vpop.f32.mrb[0].mxu0
    %1427 = vmatprep.mubr.f32.mxu0 %v939
    %1428 = vmatmul.mubr.f32.gmra.mrb[0].mxu0 %v835
    %v1429 = vpop.f32.mrb[0].mxu0
    %v1430 = vadd.f32 %v1356, %v1429
    %v1431 = vpop.f32.mrb[0].mxu0
    %1432 = vdwg.mxu0
    %1433 = vmatprep.subr.mxu0 0.0
    %1434 = vmatpush1.msra.mxu0 %v304
    %1435 = vmatprep.subr.mxu0 0.0
    %1436 = vmatpush1.msra.mxu0 %v305
    %1437 = vmatprep.subr.mxu0 0.0
    %1438 = vmatpush1.msra.mxu0 %v306
    %1439 = vmatprep.subr.mxu0 0.0
    %1440 = vmatpush1.msra.mxu0 %v307
    %1441 = vmatprep.subr.mxu0 0.0
    %1442 = vmatpush1.msra.mxu0 %v308
    %1443 = vmatprep.subr.mxu0 0.0
    %1444 = vmatpush1.msra.mxu0 %v309
    %1445 = vmatprep.subr.mxu0 0.0
    %1446 = vmatpush1.msra.mxu0 %v310
    %1447 = vmatprep.subr.mxu0 0.0
    %1448 = vmatpush1.msra.mxu0 %v311
    %1449 = vmatprep.subr.mxu0 0.0
    %1450 = vmatpush1.msra.mxu0 %v312
    %1451 = vmatprep.subr.mxu0 0.0
    %1452 = vmatpush1.msra.mxu0 %v313
    %1453 = vmatprep.subr.mxu0 0.0
    %1454 = vmatpush1.msra.mxu0 %v314
    %1455 = vmatprep.subr.mxu0 0.0
    %1456 = vmatpush1.msra.mxu0 %v315
    %1457 = vmatprep.subr.mxu0 0.0
    %1458 = vmatpush1.msra.mxu0 %v316
    %1459 = vmatprep.subr.mxu0 0.0
    %1460 = vmatpush1.msra.mxu0 %v317
    %1461 = vmatprep.subr.mxu0 0.0
    %1462 = vmatpush1.msra.mxu0 %v318
    %1463 = vmatprep.subr.mxu0 0.0
    %1464 = vmatpush1.msra.mxu0 %v319
    %1465 = vmatprep.subr.mxu0 0.0
    %1466 = vmatpush1.msra.mxu0 %v320
    %1467 = vmatprep.subr.mxu0 0.0
    %1468 = vmatpush1.msra.mxu0 %v321
    %1469 = vmatprep.subr.mxu0 0.0
    %1470 = vmatpush1.msra.mxu0 %v322
    %1471 = vmatprep.subr.mxu0 0.0
    %1472 = vmatpush1.msra.mxu0 %v323
    %1473 = vmatprep.subr.mxu0 0.0
    %1474 = vmatpush1.msra.mxu0 %v324
    %1475 = vmatprep.subr.mxu0 0.0
    %1476 = vmatpush1.msra.mxu0 %v325
    %1477 = vmatprep.subr.mxu0 0.0
    %1478 = vmatpush1.msra.mxu0 %v326
    %1479 = vmatprep.subr.mxu0 0.0
    %1480 = vmatpush1.msra.mxu0 %v327
    %1481 = vmatprep.subr.mxu0 0.0
    %1482 = vmatpush1.msra.mxu0 %v328
    %1483 = vmatprep.subr.mxu0 0.0
    %1484 = vmatpush1.msra.mxu0 %v329
    %1485 = vmatprep.subr.mxu0 0.0
    %1486 = vmatpush1.msra.mxu0 %v330
    %1487 = vmatprep.subr.mxu0 0.0
    %1488 = vmatpush1.msra.mxu0 %v331
    %1489 = vmatprep.subr.mxu0 0.0
    %1490 = vmatpush1.msra.mxu0 %v332
    %1491 = vmatprep.subr.mxu0 0.0
    %1492 = vmatpush1.msra.mxu0 %v333
    %1493 = vmatprep.subr.mxu0 0.0
    %1494 = vmatpush1.msra.mxu0 %v334
    %1495 = vmatprep.subr.mxu0 0.0
    %1496 = vmatpush1.msra.mxu0 %v335
    %1497 = vmatprep.mubr.f32.mxu0 %v1145
    %1498 = vmatmul.mubr.f32.gmra.mrb[0].mxu0 %v1042
    %v1499 = vpop.f32.mrb[0].mxu0
    %v1500 = vadd.f32 %v1425, %v1499
    %v1501 = vpop.f32.mrb[0].mxu0
    %1502 = vmatprep.mubr.f32.mxu0 %v1351
    %1503 = vmatmul.mubr.f32.gmra.mrb[0].mxu0 %v1248
    %v1504 = vpop.f32.mrb[0].mxu0
    %v1505 = vadd.f32 %v1430, %v1504
    %v1506 = vpop.f32.mrb[0].mxu0
    %1507 = vdwg.mxu0
    %v1508 = vmax.f32 %v1500, 0.0
    %v1509 = vmax.f32 %v1505, 0.0
    %v1510 = vadd.f32 %v1508, 1e-06
    %v1511 = vadd.f32 %v1509, 1e-06
    %v1512 = vlog2.pop %v1510
    %v1513 = vmul.f32 %v1512, 0.6931472
    %v1514 = vlog2.pop %v1511
    %v1515 = vmul.f32 %v1514, 0.6931472
    %v1516 = vld [vmem:[%s13] sm:$0xf]
    %v1517 = vld [vmem:[%s13 + $0x4] sm:$0xf]
    %v1518 = vld [vmem:[%s13 + $0x8] sm:$0xf]
    %v1519 = vld [vmem:[%s13 + $0xc] sm:$0xf]
    %v1520 = vld [vmem:[%s13 + $0x10] sm:$0xf]
    %v1521 = vld [vmem:[%s13 + $0x14] sm:$0xf]
    %v1522 = vld [vmem:[%s13 + $0x18] sm:$0xf]
    %v1523 = vld [vmem:[%s13 + $0x1c] sm:$0xf]
    %v1524 = vld [vmem:[%s13 + $0x20] sm:$0xf]
    %v1525 = vld [vmem:[%s13 + $0x24] sm:$0xf]
    %v1526 = vld [vmem:[%s13 + $0x28] sm:$0xf]
    %v1527 = vld [vmem:[%s13 + $0x2c] sm:$0xf]
    %v1528 = vld [vmem:[%s13 + $0x30] sm:$0xf]
    %v1529 = vld [vmem:[%s13 + $0x34] sm:$0xf]
    %v1530 = vld [vmem:[%s13 + $0x38] sm:$0xf]
    %v1531 = vld [vmem:[%s13 + $0x3c] sm:$0xf]
    %v1532 = vpack.c.bf16 %v268, %v267
    %v1533 = vld [vmem:[%s14] sm:$0x1]
    %v1535 = vlaneseq
    %v1536 = vshrl.u32 %v1535, 7
    %v1537 = vsub.s32 0, %v1536
    %v1538 = vrot.slane %v1533, %v1537
    %v1556 = vunpack.c.l.b16 %v1516
    %v1557 = vunpack.c.l.b16 %v1517
    %v1558 = vunpack.c.l.b16 %v1518
    %v1559 = vunpack.c.l.b16 %v1519
    %v1560 = vunpack.c.l.b16 %v1520
    %v1561 = vunpack.c.l.b16 %v1521
    %v1562 = vunpack.c.l.b16 %v1522
    %v1563 = vunpack.c.l.b16 %v1523
    %v1564 = vunpack.c.l.b16 %v1524
    %v1565 = vunpack.c.l.b16 %v1525
    %v1566 = vunpack.c.l.b16 %v1526
    %v1567 = vunpack.c.l.b16 %v1527
    %v1568 = vunpack.c.l.b16 %v1528
    %v1569 = vunpack.c.l.b16 %v1529
    %v1570 = vunpack.c.l.b16 %v1530
    %v1571 = vunpack.c.l.b16 %v1531
    %v1572 = vpack.c.b16 %v1557, %v1556
    %v1573 = vpack.c.b16 %v1559, %v1558
    %v1574 = vpack.c.b16 %v1561, %v1560
    %v1575 = vpack.c.b16 %v1563, %v1562
    %v1576 = vpack.c.b16 %v1565, %v1564
    %v1577 = vpack.c.b16 %v1567, %v1566
    %v1578 = vpack.c.b16 %v1569, %v1568
    %v1579 = vpack.c.b16 %v1571, %v1570
    %1588 = vmatprep.subr.bf16.mxu0 0
    %1589 = vmatpush1.bf16.msra.mxu0 %v1572
    %1590 = vmatprep.subr.bf16.mxu0 0
    %1591 = vmatpush1.bf16.msra.mxu0 %v1573
    %1592 = vmatprep.subr.bf16.mxu0 0
    %1593 = vmatpush1.bf16.msra.mxu0 %v1574
    %1594 = vmatprep.subr.bf16.mxu0 0
    %1595 = vmatpush1.bf16.msra.mxu0 %v1575
    %1596 = vmatprep.subr.bf16.mxu0 0
    %1597 = vmatpush1.bf16.msra.mxu0 %v1576
    %1598 = vmatprep.subr.bf16.mxu0 0
    %1599 = vmatpush1.bf16.msra.mxu0 %v1577
    %1600 = vmatprep.subr.bf16.mxu0 0
    %1601 = vmatpush1.bf16.msra.mxu0 %v1578
    %1602 = vmatprep.subr.bf16.mxu0 0
    %1603 = vmatpush1.bf16.msra.mxu0 %v1579
    %1604 = vmatprep.subr.bf16.mxu0 0
    %1605 = vmatpush1.bf16.msra.mxu0 0
    %1606 = vmatprep.subr.bf16.mxu0 0
    %1607 = vmatpush1.bf16.msra.mxu0 0
    %1608 = vmatprep.subr.bf16.mxu0 0
    %1609 = vmatpush1.bf16.msra.mxu0 0
    %1610 = vmatprep.subr.bf16.mxu0 0
    %1611 = vmatpush1.bf16.msra.mxu0 0
    %1612 = vmatprep.subr.bf16.mxu0 0
    %1613 = vmatpush1.bf16.msra.mxu0 0
    %1614 = vmatprep.subr.bf16.mxu0 0
    %1615 = vmatpush1.bf16.msra.mxu0 0
    %1616 = vmatprep.subr.bf16.mxu0 0
    %1617 = vmatpush1.bf16.msra.mxu0 0
    %1618 = vmatprep.subr.bf16.mxu0 0
    %1619 = vmatpush1.bf16.msra.mxu0 0
    %1620 = vmatprep.mubr.bf16.mxu0 0
    %1621 = vmatmul.mubr.bf16.gmra.mrb[0].mxu0 %v1532
    %v1622 = vpop.f32.mrb[0].mxu0
    %v1623 = vadd.f32 %v1538, %v1622
    %v1624 = vpop.f32.mrb[0].mxu0
    %v1625 = vpop.f32.mrb[0].mxu0
    %v1626 = vadd.f32 %v1538, %v1625
    %v1627 = vpop.f32.mrb[0].mxu0
    %1628 = vdwg.mxu0
    %v1629 = vld [vmem:[%s1] sm:$0xff]
    %v1630 = vld [vmem:[%s1 + $0x8] sm:$0xff]
    %v1631 = vld [vmem:[%s15] sm:$0xf]
    %v1632 = vld [vmem:[%s15 + $0x4] sm:$0xf]
    %v1633 = vld [vmem:[%s15 + $0x8] sm:$0xf]
    %v1634 = vld [vmem:[%s15 + $0xc] sm:$0xf]
    %v1635 = vld [vmem:[%s15 + $0x10] sm:$0xf]
    %v1636 = vld [vmem:[%s15 + $0x14] sm:$0xf]
    %v1637 = vld [vmem:[%s15 + $0x18] sm:$0xf]
    %v1638 = vld [vmem:[%s15 + $0x1c] sm:$0xf]
    %v1639 = vld [vmem:[%s15 + $0x20] sm:$0xf]
    %v1640 = vld [vmem:[%s15 + $0x24] sm:$0xf]
    %v1641 = vld [vmem:[%s15 + $0x28] sm:$0xf]
    %v1642 = vld [vmem:[%s15 + $0x2c] sm:$0xf]
    %v1643 = vld [vmem:[%s15 + $0x30] sm:$0xf]
    %v1644 = vld [vmem:[%s15 + $0x34] sm:$0xf]
    %v1645 = vld [vmem:[%s15 + $0x38] sm:$0xf]
    %v1646 = vld [vmem:[%s15 + $0x3c] sm:$0xf]
    %v1647 = vpack.c.bf16 %v1630, %v1629
    %v1648 = vld [vmem:[%s16] sm:$0x1]
    %v1650 = vlaneseq
    %v1651 = vshrl.u32 %v1650, 7
    %v1652 = vsub.s32 0, %v1651
    %v1653 = vrot.slane %v1648, %v1652
    %v1671 = vunpack.c.l.b16 %v1631
    %v1672 = vunpack.c.l.b16 %v1632
    %v1673 = vunpack.c.l.b16 %v1633
    %v1674 = vunpack.c.l.b16 %v1634
    %v1675 = vunpack.c.l.b16 %v1635
    %v1676 = vunpack.c.l.b16 %v1636
    %v1677 = vunpack.c.l.b16 %v1637
    %v1678 = vunpack.c.l.b16 %v1638
    %v1679 = vunpack.c.l.b16 %v1639
    %v1680 = vunpack.c.l.b16 %v1640
    %v1681 = vunpack.c.l.b16 %v1641
    %v1682 = vunpack.c.l.b16 %v1642
    %v1683 = vunpack.c.l.b16 %v1643
    %v1684 = vunpack.c.l.b16 %v1644
    %v1685 = vunpack.c.l.b16 %v1645
    %v1686 = vunpack.c.l.b16 %v1646
    %v1687 = vpack.c.b16 %v1672, %v1671
    %v1688 = vpack.c.b16 %v1674, %v1673
    %v1689 = vpack.c.b16 %v1676, %v1675
    %v1690 = vpack.c.b16 %v1678, %v1677
    %v1691 = vpack.c.b16 %v1680, %v1679
    %v1692 = vpack.c.b16 %v1682, %v1681
    %v1693 = vpack.c.b16 %v1684, %v1683
    %v1694 = vpack.c.b16 %v1686, %v1685
    %1703 = vmatprep.subr.bf16.mxu0 0
    %1704 = vmatpush1.bf16.msra.mxu0 %v1687
    %1705 = vmatprep.subr.bf16.mxu0 0
    %1706 = vmatpush1.bf16.msra.mxu0 %v1688
    %1707 = vmatprep.subr.bf16.mxu0 0
    %1708 = vmatpush1.bf16.msra.mxu0 %v1689
    %1709 = vmatprep.subr.bf16.mxu0 0
    %1710 = vmatpush1.bf16.msra.mxu0 %v1690
    %1711 = vmatprep.subr.bf16.mxu0 0
    %1712 = vmatpush1.bf16.msra.mxu0 %v1691
    %1713 = vmatprep.subr.bf16.mxu0 0
    %1714 = vmatpush1.bf16.msra.mxu0 %v1692
    %1715 = vmatprep.subr.bf16.mxu0 0
    %1716 = vmatpush1.bf16.msra.mxu0 %v1693
    %1717 = vmatprep.subr.bf16.mxu0 0
    %1718 = vmatpush1.bf16.msra.mxu0 %v1694
    %1719 = vmatprep.subr.bf16.mxu0 0
    %1720 = vmatpush1.bf16.msra.mxu0 0
    %1721 = vmatprep.subr.bf16.mxu0 0
    %1722 = vmatpush1.bf16.msra.mxu0 0
    %1723 = vmatprep.subr.bf16.mxu0 0
    %1724 = vmatpush1.bf16.msra.mxu0 0
    %1725 = vmatprep.subr.bf16.mxu0 0
    %1726 = vmatpush1.bf16.msra.mxu0 0
    %1727 = vmatprep.subr.bf16.mxu0 0
    %1728 = vmatpush1.bf16.msra.mxu0 0
    %1729 = vmatprep.subr.bf16.mxu0 0
    %1730 = vmatpush1.bf16.msra.mxu0 0
    %1731 = vmatprep.subr.bf16.mxu0 0
    %1732 = vmatpush1.bf16.msra.mxu0 0
    %1733 = vmatprep.subr.bf16.mxu0 0
    %1734 = vmatpush1.bf16.msra.mxu0 0
    %1735 = vmatprep.mubr.bf16.mxu0 0
    %1736 = vmatmul.mubr.bf16.gmra.mrb[0].mxu0 %v1647
    %v1737 = vpop.f32.mrb[0].mxu0
    %v1738 = vadd.f32 %v1653, %v1737
    %v1739 = vpop.f32.mrb[0].mxu0
    %v1740 = vpop.f32.mrb[0].mxu0
    %v1741 = vadd.f32 %v1653, %v1740
    %v1742 = vpop.f32.mrb[0].mxu0
    %1743 = vdwg.mxu0
    %v1744 = vld [vmem:[%s17] sm:$0xf]
    %v1745 = vld [vmem:[%s17 + $0x4] sm:$0xf]
    %v1746 = vld [vmem:[%s17 + $0x8] sm:$0xf]
    %v1747 = vld [vmem:[%s17 + $0xc] sm:$0xf]
    %v1748 = vld [vmem:[%s17 + $0x10] sm:$0xf]
    %v1749 = vld [vmem:[%s17 + $0x14] sm:$0xf]
    %v1750 = vld [vmem:[%s17 + $0x18] sm:$0xf]
    %v1751 = vld [vmem:[%s17 + $0x1c] sm:$0xf]
    %v1752 = vld [vmem:[%s17 + $0x20] sm:$0xf]
    %v1753 = vld [vmem:[%s17 + $0x24] sm:$0xf]
    %v1754 = vld [vmem:[%s17 + $0x28] sm:$0xf]
    %v1755 = vld [vmem:[%s17 + $0x2c] sm:$0xf]
    %v1756 = vld [vmem:[%s17 + $0x30] sm:$0xf]
    %v1757 = vld [vmem:[%s17 + $0x34] sm:$0xf]
    %v1758 = vld [vmem:[%s17 + $0x38] sm:$0xf]
    %v1759 = vld [vmem:[%s17 + $0x3c] sm:$0xf]
    %v1760 = vld [vmem:[%s18] sm:$0x1]
    %v1761 = vpack.c.bf16 %v1626, %v1623
    %v1762 = vpack.c.bf16 %v1741, %v1738
    %v1779 = vunpack.c.l.b16 %v1744
    %v1780 = vunpack.c.l.b16 %v1745
    %v1781 = vunpack.c.l.b16 %v1746
    %v1782 = vunpack.c.l.b16 %v1747
    %v1783 = vunpack.c.l.b16 %v1748
    %v1784 = vunpack.c.l.b16 %v1749
    %v1785 = vunpack.c.l.b16 %v1750
    %v1786 = vunpack.c.l.b16 %v1751
    %v1787 = vunpack.c.l.b16 %v1752
    %v1788 = vunpack.c.l.b16 %v1753
    %v1789 = vunpack.c.l.b16 %v1754
    %v1790 = vunpack.c.l.b16 %v1755
    %v1791 = vunpack.c.l.b16 %v1756
    %v1792 = vunpack.c.l.b16 %v1757
    %v1793 = vunpack.c.l.b16 %v1758
    %v1794 = vunpack.c.l.b16 %v1759
    %v1795 = vpack.c.b16 %v1780, %v1779
    %v1796 = vpack.c.b16 %v1782, %v1781
    %v1797 = vpack.c.b16 %v1784, %v1783
    %v1798 = vpack.c.b16 %v1786, %v1785
    %v1799 = vpack.c.b16 %v1788, %v1787
    %v1800 = vpack.c.b16 %v1790, %v1789
    %v1801 = vpack.c.b16 %v1792, %v1791
    %v1802 = vpack.c.b16 %v1794, %v1793
    %1811 = vmatprep.subr.bf16.mxu0 0
    %1812 = vmatpush1.bf16.msra.mxu0 %v1795
    %1813 = vmatprep.subr.bf16.mxu0 0
    %1814 = vmatpush1.bf16.msra.mxu0 %v1796
    %1815 = vmatprep.subr.bf16.mxu0 0
    %1816 = vmatpush1.bf16.msra.mxu0 %v1797
    %1817 = vmatprep.subr.bf16.mxu0 0
    %1818 = vmatpush1.bf16.msra.mxu0 %v1798
    %1819 = vmatprep.subr.bf16.mxu0 0
    %1820 = vmatpush1.bf16.msra.mxu0 %v1799
    %1821 = vmatprep.subr.bf16.mxu0 0
    %1822 = vmatpush1.bf16.msra.mxu0 %v1800
    %1823 = vmatprep.subr.bf16.mxu0 0
    %1824 = vmatpush1.bf16.msra.mxu0 %v1801
    %1825 = vmatprep.subr.bf16.mxu0 0
    %1826 = vmatpush1.bf16.msra.mxu0 %v1802
    %1827 = vmatprep.subr.bf16.mxu0 0
    %1828 = vmatpush1.bf16.msra.mxu0 0
    %1829 = vmatprep.subr.bf16.mxu0 0
    %1830 = vmatpush1.bf16.msra.mxu0 0
    %1831 = vmatprep.subr.bf16.mxu0 0
    %1832 = vmatpush1.bf16.msra.mxu0 0
    %1833 = vmatprep.subr.bf16.mxu0 0
    %1834 = vmatpush1.bf16.msra.mxu0 0
    %1835 = vmatprep.subr.bf16.mxu0 0
    %1836 = vmatpush1.bf16.msra.mxu0 0
    %1837 = vmatprep.subr.bf16.mxu0 0
    %1838 = vmatpush1.bf16.msra.mxu0 0
    %1839 = vmatprep.subr.bf16.mxu0 0
    %1840 = vmatpush1.bf16.msra.mxu0 0
    %1841 = vmatprep.subr.bf16.mxu0 0
    %1842 = vmatpush1.bf16.msra.mxu0 0
    %1843 = vmatprep.mubr.bf16.mxu0 0
    %1844 = vmatmul.mubr.bf16.gmra.mrb[0].mxu0 %v1647
    %v1845 = vpop.f32.mrb[0].mxu0
    %v1846 = vadd.f32 0.0, %v1845
    %v1847 = vpop.f32.mrb[0].mxu0
    %v1848 = vpop.f32.mrb[0].mxu0
    %v1849 = vadd.f32 0.0, %v1848
    %v1850 = vpop.f32.mrb[0].mxu0
    %1851 = vdwg.mxu0
    %v1852 = vpack.c.bf16 %v1849, %v1846
    %v1854 = vsel %vm489, %v1761, 0
    %v1857 = vsel %vm489, %v1762, 0
    %1859 = vmatprep.subr.bf16.mxu0 0
    %1860 = vmatpush1.bf16.xpose.msra.mxu0 %v1857
    %1861 = vmatprep.subr.bf16.mxu0 0
    %1862 = vmatpush1.bf16.xpose.msra.mxu0 0
    %1863 = vmatprep.subr.bf16.mxu0 0
    %1864 = vmatpush1.bf16.xpose.msra.mxu0 0
    %1865 = vmatprep.subr.bf16.mxu0 0
    %1866 = vmatpush1.bf16.xpose.msra.mxu0 0
    %1867 = vmatprep.subr.bf16.mxu0 0
    %1868 = vmatpush1.bf16.xpose.msra.mxu0 0
    %1869 = vmatprep.subr.bf16.mxu0 0
    %1870 = vmatpush1.bf16.xpose.msra.mxu0 0
    %1871 = vmatprep.subr.bf16.mxu0 0
    %1872 = vmatpush1.bf16.xpose.msra.mxu0 0
    %1873 = vmatprep.subr.bf16.mxu0 0
    %1874 = vmatpush1.bf16.xpose.msra.mxu0 0
    %1875 = vmatprep.subr.bf16.mxu0 0
    %1876 = vmatpush1.bf16.xpose.msra.mxu0 0
    %1877 = vmatprep.subr.bf16.mxu0 0
    %1878 = vmatpush1.bf16.xpose.msra.mxu0 0
    %1879 = vmatprep.subr.bf16.mxu0 0
    %1880 = vmatpush1.bf16.xpose.msra.mxu0 0
    %1881 = vmatprep.subr.bf16.mxu0 0
    %1882 = vmatpush1.bf16.xpose.msra.mxu0 0
    %1883 = vmatprep.subr.bf16.mxu0 0
    %1884 = vmatpush1.bf16.xpose.msra.mxu0 0
    %1885 = vmatprep.subr.bf16.mxu0 0
    %1886 = vmatpush1.bf16.xpose.msra.mxu0 0
    %1887 = vmatprep.subr.bf16.mxu0 0
    %1888 = vmatpush1.bf16.xpose.msra.mxu0 0
    %1889 = vmatprep.subr.bf16.mxu0 0
    %1890 = vmatpush1.bf16.xpose.msra.mxu0 0
    %1891 = vmatprep.mubr.bf16.mxu0 0
    %1892 = vmatmul.mubr.bf16.gmra.mrb[0].mxu0 %v1854
    %v1893 = vpop.f32.mrb[0].mxu0
    %v1894 = vadd.f32 0.0, %v1893
    %v1895 = vpop.f32.mrb[0].mxu0
    %v1896 = vpop.f32.mrb[0].mxu0
    %v1897 = vadd.f32 0.0, %v1896
    %v1898 = vpop.f32.mrb[0].mxu0
    %1899 = vdwg.mxu0
    %v1900 = vadd.f32 %v1513, %v1894
    %v1901 = vadd.f32 %v1515, %v1897
    %v1902 = vsel %vm486, %v1900, -inf
    %1903 = vmax.xlane.f32.xlu0 %v1902
    %v1904 = vpop.xlane.xlu0 %1903
    %v1905 = vsel %vm486, %v1901, -inf
    %1906 = vmax.xlane.f32.xlu0 %v1905
    %v1907 = vpop.xlane.xlu0 %1906
    %v1908 = vsub.f32 %v1900, %v1904
    %v1909 = vsub.f32 %v1901, %v1907
    %v1910 = vmul.f32 %v1908, 1.442695
    %v1911 = vpow.pop %v1910
    %v1912 = vmul.f32 %v1909, 1.442695
    %v1913 = vpow.pop %v1912
    %v1914 = vsel %vm486, %v1911, 0.0
    %1915 = vadd.xlane.f32.xlu0 %v1914
    %v1916 = vpop.xlane.xlu0 %1915
    %v1917 = vsel %vm486, %v1913, 0.0
    %1918 = vadd.xlane.f32.xlu0 %v1917
    %v1919 = vpop.xlane.xlu0 %1918
    %v1920 = vrcp.pop %v1916
    %v1921 = vrcp.pop %v1919
    %v1922 = vmul.f32 %v1911, %v1920
    %v1923 = vmul.f32 %v1913, %v1921
    %v1924 = vpack.c.bf16 %v1923, %v1922
    %v1926 = vsel %vm486, %v1924, 0
    %1928 = vmatprep.subr.bf16.mxu0 0
    %1929 = vmatpush1.bf16.msra.mxu0 %v1852
    %1930 = vmatprep.subr.bf16.mxu0 0
    %1931 = vmatpush1.bf16.msra.mxu0 0
    %1932 = vmatprep.subr.bf16.mxu0 0
    %1933 = vmatpush1.bf16.msra.mxu0 0
    %1934 = vmatprep.subr.bf16.mxu0 0
    %1935 = vmatpush1.bf16.msra.mxu0 0
    %1936 = vmatprep.subr.bf16.mxu0 0
    %1937 = vmatpush1.bf16.msra.mxu0 0
    %1938 = vmatprep.subr.bf16.mxu0 0
    %1939 = vmatpush1.bf16.msra.mxu0 0
    %1940 = vmatprep.subr.bf16.mxu0 0
    %1941 = vmatpush1.bf16.msra.mxu0 0
    %1942 = vmatprep.subr.bf16.mxu0 0
    %1943 = vmatpush1.bf16.msra.mxu0 0
    %1944 = vmatprep.subr.bf16.mxu0 0
    %1945 = vmatpush1.bf16.msra.mxu0 0
    %1946 = vmatprep.subr.bf16.mxu0 0
    %1947 = vmatpush1.bf16.msra.mxu0 0
    %1948 = vmatprep.subr.bf16.mxu0 0
    %1949 = vmatpush1.bf16.msra.mxu0 0
    %1950 = vmatprep.subr.bf16.mxu0 0
    %1951 = vmatpush1.bf16.msra.mxu0 0
    %1952 = vmatprep.subr.bf16.mxu0 0
    %1953 = vmatpush1.bf16.msra.mxu0 0
    %1954 = vmatprep.subr.bf16.mxu0 0
    %1955 = vmatpush1.bf16.msra.mxu0 0
    %1956 = vmatprep.subr.bf16.mxu0 0
    %1957 = vmatpush1.bf16.msra.mxu0 0
    %1958 = vmatprep.subr.bf16.mxu0 0
    %1959 = vmatpush1.bf16.msra.mxu0 0
    %1960 = vmatprep.mubr.bf16.mxu0 0
    %1961 = vmatmul.mubr.bf16.gmra.mrb[0].mxu0 %v1926
    %v1962 = vpop.f32.mrb[0].mxu0
    %v1963 = vadd.f32 0.0, %v1962
    %v1964 = vpop.f32.mrb[0].mxu0
    %v1965 = vpop.f32.mrb[0].mxu0
    %v1966 = vadd.f32 0.0, %v1965
    %v1967 = vpop.f32.mrb[0].mxu0
    %1968 = vdwg.mxu0
    %1970 = vrot.lane.b32.xlu0 %v1761, 96
    %v1971 = vpop.permute.xlu0 %1970
    %1973 = vrot.lane.b32.xlu0 %v1762, 96
    %v1974 = vpop.permute.xlu0 %1973
    %v1976 = vsel %vm489, %v1971, 0
    %v1979 = vsel %vm489, %v1974, 0
    %1981 = vmatprep.subr.bf16.mxu0 0
    %1982 = vmatpush1.bf16.xpose.msra.mxu0 %v1979
    %1983 = vmatprep.subr.bf16.mxu0 0
    %1984 = vmatpush1.bf16.xpose.msra.mxu0 0
    %1985 = vmatprep.subr.bf16.mxu0 0
    %1986 = vmatpush1.bf16.xpose.msra.mxu0 0
    %1987 = vmatprep.subr.bf16.mxu0 0
    %1988 = vmatpush1.bf16.xpose.msra.mxu0 0
    %1989 = vmatprep.subr.bf16.mxu0 0
    %1990 = vmatpush1.bf16.xpose.msra.mxu0 0
    %1991 = vmatprep.subr.bf16.mxu0 0
    %1992 = vmatpush1.bf16.xpose.msra.mxu0 0
    %1993 = vmatprep.subr.bf16.mxu0 0
    %1994 = vmatpush1.bf16.xpose.msra.mxu0 0
    %1995 = vmatprep.subr.bf16.mxu0 0
    %1996 = vmatpush1.bf16.xpose.msra.mxu0 0
    %1997 = vmatprep.subr.bf16.mxu0 0
    %1998 = vmatpush1.bf16.xpose.msra.mxu0 0
    %1999 = vmatprep.subr.bf16.mxu0 0
    %2000 = vmatpush1.bf16.xpose.msra.mxu0 0
    %2001 = vmatprep.subr.bf16.mxu0 0
    %2002 = vmatpush1.bf16.xpose.msra.mxu0 0
    %2003 = vmatprep.subr.bf16.mxu0 0
    %2004 = vmatpush1.bf16.xpose.msra.mxu0 0
    %2005 = vmatprep.subr.bf16.mxu0 0
    %2006 = vmatpush1.bf16.xpose.msra.mxu0 0
    %2007 = vmatprep.subr.bf16.mxu0 0
    %2008 = vmatpush1.bf16.xpose.msra.mxu0 0
    %2009 = vmatprep.subr.bf16.mxu0 0
    %2010 = vmatpush1.bf16.xpose.msra.mxu0 0
    %2011 = vmatprep.subr.bf16.mxu0 0
    %2012 = vmatpush1.bf16.xpose.msra.mxu0 0
    %2013 = vmatprep.mubr.bf16.mxu0 0
    %2014 = vmatmul.mubr.bf16.gmra.mrb[0].mxu0 %v1976
    %v2015 = vpop.f32.mrb[0].mxu0
    %v2016 = vadd.f32 0.0, %v2015
    %v2017 = vpop.f32.mrb[0].mxu0
    %v2018 = vpop.f32.mrb[0].mxu0
    %v2019 = vadd.f32 0.0, %v2018
    %v2020 = vpop.f32.mrb[0].mxu0
    %2021 = vdwg.mxu0
    %2024 = vrot.lane.b32.xlu0 %v2016, 16
    %v2025 = vpop.permute.xlu0 %2024
    %2026 = vrot.lane.b32.xlu0 %v2019, 16
    %v2027 = vpop.permute.xlu0 %2026
    %v2030 = vadd.f32 %v1513, %v2025
    %v2031 = vadd.f32 %v1515, %v2027
    %vm2032 = vcmask 261248
    %v2033 = vsel %vm2032, %v2030, -inf
    %2034 = vmax.xlane.f32.xlu0 %v2033
    %v2035 = vpop.xlane.xlu0 %2034
    %v2036 = vsel %vm2032, %v2031, -inf
    %2037 = vmax.xlane.f32.xlu0 %v2036
    %v2038 = vpop.xlane.xlu0 %2037
    %v2039 = vsub.f32 %v2030, %v2035
    %v2040 = vsub.f32 %v2031, %v2038
    %v2041 = vmul.f32 %v2039, 1.442695
    %v2042 = vpow.pop %v2041
    %v2043 = vmul.f32 %v2040, 1.442695
    %v2044 = vpow.pop %v2043
    %2047 = vrot.lane.b32.xlu0 %v2042, 112
    %v2048 = vpop.permute.xlu0 %2047
    %2049 = vrot.lane.b32.xlu0 %v2044, 112
    %v2050 = vpop.permute.xlu0 %2049
    %v2053 = vsel %vm486, %v2048, 0.0
    %2054 = vadd.xlane.f32.xlu0 %v2053
    %v2055 = vpop.xlane.xlu0 %2054
    %v2056 = vsel %vm486, %v2050, 0.0
    %2057 = vadd.xlane.f32.xlu0 %v2056
    %v2058 = vpop.xlane.xlu0 %2057
    %v2059 = vrcp.pop %v2055
    %v2060 = vrcp.pop %v2058
    %v2061 = vmul.f32 %v2042, %v2059
    %v2062 = vmul.f32 %v2044, %v2060
    %v2063 = vpack.c.bf16 %v2062, %v2061
    %2065 = vrot.lane.b32.xlu0 %v2063, 112
    %v2066 = vpop.permute.xlu0 %2065
    %2068 = vrot.lane.b32.xlu0 %v1852, 96
    %v2069 = vpop.permute.xlu0 %2068
    %v2072 = vsel %vm486, %v2066, 0
    %2074 = vmatprep.subr.bf16.mxu0 0
    %2075 = vmatpush1.bf16.msra.mxu0 %v2069
    %2076 = vmatprep.subr.bf16.mxu0 0
    %2077 = vmatpush1.bf16.msra.mxu0 0
    %2078 = vmatprep.subr.bf16.mxu0 0
    %2079 = vmatpush1.bf16.msra.mxu0 0
    %2080 = vmatprep.subr.bf16.mxu0 0
    %2081 = vmatpush1.bf16.msra.mxu0 0
    %2082 = vmatprep.subr.bf16.mxu0 0
    %2083 = vmatpush1.bf16.msra.mxu0 0
    %2084 = vmatprep.subr.bf16.mxu0 0
    %2085 = vmatpush1.bf16.msra.mxu0 0
    %2086 = vmatprep.subr.bf16.mxu0 0
    %2087 = vmatpush1.bf16.msra.mxu0 0
    %2088 = vmatprep.subr.bf16.mxu0 0
    %2089 = vmatpush1.bf16.msra.mxu0 0
    %2090 = vmatprep.subr.bf16.mxu0 0
    %2091 = vmatpush1.bf16.msra.mxu0 0
    %2092 = vmatprep.subr.bf16.mxu0 0
    %2093 = vmatpush1.bf16.msra.mxu0 0
    %2094 = vmatprep.subr.bf16.mxu0 0
    %2095 = vmatpush1.bf16.msra.mxu0 0
    %2096 = vmatprep.subr.bf16.mxu0 0
    %2097 = vmatpush1.bf16.msra.mxu0 0
    %2098 = vmatprep.subr.bf16.mxu0 0
    %2099 = vmatpush1.bf16.msra.mxu0 0
    %2100 = vmatprep.subr.bf16.mxu0 0
    %2101 = vmatpush1.bf16.msra.mxu0 0
    %2102 = vmatprep.subr.bf16.mxu0 0
    %2103 = vmatpush1.bf16.msra.mxu0 0
    %2104 = vmatprep.subr.bf16.mxu0 0
    %2105 = vmatpush1.bf16.msra.mxu0 0
    %2106 = vmatprep.mubr.bf16.mxu0 0
    %2107 = vmatmul.mubr.bf16.gmra.mrb[0].mxu0 %v2072
    %v2108 = vpop.f32.mrb[0].mxu0
    %v2109 = vadd.f32 0.0, %v2108
    %v2110 = vpop.f32.mrb[0].mxu0
    %v2111 = vpop.f32.mrb[0].mxu0
    %v2112 = vadd.f32 0.0, %v2111
    %v2113 = vpop.f32.mrb[0].mxu0
    %2114 = vdwg.mxu0
    %2115 = vrot.lane.b32.xlu0 %v1761, 64
    %v2116 = vpop.permute.xlu0 %2115
    %2117 = vrot.lane.b32.xlu0 %v1762, 64
    %v2118 = vpop.permute.xlu0 %2117
    %v2120 = vsel %vm489, %v2116, 0
    %v2123 = vsel %vm489, %v2118, 0
    %2125 = vmatprep.subr.bf16.mxu0 0
    %2126 = vmatpush1.bf16.xpose.msra.mxu0 %v2123
    %2127 = vmatprep.subr.bf16.mxu0 0
    %2128 = vmatpush1.bf16.xpose.msra.mxu0 0
    %2129 = vmatprep.subr.bf16.mxu0 0
    %2130 = vmatpush1.bf16.xpose.msra.mxu0 0
    %2131 = vmatprep.subr.bf16.mxu0 0
    %2132 = vmatpush1.bf16.xpose.msra.mxu0 0
    %2133 = vmatprep.subr.bf16.mxu0 0
    %2134 = vmatpush1.bf16.xpose.msra.mxu0 0
    %2135 = vmatprep.subr.bf16.mxu0 0
    %2136 = vmatpush1.bf16.xpose.msra.mxu0 0
    %2137 = vmatprep.subr.bf16.mxu0 0
    %2138 = vmatpush1.bf16.xpose.msra.mxu0 0
    %2139 = vmatprep.subr.bf16.mxu0 0
    %2140 = vmatpush1.bf16.xpose.msra.mxu0 0
    %2141 = vmatprep.subr.bf16.mxu0 0
    %2142 = vmatpush1.bf16.xpose.msra.mxu0 0
    %2143 = vmatprep.subr.bf16.mxu0 0
    %2144 = vmatpush1.bf16.xpose.msra.mxu0 0
    %2145 = vmatprep.subr.bf16.mxu0 0
    %2146 = vmatpush1.bf16.xpose.msra.mxu0 0
    %2147 = vmatprep.subr.bf16.mxu0 0
    %2148 = vmatpush1.bf16.xpose.msra.mxu0 0
    %2149 = vmatprep.subr.bf16.mxu0 0
    %2150 = vmatpush1.bf16.xpose.msra.mxu0 0
    %2151 = vmatprep.subr.bf16.mxu0 0
    %2152 = vmatpush1.bf16.xpose.msra.mxu0 0
    %2153 = vmatprep.subr.bf16.mxu0 0
    %2154 = vmatpush1.bf16.xpose.msra.mxu0 0
    %2155 = vmatprep.subr.bf16.mxu0 0
    %2156 = vmatpush1.bf16.xpose.msra.mxu0 0
    %2157 = vmatprep.mubr.bf16.mxu0 0
    %2158 = vmatmul.mubr.bf16.gmra.mrb[0].mxu0 %v2120
    %v2159 = vpop.f32.mrb[0].mxu0
    %v2160 = vadd.f32 0.0, %v2159
    %v2161 = vpop.f32.mrb[0].mxu0
    %v2162 = vpop.f32.mrb[0].mxu0
    %v2163 = vadd.f32 0.0, %v2162
    %v2164 = vpop.f32.mrb[0].mxu0
    %2165 = vdwg.mxu0
    %2168 = vrot.lane.b32.xlu0 %v2160, 32
    %v2169 = vpop.permute.xlu0 %2168
    %2170 = vrot.lane.b32.xlu0 %v2163, 32
    %v2171 = vpop.permute.xlu0 %2170
    %v2174 = vadd.f32 %v1513, %v2169
    %v2175 = vadd.f32 %v1515, %v2171
    %vm2176 = vcmask 392448
    %v2177 = vsel %vm2176, %v2174, -inf
    %2178 = vmax.xlane.f32.xlu0 %v2177
    %v2179 = vpop.xlane.xlu0 %2178
    %v2180 = vsel %vm2176, %v2175, -inf
    %2181 = vmax.xlane.f32.xlu0 %v2180
    %v2182 = vpop.xlane.xlu0 %2181
    %v2183 = vsub.f32 %v2174, %v2179
    %v2184 = vsub.f32 %v2175, %v2182
    %v2185 = vmul.f32 %v2183, 1.442695
    %v2186 = vpow.pop %v2185
    %v2187 = vmul.f32 %v2184, 1.442695
    %v2188 = vpow.pop %v2187
    %2191 = vrot.lane.b32.xlu0 %v2186, 96
    %v2192 = vpop.permute.xlu0 %2191
    %2193 = vrot.lane.b32.xlu0 %v2188, 96
    %v2194 = vpop.permute.xlu0 %2193
    %v2197 = vsel %vm486, %v2192, 0.0
    %2198 = vadd.xlane.f32.xlu0 %v2197
    %v2199 = vpop.xlane.xlu0 %2198
    %v2200 = vsel %vm486, %v2194, 0.0
    %2201 = vadd.xlane.f32.xlu0 %v2200
    %v2202 = vpop.xlane.xlu0 %2201
    %v2203 = vrcp.pop %v2199
    %v2204 = vrcp.pop %v2202
    %v2205 = vmul.f32 %v2186, %v2203
    %v2206 = vmul.f32 %v2188, %v2204
    %v2207 = vpack.c.bf16 %v2206, %v2205
    %2209 = vrot.lane.b32.xlu0 %v2207, 96
    %v2210 = vpop.permute.xlu0 %2209
    %2211 = vrot.lane.b32.xlu0 %v1852, 64
    %v2212 = vpop.permute.xlu0 %2211
    %v2215 = vsel %vm486, %v2210, 0
    %2217 = vmatprep.subr.bf16.mxu0 0
    %2218 = vmatpush1.bf16.msra.mxu0 %v2212
    %2219 = vmatprep.subr.bf16.mxu0 0
    %2220 = vmatpush1.bf16.msra.mxu0 0
    %2221 = vmatprep.subr.bf16.mxu0 0
    %2222 = vmatpush1.bf16.msra.mxu0 0
    %2223 = vmatprep.subr.bf16.mxu0 0
    %2224 = vmatpush1.bf16.msra.mxu0 0
    %2225 = vmatprep.subr.bf16.mxu0 0
    %2226 = vmatpush1.bf16.msra.mxu0 0
    %2227 = vmatprep.subr.bf16.mxu0 0
    %2228 = vmatpush1.bf16.msra.mxu0 0
    %2229 = vmatprep.subr.bf16.mxu0 0
    %2230 = vmatpush1.bf16.msra.mxu0 0
    %2231 = vmatprep.subr.bf16.mxu0 0
    %2232 = vmatpush1.bf16.msra.mxu0 0
    %2233 = vmatprep.subr.bf16.mxu0 0
    %2234 = vmatpush1.bf16.msra.mxu0 0
    %2235 = vmatprep.subr.bf16.mxu0 0
    %2236 = vmatpush1.bf16.msra.mxu0 0
    %2237 = vmatprep.subr.bf16.mxu0 0
    %2238 = vmatpush1.bf16.msra.mxu0 0
    %2239 = vmatprep.subr.bf16.mxu0 0
    %2240 = vmatpush1.bf16.msra.mxu0 0
    %2241 = vmatprep.subr.bf16.mxu0 0
    %2242 = vmatpush1.bf16.msra.mxu0 0
    %2243 = vmatprep.subr.bf16.mxu0 0
    %2244 = vmatpush1.bf16.msra.mxu0 0
    %2245 = vmatprep.subr.bf16.mxu0 0
    %2246 = vmatpush1.bf16.msra.mxu0 0
    %2247 = vmatprep.subr.bf16.mxu0 0
    %2248 = vmatpush1.bf16.msra.mxu0 0
    %2249 = vmatprep.mubr.bf16.mxu0 0
    %2250 = vmatmul.mubr.bf16.gmra.mrb[0].mxu0 %v2215
    %v2251 = vpop.f32.mrb[0].mxu0
    %v2252 = vadd.f32 0.0, %v2251
    %v2253 = vpop.f32.mrb[0].mxu0
    %v2254 = vpop.f32.mrb[0].mxu0
    %v2255 = vadd.f32 0.0, %v2254
    %v2256 = vpop.f32.mrb[0].mxu0
    %2257 = vdwg.mxu0
    %2258 = vrot.lane.b32.xlu0 %v1761, 32
    %v2259 = vpop.permute.xlu0 %2258
    %2260 = vrot.lane.b32.xlu0 %v1762, 32
    %v2261 = vpop.permute.xlu0 %2260
    %v2263 = vsel %vm489, %v2259, 0
    %v2266 = vsel %vm489, %v2261, 0
    %2268 = vmatprep.subr.bf16.mxu0 0
    %2269 = vmatpush1.bf16.xpose.msra.mxu0 %v2266
    %2270 = vmatprep.subr.bf16.mxu0 0
    %2271 = vmatpush1.bf16.xpose.msra.mxu0 0
    %2272 = vmatprep.subr.bf16.mxu0 0
    %2273 = vmatpush1.bf16.xpose.msra.mxu0 0
    %2274 = vmatprep.subr.bf16.mxu0 0
    %2275 = vmatpush1.bf16.xpose.msra.mxu0 0
    %2276 = vmatprep.subr.bf16.mxu0 0
    %2277 = vmatpush1.bf16.xpose.msra.mxu0 0
    %2278 = vmatprep.subr.bf16.mxu0 0
    %2279 = vmatpush1.bf16.xpose.msra.mxu0 0
    %2280 = vmatprep.subr.bf16.mxu0 0
    %2281 = vmatpush1.bf16.xpose.msra.mxu0 0
    %2282 = vmatprep.subr.bf16.mxu0 0
    %2283 = vmatpush1.bf16.xpose.msra.mxu0 0
    %2284 = vmatprep.subr.bf16.mxu0 0
    %2285 = vmatpush1.bf16.xpose.msra.mxu0 0
    %2286 = vmatprep.subr.bf16.mxu0 0
    %2287 = vmatpush1.bf16.xpose.msra.mxu0 0
    %2288 = vmatprep.subr.bf16.mxu0 0
    %2289 = vmatpush1.bf16.xpose.msra.mxu0 0
    %2290 = vmatprep.subr.bf16.mxu0 0
    %2291 = vmatpush1.bf16.xpose.msra.mxu0 0
    %2292 = vmatprep.subr.bf16.mxu0 0
    %2293 = vmatpush1.bf16.xpose.msra.mxu0 0
    %2294 = vmatprep.subr.bf16.mxu0 0
    %2295 = vmatpush1.bf16.xpose.msra.mxu0 0
    %2296 = vmatprep.subr.bf16.mxu0 0
    %2297 = vmatpush1.bf16.xpose.msra.mxu0 0
    %2298 = vmatprep.subr.bf16.mxu0 0
    %2299 = vmatpush1.bf16.xpose.msra.mxu0 0
    %2300 = vmatprep.mubr.bf16.mxu0 0
    %2301 = vmatmul.mubr.bf16.gmra.mrb[0].mxu0 %v2263
    %v2302 = vpop.f32.mrb[0].mxu0
    %v2303 = vadd.f32 0.0, %v2302
    %v2304 = vpop.f32.mrb[0].mxu0
    %v2305 = vpop.f32.mrb[0].mxu0
    %v2306 = vadd.f32 0.0, %v2305
    %v2307 = vpop.f32.mrb[0].mxu0
    %2308 = vdwg.mxu0
    %2311 = vrot.lane.b32.xlu0 %v2303, 48
    %v2312 = vpop.permute.xlu0 %2311
    %2313 = vrot.lane.b32.xlu0 %v2306, 48
    %v2314 = vpop.permute.xlu0 %2313
    %v2317 = vadd.f32 %v1513, %v2312
    %v2318 = vadd.f32 %v1515, %v2314
    %vm2319 = vcmask 523648
    %v2320 = vsel %vm2319, %v2317, -inf
    %2321 = vmax.xlane.f32.xlu0 %v2320
    %v2322 = vpop.xlane.xlu0 %2321
    %v2323 = vsel %vm2319, %v2318, -inf
    %2324 = vmax.xlane.f32.xlu0 %v2323
    %v2325 = vpop.xlane.xlu0 %2324
    %v2326 = vsub.f32 %v2317, %v2322
    %v2327 = vsub.f32 %v2318, %v2325
    %v2328 = vmul.f32 %v2326, 1.442695
    %v2329 = vpow.pop %v2328
    %v2330 = vmul.f32 %v2327, 1.442695
    %v2331 = vpow.pop %v2330
    %2334 = vrot.lane.b32.xlu0 %v2329, 80
    %v2335 = vpop.permute.xlu0 %2334
    %2336 = vrot.lane.b32.xlu0 %v2331, 80
    %v2337 = vpop.permute.xlu0 %2336
    %v2340 = vsel %vm486, %v2335, 0.0
    %2341 = vadd.xlane.f32.xlu0 %v2340
    %v2342 = vpop.xlane.xlu0 %2341
    %v2343 = vsel %vm486, %v2337, 0.0
    %2344 = vadd.xlane.f32.xlu0 %v2343
    %v2345 = vpop.xlane.xlu0 %2344
    %v2346 = vrcp.pop %v2342
    %v2347 = vrcp.pop %v2345
    %v2348 = vmul.f32 %v2329, %v2346
    %v2349 = vmul.f32 %v2331, %v2347
    %v2350 = vpack.c.bf16 %v2349, %v2348
    %2352 = vrot.lane.b32.xlu0 %v2350, 80
    %v2353 = vpop.permute.xlu0 %2352
    %2354 = vrot.lane.b32.xlu0 %v1852, 32
    %v2355 = vpop.permute.xlu0 %2354
    %v2358 = vsel %vm486, %v2353, 0
    %2360 = vmatprep.subr.bf16.mxu0 0
    %2361 = vmatpush1.bf16.msra.mxu0 %v2355
    %2362 = vmatprep.subr.bf16.mxu0 0
    %2363 = vmatpush1.bf16.msra.mxu0 0
    %2364 = vmatprep.subr.bf16.mxu0 0
    %2365 = vmatpush1.bf16.msra.mxu0 0
    %2366 = vmatprep.subr.bf16.mxu0 0
    %2367 = vmatpush1.bf16.msra.mxu0 0
    %2368 = vmatprep.subr.bf16.mxu0 0
    %2369 = vmatpush1.bf16.msra.mxu0 0
    %2370 = vmatprep.subr.bf16.mxu0 0
    %2371 = vmatpush1.bf16.msra.mxu0 0
    %2372 = vmatprep.subr.bf16.mxu0 0
    %2373 = vmatpush1.bf16.msra.mxu0 0
    %2374 = vmatprep.subr.bf16.mxu0 0
    %2375 = vmatpush1.bf16.msra.mxu0 0
    %2376 = vmatprep.subr.bf16.mxu0 0
    %2377 = vmatpush1.bf16.msra.mxu0 0
    %2378 = vmatprep.subr.bf16.mxu0 0
    %2379 = vmatpush1.bf16.msra.mxu0 0
    %2380 = vmatprep.subr.bf16.mxu0 0
    %2381 = vmatpush1.bf16.msra.mxu0 0
    %2382 = vmatprep.subr.bf16.mxu0 0
    %2383 = vmatpush1.bf16.msra.mxu0 0
    %2384 = vmatprep.subr.bf16.mxu0 0
    %2385 = vmatpush1.bf16.msra.mxu0 0
    %2386 = vmatprep.subr.bf16.mxu0 0
    %2387 = vmatpush1.bf16.msra.mxu0 0
    %2388 = vmatprep.subr.bf16.mxu0 0
    %2389 = vmatpush1.bf16.msra.mxu0 0
    %2390 = vmatprep.subr.bf16.mxu0 0
    %2391 = vmatpush1.bf16.msra.mxu0 0
    %2392 = vmatprep.mubr.bf16.mxu0 0
    %2393 = vmatmul.mubr.bf16.gmra.mrb[0].mxu0 %v2358
    %v2394 = vpop.f32.mrb[0].mxu0
    %v2395 = vadd.f32 0.0, %v2394
    %v2396 = vpop.f32.mrb[0].mxu0
    %v2397 = vpop.f32.mrb[0].mxu0
    %v2398 = vadd.f32 0.0, %v2397
    %v2399 = vpop.f32.mrb[0].mxu0
    %2400 = vdwg.mxu0
    %2403 = vrot.lane.b32.xlu0 %v2109, 32
    %v2404 = vpop.permute.xlu0 %2403
    %2405 = vrot.lane.b32.xlu0 %v2112, 32
    %v2406 = vpop.permute.xlu0 %2405
    %2411 = vrot.lane.b32.xlu0 %v2252, 64
    %v2412 = vpop.permute.xlu0 %2411
    %2413 = vrot.lane.b32.xlu0 %v2255, 64
    %v2414 = vpop.permute.xlu0 %2413
    %2419 = vrot.lane.b32.xlu0 %v2395, 96
    %v2420 = vpop.permute.xlu0 %2419
    %2421 = vrot.lane.b32.xlu0 %v2398, 96
    %v2422 = vpop.permute.xlu0 %2421
    %v2425 = vsel %vm489, %v1963, %v2404
    %v2426 = vsel %vm489, %v1966, %v2406
    %v2427 = vsel %vm519, %v2425, %v2412
    %v2428 = vsel %vm519, %v2426, %v2414
    %vm2429 = vcmask 785408
    %v2430 = vsel %vm2429, %v2427, %v2420
    %v2431 = vsel %vm2429, %v2428, %v2422
    %v2433 = vlaneseq
    %v2434 = vshrl.u32 %v2433, 7
    %v2435 = vsub.s32 0, %v2434
    %v2436 = vrot.slane %v1760, %v2435
    %v2438 = vadd.f32 %v2430, %v2436
    %v2439 = vadd.f32 %v2431, %v2436
    %v2440 = vadd.f32 %v267, %v2438
    %v2441 = vadd.f32 %v268, %v2439
    %v2442 = vld [vmem:[%s9] sm:$0xf]
    %v2443 = vld [vmem:[%s9 + $0x4] sm:$0xf]
    %v2444 = vld [vmem:[%s9 + $0x8] sm:$0xf]
    %v2445 = vld [vmem:[%s9 + $0xc] sm:$0xf]
    %v2446 = vld [vmem:[%s9 + $0x10] sm:$0xf]
    %v2447 = vld [vmem:[%s9 + $0x14] sm:$0xf]
    %v2448 = vld [vmem:[%s9 + $0x18] sm:$0xf]
    %v2449 = vld [vmem:[%s9 + $0x1c] sm:$0xf]
    %v2450 = vld [vmem:[%s9 + $0x20] sm:$0xf]
    %v2451 = vld [vmem:[%s9 + $0x24] sm:$0xf]
    %v2452 = vld [vmem:[%s9 + $0x28] sm:$0xf]
    %v2453 = vld [vmem:[%s9 + $0x2c] sm:$0xf]
    %v2454 = vld [vmem:[%s9 + $0x30] sm:$0xf]
    %v2455 = vld [vmem:[%s9 + $0x34] sm:$0xf]
    %v2456 = vld [vmem:[%s9 + $0x38] sm:$0xf]
    %v2457 = vld [vmem:[%s9 + $0x3c] sm:$0xf]
    %v2458 = vpack.c.bf16 %v2441, %v2440
    %v2459 = vld [vmem:[%s10] sm:$0x1]
    %v2461 = vlaneseq
    %v2462 = vshrl.u32 %v2461, 7
    %v2463 = vsub.s32 0, %v2462
    %v2464 = vrot.slane %v2459, %v2463
    %v2482 = vunpack.c.l.b16 %v2442
    %v2483 = vunpack.c.l.b16 %v2443
    %v2484 = vunpack.c.l.b16 %v2444
    %v2485 = vunpack.c.l.b16 %v2445
    %v2486 = vunpack.c.l.b16 %v2446
    %v2487 = vunpack.c.l.b16 %v2447
    %v2488 = vunpack.c.l.b16 %v2448
    %v2489 = vunpack.c.l.b16 %v2449
    %v2490 = vunpack.c.l.b16 %v2450
    %v2491 = vunpack.c.l.b16 %v2451
    %v2492 = vunpack.c.l.b16 %v2452
    %v2493 = vunpack.c.l.b16 %v2453
    %v2494 = vunpack.c.l.b16 %v2454
    %v2495 = vunpack.c.l.b16 %v2455
    %v2496 = vunpack.c.l.b16 %v2456
    %v2497 = vunpack.c.l.b16 %v2457
    %v2498 = vpack.c.b16 %v2483, %v2482
    %v2499 = vpack.c.b16 %v2485, %v2484
    %v2500 = vpack.c.b16 %v2487, %v2486
    %v2501 = vpack.c.b16 %v2489, %v2488
    %v2502 = vpack.c.b16 %v2491, %v2490
    %v2503 = vpack.c.b16 %v2493, %v2492
    %v2504 = vpack.c.b16 %v2495, %v2494
    %v2505 = vpack.c.b16 %v2497, %v2496
    %2514 = vmatprep.subr.bf16.mxu0 0
    %2515 = vmatpush1.bf16.msra.mxu0 %v2498
    %2516 = vmatprep.subr.bf16.mxu0 0
    %2517 = vmatpush1.bf16.msra.mxu0 %v2499
    %2518 = vmatprep.subr.bf16.mxu0 0
    %2519 = vmatpush1.bf16.msra.mxu0 %v2500
    %2520 = vmatprep.subr.bf16.mxu0 0
    %2521 = vmatpush1.bf16.msra.mxu0 %v2501
    %2522 = vmatprep.subr.bf16.mxu0 0
    %2523 = vmatpush1.bf16.msra.mxu0 %v2502
    %2524 = vmatprep.subr.bf16.mxu0 0
    %2525 = vmatpush1.bf16.msra.mxu0 %v2503
    %2526 = vmatprep.subr.bf16.mxu0 0
    %2527 = vmatpush1.bf16.msra.mxu0 %v2504
    %2528 = vmatprep.subr.bf16.mxu0 0
    %2529 = vmatpush1.bf16.msra.mxu0 %v2505
    %2530 = vmatprep.subr.bf16.mxu0 0
    %2531 = vmatpush1.bf16.msra.mxu0 0
    %2532 = vmatprep.subr.bf16.mxu0 0
    %2533 = vmatpush1.bf16.msra.mxu0 0
    %2534 = vmatprep.subr.bf16.mxu0 0
    %2535 = vmatpush1.bf16.msra.mxu0 0
    %2536 = vmatprep.subr.bf16.mxu0 0
    %2537 = vmatpush1.bf16.msra.mxu0 0
    %2538 = vmatprep.subr.bf16.mxu0 0
    %2539 = vmatpush1.bf16.msra.mxu0 0
    %2540 = vmatprep.subr.bf16.mxu0 0
    %2541 = vmatpush1.bf16.msra.mxu0 0
    %2542 = vmatprep.subr.bf16.mxu0 0
    %2543 = vmatpush1.bf16.msra.mxu0 0
    %2544 = vmatprep.subr.bf16.mxu0 0
    %2545 = vmatpush1.bf16.msra.mxu0 0
    %2546 = vmatprep.mubr.bf16.mxu0 0
    %2547 = vmatmul.mubr.bf16.gmra.mrb[0].mxu0 %v2458
    %v2548 = vpop.f32.mrb[0].mxu0
    %v2549 = vadd.f32 %v2464, %v2548
    %v2550 = vpop.f32.mrb[0].mxu0
    %v2551 = vpop.f32.mrb[0].mxu0
    %v2552 = vadd.f32 %v2464, %v2551
    %v2553 = vpop.f32.mrb[0].mxu0
    %2554 = vdwg.mxu0
    %v2555 = vmax.f32 %v2549, 0.0
    %v2556 = vmax.f32 %v2552, 0.0
    %v2557 = vld [vmem:[%s6] sm:$0xf]
    %v2558 = vld [vmem:[%s19] sm:$0xff]
    %v2559 = vld [vmem:[%s19 + $0x8] sm:$0xff]
    %v2560 = vld [vmem:[%s19 + $0x10] sm:$0xff]
    %v2561 = vld [vmem:[%s19 + $0x18] sm:$0xff]
    %v2562 = vld [vmem:[%s19 + $0x20] sm:$0xff]
    %v2563 = vld [vmem:[%s19 + $0x28] sm:$0xff]
    %v2564 = vld [vmem:[%s19 + $0x30] sm:$0xff]
    %v2565 = vld [vmem:[%s19 + $0x38] sm:$0xff]
    %v2566 = vld [vmem:[%s19 + $0x40] sm:$0xff]
    %v2567 = vld [vmem:[%s19 + $0x48] sm:$0xff]
    %v2568 = vld [vmem:[%s19 + $0x50] sm:$0xff]
    %v2569 = vld [vmem:[%s19 + $0x58] sm:$0xff]
    %v2570 = vld [vmem:[%s19 + $0x60] sm:$0xff]
    %v2571 = vld [vmem:[%s19 + $0x68] sm:$0xff]
    %v2572 = vld [vmem:[%s19 + $0x70] sm:$0xff]
    %v2573 = vld [vmem:[%s19 + $0x78] sm:$0xff]
    %v2574 = vld [vmem:[%s19 + $0x80] sm:$0xff]
    %v2575 = vld [vmem:[%s19 + $0x88] sm:$0xff]
    %v2576 = vld [vmem:[%s19 + $0x90] sm:$0xff]
    %v2577 = vld [vmem:[%s19 + $0x98] sm:$0xff]
    %v2578 = vld [vmem:[%s19 + $0xa0] sm:$0xff]
    %v2579 = vld [vmem:[%s19 + $0xa8] sm:$0xff]
    %v2580 = vld [vmem:[%s19 + $0xb0] sm:$0xff]
    %v2581 = vld [vmem:[%s19 + $0xb8] sm:$0xff]
    %v2582 = vld [vmem:[%s19 + $0xc0] sm:$0xff]
    %v2583 = vld [vmem:[%s19 + $0xc8] sm:$0xff]
    %v2584 = vld [vmem:[%s19 + $0xd0] sm:$0xff]
    %v2585 = vld [vmem:[%s19 + $0xd8] sm:$0xff]
    %v2586 = vld [vmem:[%s19 + $0xe0] sm:$0xff]
    %v2587 = vld [vmem:[%s19 + $0xe8] sm:$0xff]
    %v2588 = vld [vmem:[%s19 + $0xf0] sm:$0xff]
    %v2589 = vld [vmem:[%s19 + $0xf8] sm:$0xff]
    %v2590 = vld [vmem:[%s20] sm:$0x1]
    %v2592 = vrot.slane %v2557, 6
    %v2594 = vsub.f32 %v2557, %v2592
    %v2595 = vadd.f32 %v2594, 1.0
    %v2596 = vrot.slane %v2557, 2
    %v2598 = vadd.f32 %v2557, %v2596
    %v2599 = vmul.f32 %v2598, 0.5
    %v2600 = vlaneseq
    %v2601 = vshrl.u32 %v2600, 7
    %v2602 = vsub.s32 0, %v2601
    %v2603 = vrot.slane %v2599, %v2602
    %v2604 = vsub.f32 %v371, %v2603
    %v2605 = vmul.f32 %v2604, %v394
    %v2606 = vand.u32 2147483647, %v2605
    %v2607 = vadd.f32 %v2606, 0.001
    %v2608 = vlog2.pop %v2607
    %v2609 = vmul.f32 %v2608, 0.6931472
    %v2610 = vlaneseq
    %v2611 = vshrl.u32 %v2610, 7
    %v2612 = vsub.s32 1, %v2611
    %v2613 = vrot.slane %v2599, %v2612
    %v2614 = vsub.f32 %v408, %v2613
    %v2615 = vmul.f32 %v2614, %v428
    %v2616 = vand.u32 2147483647, %v2615
    %v2617 = vadd.f32 %v2616, 0.001
    %v2618 = vlog2.pop %v2617
    %v2619 = vmul.f32 %v2618, 0.6931472
    %v2620 = vlaneseq
    %v2621 = vshrl.u32 %v2620, 7
    %v2622 = vsub.s32 2, %v2621
    %v2623 = vrot.slane %v2595, %v2622
    %v2624 = vrcp.pop %v2623
    %v2625 = vmul.f32 %v387, %v2624
    %v2626 = vlog2.pop %v2625
    %v2627 = vmul.f32 %v2626, 0.6931472
    %v2628 = vlaneseq
    %v2629 = vshrl.u32 %v2628, 7
    %v2630 = vsub.s32 3, %v2629
    %v2631 = vrot.slane %v2595, %v2630
    %v2632 = vrcp.pop %v2631
    %v2633 = vmul.f32 %v422, %v2632
    %v2634 = vlog2.pop %v2633
    %v2635 = vmul.f32 %v2634, 0.6931472
    %2637 = vrot.lane.b32.xlu0 %v2619, 8
    %v2638 = vpop.permute.xlu0 %2637
    %2641 = vrot.lane.b32.xlu0 %v2627, 16
    %v2642 = vpop.permute.xlu0 %2641
    %2645 = vrot.lane.b32.xlu0 %v2635, 24
    %v2646 = vpop.permute.xlu0 %2645
    %vm2648 = vcmask 64512
    %v2649 = vsel %vm2648, %v2609, %v2638
    %v2650 = vsel %vm486, %v2649, %v2642
    %vm2651 = vcmask 195584
    %v2652 = vsel %vm2651, %v2650, %v2646
    %v2653 = vmul.f32 %v2652, 100.0
    %v2654 = vmul.f32 %v2652, 17.782795
    %v2655 = vmul.f32 %v2652, 3.1622777
    %v2656 = vmul.f32 %v2652, 0.56234133
    %2658 = vrot.lane.b32.xlu0 %v2654, 32
    %v2659 = vpop.permute.xlu0 %2658
    %2662 = vrot.lane.b32.xlu0 %v2655, 64
    %v2663 = vpop.permute.xlu0 %2662
    %2666 = vrot.lane.b32.xlu0 %v2656, 96
    %v2667 = vpop.permute.xlu0 %2666
    %v2669 = vsel %vm489, %v2653, %v2659
    %v2670 = vsel %vm519, %v2669, %v2663
    %v2671 = vsel %vm2429, %v2670, %v2667
    %v2672 = vand.u32 2147483647, %v2671
    %vm2673 = vcmp.le.f32.partialorder %v2672, 0.7853982
    %vm2674 = vcmp.lt.s32.totalorder %v2671, 0
    %v2675 = vand.u32 %v2671, 2139095040
    %v2676 = vshrl.u32 %v2675, 23
    %v2677 = vsub.s32 %v2676, 127
    %v2678 = vand.u32 2147483647, %v2671
    %v2679 = vand.u32 %v2678, 8388607
    %v2680 = vor.u32 %v2679, 8388608
    %v2681 = vsub.s32 0, %v2680
    %v2682 = vadd.s32 %v2677, 1
    %vm2683 = vcmp.gt.s32.totalorder %v2682, 0
    %v2684 = vsel %vm2683, %v2682, 0
    %v2685 = vshrl.u32 %v2684, 5
    %v2686 = vand.u32 %v2684, 31
    %v2687 = vsub.s32 32, %v2686
    %v2688 = vshrl.u32 683565275, %v2687
    %v2689 = vshll.u32 683565275, %v2686
    %v2690 = vshrl.u32 2475754826, %v2687
    %v2691 = vor.u32 %v2689, %v2690
    %v2692 = vshll.u32 2475754826, %v2686
    %v2693 = vshrl.u32 2131351028, %v2687
    %v2694 = vor.u32 %v2692, %v2693
    %v2695 = vshll.u32 2131351028, %v2686
    %v2696 = vshrl.u32 2102212464, %v2687
    %v2697 = vor.u32 %v2695, %v2696
    %v2698 = vshll.u32 2102212464, %v2686
    %v2699 = vshrl.u32 920167782, %v2687
    %v2700 = vor.u32 %v2698, %v2699
    %v2701 = vshll.u32 920167782, %v2686
    %v2702 = vshrl.u32 1326507024, %v2687
    %v2703 = vor.u32 %v2701, %v2702
    %vm2704 = vcmp.lt.s32.totalorder %v2685, 1
    %vm2705 = vcmp.lt.s32.totalorder %v2685, 2
    %vm2706 = vcmp.lt.s32.totalorder %v2685, 3
    %vm2707 = vcmp.lt.s32.totalorder %v2685, 4
    %v2708 = vsel %vm2704, %v2688, %v2691
    %v2709 = vsel %vm2707, %v2697, 2102212464
    %v2710 = vsel %vm2706, %v2694, %v2709
    %v2711 = vsel %vm2705, %v2708, %v2710
    %v2712 = vsel %vm2704, %v2691, %v2694
    %v2713 = vsel %vm2707, %v2700, 920167782
    %v2714 = vsel %vm2706, %v2697, %v2713
    %v2715 = vsel %vm2705, %v2712, %v2714
    %v2716 = vsel %vm2704, %v2694, %v2697
    %v2717 = vsel %vm2707, %v2703, 1326507024
    %v2718 = vsel %vm2706, %v2700, %v2717
    %v2719 = vsel %vm2705, %v2716, %v2718
    %v2720 = vshll.u32 %v2680, 8
    %v2721 = vmul.u32.u64.compose %v2720, %v2719
    %v2722 = vextract.low.u32 %v2721
    %v2723 = vextract.high.u32 %v2721
    %v2724 = vmul.u32.u64.compose %v2720, %v2715
    %v2725 = vextract.low.u32 %v2724
    %v2726 = vextract.high.u32 %v2724
    %v2727 = vmul.u32 %v2720, %v2711
    %v2728 = vadd.s32 %v2723, %v2725
    %vm2729 = vc.u32 %v2723, %v2725
    %v2730 = vadd.s32 %v2726, 1
    %v2731 = vsel %vm2729, %v2730, %v2726
    %v2732 = vadd.s32 %v2727, %v2731
    %v2733 = vadd.s32 %v2732, 536870912
    %v2734 = vshrl.u32 %v2733, 30
    %v2735 = vshll.u32 %v2734, 30
    %v2736 = vsub.s32 %v2732, %v2735
    %vm2737 = vcmp.lt.s32.totalorder %v2736, 0
    %v2738 = vsub.s32 0, %v2736
    %v2739 = vsel %vm2737, %v2738, %v2736
    %v2740 = vclz %v2739
    %v2741 = vsub.s32 %v2740, 2
    %vm2742 = vcmp.gt.s32.totalorder 0, %v2741
    %v2743 = vsel %vm2742, 0, %v2741
    %v2744 = vsub.s32 32, %v2743
    %v2745 = vshll.u32 %v2736, %v2743
    %v2746 = vshrl.u32 %v2728, %v2744
    %v2747 = vor.u32 %v2745, %v2746
    %v2748 = vsub.s32 4294967266, %v2743
    %v2749 = vadd.s32 %v2748, 127
    %v2750 = vshll.u32 %v2749, 23
    %v2751 = vor.u32 4788187, %v2750
    %v2752 = vand.u32 2147483647, %v2751
    %v2754 = vcvt.s32.f32 %v2747
    %v2755 = vmul.f32 %v2754, %v2752
    %v2756 = vxor.u32 %v2755, 2147483648
    %v2757 = vsel %vm2674, %v2756, %v2755
    %v2758 = vsub.s32 4, %v2734
    %v2759 = vsel %vm2674, %v2758, %v2734
    %v2760 = vsel %vm2673, %v2671, %v2757
    %v2761 = vsel %vm2673, 0, %v2759
    %v2762 = vcosq.f32.pop %v2760
    %v2763 = vsinq.f32.pop %v2760
    %vm2764 = vweird.f32 %v2671
    %v2765 = vadd.s32 %v2761, 3
    %v2766 = vand.u32 %v2765, 3
    %vm2767 = vcmp.lt.s32.totalorder %v2766, 2
    %vm2768 = vcmp.eq.s32.totalorder %v2766, 0
    %v2769 = vxor.u32 %v2763, 2147483648
    %v2770 = vsel %vm2768, %v2762, %v2769
    %vm2771 = vcmp.eq.s32.totalorder %v2766, 2
    %v2772 = vxor.u32 %v2762, 2147483648
    %v2773 = vsel %vm2771, %v2772, %v2763
    %v2774 = vsel %vm2767, %v2770, %v2773
    %v2775 = vsel %vm2764, nan, %v2774
    %v2776 = vand.u32 2147483647, %v2671
    %vm2777 = vcmp.le.f32.partialorder %v2776, 0.7853982
    %vm2778 = vcmp.lt.s32.totalorder %v2671, 0
    %v2779 = vand.u32 %v2671, 2139095040
    %v2780 = vshrl.u32 %v2779, 23
    %v2781 = vsub.s32 %v2780, 127
    %v2782 = vand.u32 2147483647, %v2671
    %v2783 = vand.u32 %v2782, 8388607
    %v2784 = vor.u32 %v2783, 8388608
    %v2785 = vsub.s32 0, %v2784
    %v2786 = vadd.s32 %v2781, 1
    %vm2787 = vcmp.gt.s32.totalorder %v2786, 0
    %v2788 = vsel %vm2787, %v2786, 0
    %v2789 = vshrl.u32 %v2788, 5
    %v2790 = vand.u32 %v2788, 31
    %v2791 = vsub.s32 32, %v2790
    %v2792 = vshrl.u32 683565275, %v2791
    %v2793 = vshll.u32 683565275, %v2790
    %v2794 = vshrl.u32 2475754826, %v2791
    %v2795 = vor.u32 %v2793, %v2794
    %v2796 = vshll.u32 2475754826, %v2790
    %v2797 = vshrl.u32 2131351028, %v2791
    %v2798 = vor.u32 %v2796, %v2797
    %v2799 = vshll.u32 2131351028, %v2790
    %v2800 = vshrl.u32 2102212464, %v2791
    %v2801 = vor.u32 %v2799, %v2800
    %v2802 = vshll.u32 2102212464, %v2790
    %v2803 = vshrl.u32 920167782, %v2791
    %v2804 = vor.u32 %v2802, %v2803
    %v2805 = vshll.u32 920167782, %v2790
    %v2806 = vshrl.u32 1326507024, %v2791
    %v2807 = vor.u32 %v2805, %v2806
    %vm2808 = vcmp.lt.s32.totalorder %v2789, 1
    %vm2809 = vcmp.lt.s32.totalorder %v2789, 2
    %vm2810 = vcmp.lt.s32.totalorder %v2789, 3
    %vm2811 = vcmp.lt.s32.totalorder %v2789, 4
    %v2812 = vsel %vm2808, %v2792, %v2795
    %v2813 = vsel %vm2811, %v2801, 2102212464
    %v2814 = vsel %vm2810, %v2798, %v2813
    %v2815 = vsel %vm2809, %v2812, %v2814
    %v2816 = vsel %vm2808, %v2795, %v2798
    %v2817 = vsel %vm2811, %v2804, 920167782
    %v2818 = vsel %vm2810, %v2801, %v2817
    %v2819 = vsel %vm2809, %v2816, %v2818
    %v2820 = vsel %vm2808, %v2798, %v2801
    %v2821 = vsel %vm2811, %v2807, 1326507024
    %v2822 = vsel %vm2810, %v2804, %v2821
    %v2823 = vsel %vm2809, %v2820, %v2822
    %v2824 = vshll.u32 %v2784, 8
    %v2825 = vmul.u32.u64.compose %v2824, %v2823
    %v2826 = vextract.low.u32 %v2825
    %v2827 = vextract.high.u32 %v2825
    %v2828 = vmul.u32.u64.compose %v2824, %v2819
    %v2829 = vextract.low.u32 %v2828
    %v2830 = vextract.high.u32 %v2828
    %v2831 = vmul.u32 %v2824, %v2815
    %v2832 = vadd.s32 %v2827, %v2829
    %vm2833 = vc.u32 %v2827, %v2829
    %v2834 = vadd.s32 %v2830, 1
    %v2835 = vsel %vm2833, %v2834, %v2830
    %v2836 = vadd.s32 %v2831, %v2835
    %v2837 = vadd.s32 %v2836, 536870912
    %v2838 = vshrl.u32 %v2837, 30
    %v2839 = vshll.u32 %v2838, 30
    %v2840 = vsub.s32 %v2836, %v2839
    %vm2841 = vcmp.lt.s32.totalorder %v2840, 0
    %v2842 = vsub.s32 0, %v2840
    %v2843 = vsel %vm2841, %v2842, %v2840
    %v2844 = vclz %v2843
    %v2845 = vsub.s32 %v2844, 2
    %vm2846 = vcmp.gt.s32.totalorder 0, %v2845
    %v2847 = vsel %vm2846, 0, %v2845
    %v2848 = vsub.s32 32, %v2847
    %v2849 = vshll.u32 %v2840, %v2847
    %v2850 = vshrl.u32 %v2832, %v2848
    %v2851 = vor.u32 %v2849, %v2850
    %v2852 = vsub.s32 4294967266, %v2847
    %v2853 = vadd.s32 %v2852, 127
    %v2854 = vshll.u32 %v2853, 23
    %v2855 = vor.u32 4788187, %v2854
    %v2856 = vand.u32 2147483647, %v2855
    %v2858 = vcvt.s32.f32 %v2851
    %v2859 = vmul.f32 %v2858, %v2856
    %v2860 = vxor.u32 %v2859, 2147483648
    %v2861 = vsel %vm2778, %v2860, %v2859
    %v2862 = vsub.s32 4, %v2838
    %v2863 = vsel %vm2778, %v2862, %v2838
    %v2864 = vsel %vm2777, %v2671, %v2861
    %v2865 = vsel %vm2777, 0, %v2863
    %v2866 = vcosq.f32.pop %v2864
    %v2867 = vsinq.f32.pop %v2864
    %vm2868 = vweird.f32 %v2671
    %v2869 = vand.u32 %v2865, 3
    %vm2870 = vcmp.lt.s32.totalorder %v2869, 2
    %vm2871 = vcmp.eq.s32.totalorder %v2869, 0
    %v2872 = vxor.u32 %v2867, 2147483648
    %v2873 = vsel %vm2871, %v2866, %v2872
    %vm2874 = vcmp.eq.s32.totalorder %v2869, 2
    %v2875 = vxor.u32 %v2866, 2147483648
    %v2876 = vsel %vm2874, %v2875, %v2867
    %v2877 = vsel %vm2870, %v2873, %v2876
    %v2878 = vsel %vm2868, nan, %v2877
    %v2880 = vlaneseq
    %v2881 = vshrl.u32 %v2880, 7
    %v2882 = vsub.s32 0, %v2881
    %v2883 = vrot.slane %v2590, %v2882
    %2885 = vmatprep.subr.mxu0 0.0
    %2886 = vmatpush1.msra.mxu0 %v2558
    %2887 = vmatprep.subr.mxu0 0.0
    %2888 = vmatpush1.msra.mxu0 %v2559
    %2889 = vmatprep.subr.mxu0 0.0
    %2890 = vmatpush1.msra.mxu0 %v2560
    %2891 = vmatprep.subr.mxu0 0.0
    %2892 = vmatpush1.msra.mxu0 %v2561
    %2893 = vmatprep.subr.mxu0 0.0
    %2894 = vmatpush1.msra.mxu0 %v2562
    %2895 = vmatprep.subr.mxu0 0.0
    %2896 = vmatpush1.msra.mxu0 %v2563
    %2897 = vmatprep.subr.mxu0 0.0
    %2898 = vmatpush1.msra.mxu0 %v2564
    %2899 = vmatprep.subr.mxu0 0.0
    %2900 = vmatpush1.msra.mxu0 %v2565
    %2901 = vmatprep.subr.mxu0 0.0
    %2902 = vmatpush1.msra.mxu0 %v2566
    %2903 = vmatprep.subr.mxu0 0.0
    %2904 = vmatpush1.msra.mxu0 %v2567
    %2905 = vmatprep.subr.mxu0 0.0
    %2906 = vmatpush1.msra.mxu0 %v2568
    %2907 = vmatprep.subr.mxu0 0.0
    %2908 = vmatpush1.msra.mxu0 %v2569
    %2909 = vmatprep.subr.mxu0 0.0
    %2910 = vmatpush1.msra.mxu0 %v2570
    %2911 = vmatprep.subr.mxu0 0.0
    %2912 = vmatpush1.msra.mxu0 %v2571
    %2913 = vmatprep.subr.mxu0 0.0
    %2914 = vmatpush1.msra.mxu0 %v2572
    %2915 = vmatprep.subr.mxu0 0.0
    %2916 = vmatpush1.msra.mxu0 %v2573
    %2917 = vmatprep.subr.mxu0 0.0
    %2918 = vmatpush1.msra.mxu0 %v2574
    %2919 = vmatprep.subr.mxu0 0.0
    %2920 = vmatpush1.msra.mxu0 %v2575
    %2921 = vmatprep.subr.mxu0 0.0
    %2922 = vmatpush1.msra.mxu0 %v2576
    %2923 = vmatprep.subr.mxu0 0.0
    %2924 = vmatpush1.msra.mxu0 %v2577
    %2925 = vmatprep.subr.mxu0 0.0
    %2926 = vmatpush1.msra.mxu0 %v2578
    %2927 = vmatprep.subr.mxu0 0.0
    %2928 = vmatpush1.msra.mxu0 %v2579
    %2929 = vmatprep.subr.mxu0 0.0
    %2930 = vmatpush1.msra.mxu0 %v2580
    %2931 = vmatprep.subr.mxu0 0.0
    %2932 = vmatpush1.msra.mxu0 %v2581
    %2933 = vmatprep.subr.mxu0 0.0
    %2934 = vmatpush1.msra.mxu0 %v2582
    %2935 = vmatprep.subr.mxu0 0.0
    %2936 = vmatpush1.msra.mxu0 %v2583
    %2937 = vmatprep.subr.mxu0 0.0
    %2938 = vmatpush1.msra.mxu0 %v2584
    %2939 = vmatprep.subr.mxu0 0.0
    %2940 = vmatpush1.msra.mxu0 %v2585
    %2941 = vmatprep.subr.mxu0 0.0
    %2942 = vmatpush1.msra.mxu0 %v2586
    %2943 = vmatprep.subr.mxu0 0.0
    %2944 = vmatpush1.msra.mxu0 %v2587
    %2945 = vmatprep.subr.mxu0 0.0
    %2946 = vmatpush1.msra.mxu0 %v2588
    %2947 = vmatprep.subr.mxu0 0.0
    %2948 = vmatpush1.msra.mxu0 %v2589
    %2949 = vmatprep.mubr.f32.mxu0 %v2878
    %2950 = vmatmul.mubr.f32.gmra.mrb[0].mxu0 %v2775
    %v2951 = vpop.f32.mrb[0].mxu0
    %v2952 = vadd.f32 %v2883, %v2951
    %v2953 = vpop.f32.mrb[0].mxu0
    %2954 = vdwg.mxu0
    %v2955 = vmax.f32 %v2952, 0.0
    %v2956 = vadd.f32 %v2955, 1e-06
    %v2957 = vlog2.pop %v2956
    %v2958 = vmul.f32 %v2957, 0.6931472
    %v2959 = vld [vmem:[%s21] sm:$0xf]
    %v2960 = vld [vmem:[%s21 + $0x4] sm:$0xf]
    %v2961 = vld [vmem:[%s21 + $0x8] sm:$0xf]
    %v2962 = vld [vmem:[%s21 + $0xc] sm:$0xf]
    %v2963 = vld [vmem:[%s21 + $0x10] sm:$0xf]
    %v2964 = vld [vmem:[%s21 + $0x14] sm:$0xf]
    %v2965 = vld [vmem:[%s21 + $0x18] sm:$0xf]
    %v2966 = vld [vmem:[%s21 + $0x1c] sm:$0xf]
    %v2967 = vld [vmem:[%s21 + $0x20] sm:$0xf]
    %v2968 = vld [vmem:[%s21 + $0x24] sm:$0xf]
    %v2969 = vld [vmem:[%s21 + $0x28] sm:$0xf]
    %v2970 = vld [vmem:[%s21 + $0x2c] sm:$0xf]
    %v2971 = vld [vmem:[%s21 + $0x30] sm:$0xf]
    %v2972 = vld [vmem:[%s21 + $0x34] sm:$0xf]
    %v2973 = vld [vmem:[%s21 + $0x38] sm:$0xf]
    %v2974 = vld [vmem:[%s21 + $0x3c] sm:$0xf]
    %v2975 = vpack.c.bf16 %v2555, %v2555
    %v2976 = vld [vmem:[%s22] sm:$0x1]
    %v2978 = vlaneseq
    %v2979 = vshrl.u32 %v2978, 7
    %v2980 = vsub.s32 0, %v2979
    %v2981 = vrot.slane %v2976, %v2980
    %v2999 = vunpack.c.l.b16 %v2959
    %v3000 = vunpack.c.l.b16 %v2960
    %v3001 = vunpack.c.l.b16 %v2961
    %v3002 = vunpack.c.l.b16 %v2962
    %v3003 = vunpack.c.l.b16 %v2963
    %v3004 = vunpack.c.l.b16 %v2964
    %v3005 = vunpack.c.l.b16 %v2965
    %v3006 = vunpack.c.l.b16 %v2966
    %v3007 = vunpack.c.l.b16 %v2967
    %v3008 = vunpack.c.l.b16 %v2968
    %v3009 = vunpack.c.l.b16 %v2969
    %v3010 = vunpack.c.l.b16 %v2970
    %v3011 = vunpack.c.l.b16 %v2971
    %v3012 = vunpack.c.l.b16 %v2972
    %v3013 = vunpack.c.l.b16 %v2973
    %v3014 = vunpack.c.l.b16 %v2974
    %v3015 = vpack.c.b16 %v3000, %v2999
    %v3016 = vpack.c.b16 %v3002, %v3001
    %v3017 = vpack.c.b16 %v3004, %v3003
    %v3018 = vpack.c.b16 %v3006, %v3005
    %v3019 = vpack.c.b16 %v3008, %v3007
    %v3020 = vpack.c.b16 %v3010, %v3009
    %v3021 = vpack.c.b16 %v3012, %v3011
    %v3022 = vpack.c.b16 %v3014, %v3013
    %3031 = vmatprep.subr.bf16.mxu0 0
    %3032 = vmatpush1.bf16.msra.mxu0 %v3015
    %3033 = vmatprep.subr.bf16.mxu0 0
    %3034 = vmatpush1.bf16.msra.mxu0 %v3016
    %3035 = vmatprep.subr.bf16.mxu0 0
    %3036 = vmatpush1.bf16.msra.mxu0 %v3017
    %3037 = vmatprep.subr.bf16.mxu0 0
    %3038 = vmatpush1.bf16.msra.mxu0 %v3018
    %3039 = vmatprep.subr.bf16.mxu0 0
    %3040 = vmatpush1.bf16.msra.mxu0 %v3019
    %3041 = vmatprep.subr.bf16.mxu0 0
    %3042 = vmatpush1.bf16.msra.mxu0 %v3020
    %3043 = vmatprep.subr.bf16.mxu0 0
    %3044 = vmatpush1.bf16.msra.mxu0 %v3021
    %3045 = vmatprep.subr.bf16.mxu0 0
    %3046 = vmatpush1.bf16.msra.mxu0 %v3022
    %3047 = vmatprep.subr.bf16.mxu0 0
    %3048 = vmatpush1.bf16.msra.mxu0 0
    %3049 = vmatprep.subr.bf16.mxu0 0
    %3050 = vmatpush1.bf16.msra.mxu0 0
    %3051 = vmatprep.subr.bf16.mxu0 0
    %3052 = vmatpush1.bf16.msra.mxu0 0
    %3053 = vmatprep.subr.bf16.mxu0 0
    %3054 = vmatpush1.bf16.msra.mxu0 0
    %3055 = vmatprep.subr.bf16.mxu0 0
    %3056 = vmatpush1.bf16.msra.mxu0 0
    %3057 = vmatprep.subr.bf16.mxu0 0
    %3058 = vmatpush1.bf16.msra.mxu0 0
    %3059 = vmatprep.subr.bf16.mxu0 0
    %3060 = vmatpush1.bf16.msra.mxu0 0
    %3061 = vmatprep.subr.bf16.mxu0 0
    %3062 = vmatpush1.bf16.msra.mxu0 0
    %3063 = vmatprep.mubr.bf16.mxu0 0
    %3064 = vmatmul.mubr.bf16.gmra.mrb[0].mxu0 %v2975
    %v3065 = vpop.f32.mrb[0].mxu0
    %v3066 = vadd.f32 %v2981, %v3065
    %v3067 = vpop.f32.mrb[0].mxu0
    %v3068 = vpop.f32.mrb[0].mxu0
    %v3069 = vpop.f32.mrb[0].mxu0
    %3070 = vdwg.mxu0
    %v3071 = vld [vmem:[%s23] sm:$0xf]
    %v3072 = vld [vmem:[%s23 + $0x4] sm:$0xf]
    %v3073 = vld [vmem:[%s23 + $0x8] sm:$0xf]
    %v3074 = vld [vmem:[%s23 + $0xc] sm:$0xf]
    %v3075 = vld [vmem:[%s23 + $0x10] sm:$0xf]
    %v3076 = vld [vmem:[%s23 + $0x14] sm:$0xf]
    %v3077 = vld [vmem:[%s23 + $0x18] sm:$0xf]
    %v3078 = vld [vmem:[%s23 + $0x1c] sm:$0xf]
    %v3079 = vld [vmem:[%s23 + $0x20] sm:$0xf]
    %v3080 = vld [vmem:[%s23 + $0x24] sm:$0xf]
    %v3081 = vld [vmem:[%s23 + $0x28] sm:$0xf]
    %v3082 = vld [vmem:[%s23 + $0x2c] sm:$0xf]
    %v3083 = vld [vmem:[%s23 + $0x30] sm:$0xf]
    %v3084 = vld [vmem:[%s23 + $0x34] sm:$0xf]
    %v3085 = vld [vmem:[%s23 + $0x38] sm:$0xf]
    %v3086 = vld [vmem:[%s23 + $0x3c] sm:$0xf]
    %v3087 = vpack.c.bf16 %v2556, %v2556
    %v3088 = vld [vmem:[%s24] sm:$0x1]
    %v3090 = vlaneseq
    %v3091 = vshrl.u32 %v3090, 7
    %v3092 = vsub.s32 0, %v3091
    %v3093 = vrot.slane %v3088, %v3092
    %v3111 = vunpack.c.l.b16 %v3071
    %v3112 = vunpack.c.l.b16 %v3072
    %v3113 = vunpack.c.l.b16 %v3073
    %v3114 = vunpack.c.l.b16 %v3074
    %v3115 = vunpack.c.l.b16 %v3075
    %v3116 = vunpack.c.l.b16 %v3076
    %v3117 = vunpack.c.l.b16 %v3077
    %v3118 = vunpack.c.l.b16 %v3078
    %v3119 = vunpack.c.l.b16 %v3079
    %v3120 = vunpack.c.l.b16 %v3080
    %v3121 = vunpack.c.l.b16 %v3081
    %v3122 = vunpack.c.l.b16 %v3082
    %v3123 = vunpack.c.l.b16 %v3083
    %v3124 = vunpack.c.l.b16 %v3084
    %v3125 = vunpack.c.l.b16 %v3085
    %v3126 = vunpack.c.l.b16 %v3086
    %v3127 = vpack.c.b16 %v3112, %v3111
    %v3128 = vpack.c.b16 %v3114, %v3113
    %v3129 = vpack.c.b16 %v3116, %v3115
    %v3130 = vpack.c.b16 %v3118, %v3117
    %v3131 = vpack.c.b16 %v3120, %v3119
    %v3132 = vpack.c.b16 %v3122, %v3121
    %v3133 = vpack.c.b16 %v3124, %v3123
    %v3134 = vpack.c.b16 %v3126, %v3125
    %3143 = vmatprep.subr.bf16.mxu0 0
    %3144 = vmatpush1.bf16.msra.mxu0 %v3127
    %3145 = vmatprep.subr.bf16.mxu0 0
    %3146 = vmatpush1.bf16.msra.mxu0 %v3128
    %3147 = vmatprep.subr.bf16.mxu0 0
    %3148 = vmatpush1.bf16.msra.mxu0 %v3129
    %3149 = vmatprep.subr.bf16.mxu0 0
    %3150 = vmatpush1.bf16.msra.mxu0 %v3130
    %3151 = vmatprep.subr.bf16.mxu0 0
    %3152 = vmatpush1.bf16.msra.mxu0 %v3131
    %3153 = vmatprep.subr.bf16.mxu0 0
    %3154 = vmatpush1.bf16.msra.mxu0 %v3132
    %3155 = vmatprep.subr.bf16.mxu0 0
    %3156 = vmatpush1.bf16.msra.mxu0 %v3133
    %3157 = vmatprep.subr.bf16.mxu0 0
    %3158 = vmatpush1.bf16.msra.mxu0 %v3134
    %3159 = vmatprep.subr.bf16.mxu0 0
    %3160 = vmatpush1.bf16.msra.mxu0 0
    %3161 = vmatprep.subr.bf16.mxu0 0
    %3162 = vmatpush1.bf16.msra.mxu0 0
    %3163 = vmatprep.subr.bf16.mxu0 0
    %3164 = vmatpush1.bf16.msra.mxu0 0
    %3165 = vmatprep.subr.bf16.mxu0 0
    %3166 = vmatpush1.bf16.msra.mxu0 0
    %3167 = vmatprep.subr.bf16.mxu0 0
    %3168 = vmatpush1.bf16.msra.mxu0 0
    %3169 = vmatprep.subr.bf16.mxu0 0
    %3170 = vmatpush1.bf16.msra.mxu0 0
    %3171 = vmatprep.subr.bf16.mxu0 0
    %3172 = vmatpush1.bf16.msra.mxu0 0
    %3173 = vmatprep.subr.bf16.mxu0 0
    %3174 = vmatpush1.bf16.msra.mxu0 0
    %3175 = vmatprep.mubr.bf16.mxu0 0
    %3176 = vmatmul.mubr.bf16.gmra.mrb[0].mxu0 %v3087
    %v3177 = vpop.f32.mrb[0].mxu0
    %v3178 = vadd.f32 %v3093, %v3177
    %v3179 = vpop.f32.mrb[0].mxu0
    %v3180 = vpop.f32.mrb[0].mxu0
    %v3181 = vpop.f32.mrb[0].mxu0
    %3182 = vdwg.mxu0
    %v3183 = vld [vmem:[%s25] sm:$0xf]
    %v3184 = vld [vmem:[%s25 + $0x4] sm:$0xf]
    %v3185 = vld [vmem:[%s25 + $0x8] sm:$0xf]
    %v3186 = vld [vmem:[%s25 + $0xc] sm:$0xf]
    %v3187 = vld [vmem:[%s25 + $0x10] sm:$0xf]
    %v3188 = vld [vmem:[%s25 + $0x14] sm:$0xf]
    %v3189 = vld [vmem:[%s25 + $0x18] sm:$0xf]
    %v3190 = vld [vmem:[%s25 + $0x1c] sm:$0xf]
    %v3191 = vld [vmem:[%s25 + $0x20] sm:$0xf]
    %v3192 = vld [vmem:[%s25 + $0x24] sm:$0xf]
    %v3193 = vld [vmem:[%s25 + $0x28] sm:$0xf]
    %v3194 = vld [vmem:[%s25 + $0x2c] sm:$0xf]
    %v3195 = vld [vmem:[%s25 + $0x30] sm:$0xf]
    %v3196 = vld [vmem:[%s25 + $0x34] sm:$0xf]
    %v3197 = vld [vmem:[%s25 + $0x38] sm:$0xf]
    %v3198 = vld [vmem:[%s25 + $0x3c] sm:$0xf]
    %v3199 = vld [vmem:[%s26] sm:$0x1]
    %v3200 = vpack.c.bf16 %v3066, %v3066
    %v3201 = vpack.c.bf16 %v3178, %v3178
    %v3218 = vunpack.c.l.b16 %v3183
    %v3219 = vunpack.c.l.b16 %v3184
    %v3220 = vunpack.c.l.b16 %v3185
    %v3221 = vunpack.c.l.b16 %v3186
    %v3222 = vunpack.c.l.b16 %v3187
    %v3223 = vunpack.c.l.b16 %v3188
    %v3224 = vunpack.c.l.b16 %v3189
    %v3225 = vunpack.c.l.b16 %v3190
    %v3226 = vunpack.c.l.b16 %v3191
    %v3227 = vunpack.c.l.b16 %v3192
    %v3228 = vunpack.c.l.b16 %v3193
    %v3229 = vunpack.c.l.b16 %v3194
    %v3230 = vunpack.c.l.b16 %v3195
    %v3231 = vunpack.c.l.b16 %v3196
    %v3232 = vunpack.c.l.b16 %v3197
    %v3233 = vunpack.c.l.b16 %v3198
    %v3234 = vpack.c.b16 %v3219, %v3218
    %v3235 = vpack.c.b16 %v3221, %v3220
    %v3236 = vpack.c.b16 %v3223, %v3222
    %v3237 = vpack.c.b16 %v3225, %v3224
    %v3238 = vpack.c.b16 %v3227, %v3226
    %v3239 = vpack.c.b16 %v3229, %v3228
    %v3240 = vpack.c.b16 %v3231, %v3230
    %v3241 = vpack.c.b16 %v3233, %v3232
    %3250 = vmatprep.subr.bf16.mxu0 0
    %3251 = vmatpush1.bf16.msra.mxu0 %v3234
    %3252 = vmatprep.subr.bf16.mxu0 0
    %3253 = vmatpush1.bf16.msra.mxu0 %v3235
    %3254 = vmatprep.subr.bf16.mxu0 0
    %3255 = vmatpush1.bf16.msra.mxu0 %v3236
    %3256 = vmatprep.subr.bf16.mxu0 0
    %3257 = vmatpush1.bf16.msra.mxu0 %v3237
    %3258 = vmatprep.subr.bf16.mxu0 0
    %3259 = vmatpush1.bf16.msra.mxu0 %v3238
    %3260 = vmatprep.subr.bf16.mxu0 0
    %3261 = vmatpush1.bf16.msra.mxu0 %v3239
    %3262 = vmatprep.subr.bf16.mxu0 0
    %3263 = vmatpush1.bf16.msra.mxu0 %v3240
    %3264 = vmatprep.subr.bf16.mxu0 0
    %3265 = vmatpush1.bf16.msra.mxu0 %v3241
    %3266 = vmatprep.subr.bf16.mxu0 0
    %3267 = vmatpush1.bf16.msra.mxu0 0
    %3268 = vmatprep.subr.bf16.mxu0 0
    %3269 = vmatpush1.bf16.msra.mxu0 0
    %3270 = vmatprep.subr.bf16.mxu0 0
    %3271 = vmatpush1.bf16.msra.mxu0 0
    %3272 = vmatprep.subr.bf16.mxu0 0
    %3273 = vmatpush1.bf16.msra.mxu0 0
    %3274 = vmatprep.subr.bf16.mxu0 0
    %3275 = vmatpush1.bf16.msra.mxu0 0
    %3276 = vmatprep.subr.bf16.mxu0 0
    %3277 = vmatpush1.bf16.msra.mxu0 0
    %3278 = vmatprep.subr.bf16.mxu0 0
    %3279 = vmatpush1.bf16.msra.mxu0 0
    %3280 = vmatprep.subr.bf16.mxu0 0
    %3281 = vmatpush1.bf16.msra.mxu0 0
    %3282 = vmatprep.mubr.bf16.mxu0 0
    %3283 = vmatmul.mubr.bf16.gmra.mrb[0].mxu0 %v3087
    %v3284 = vpop.f32.mrb[0].mxu0
    %v3285 = vadd.f32 0.0, %v3284
    %v3286 = vpop.f32.mrb[0].mxu0
    %v3287 = vpop.f32.mrb[0].mxu0
    %v3288 = vpop.f32.mrb[0].mxu0
    %3289 = vdwg.mxu0
    %v3290 = vpack.c.bf16 %v3285, %v3285
    %v3292 = vsel %vm489, %v3200, 0
    %v3295 = vsel %vm489, %v3201, 0
    %3297 = vmatprep.subr.bf16.mxu0 0
    %3298 = vmatpush1.bf16.xpose.msra.mxu0 %v3295
    %3299 = vmatprep.subr.bf16.mxu0 0
    %3300 = vmatpush1.bf16.xpose.msra.mxu0 0
    %3301 = vmatprep.subr.bf16.mxu0 0
    %3302 = vmatpush1.bf16.xpose.msra.mxu0 0
    %3303 = vmatprep.subr.bf16.mxu0 0
    %3304 = vmatpush1.bf16.xpose.msra.mxu0 0
    %3305 = vmatprep.subr.bf16.mxu0 0
    %3306 = vmatpush1.bf16.xpose.msra.mxu0 0
    %3307 = vmatprep.subr.bf16.mxu0 0
    %3308 = vmatpush1.bf16.xpose.msra.mxu0 0
    %3309 = vmatprep.subr.bf16.mxu0 0
    %3310 = vmatpush1.bf16.xpose.msra.mxu0 0
    %3311 = vmatprep.subr.bf16.mxu0 0
    %3312 = vmatpush1.bf16.xpose.msra.mxu0 0
    %3313 = vmatprep.subr.bf16.mxu0 0
    %3314 = vmatpush1.bf16.xpose.msra.mxu0 0
    %3315 = vmatprep.subr.bf16.mxu0 0
    %3316 = vmatpush1.bf16.xpose.msra.mxu0 0
    %3317 = vmatprep.subr.bf16.mxu0 0
    %3318 = vmatpush1.bf16.xpose.msra.mxu0 0
    %3319 = vmatprep.subr.bf16.mxu0 0
    %3320 = vmatpush1.bf16.xpose.msra.mxu0 0
    %3321 = vmatprep.subr.bf16.mxu0 0
    %3322 = vmatpush1.bf16.xpose.msra.mxu0 0
    %3323 = vmatprep.subr.bf16.mxu0 0
    %3324 = vmatpush1.bf16.xpose.msra.mxu0 0
    %3325 = vmatprep.subr.bf16.mxu0 0
    %3326 = vmatpush1.bf16.xpose.msra.mxu0 0
    %3327 = vmatprep.subr.bf16.mxu0 0
    %3328 = vmatpush1.bf16.xpose.msra.mxu0 0
    %3329 = vmatprep.mubr.bf16.mxu0 0
    %3330 = vmatmul.mubr.bf16.gmra.mrb[0].mxu0 %v3292
    %v3331 = vpop.f32.mrb[0].mxu0
    %v3332 = vadd.f32 0.0, %v3331
    %v3333 = vpop.f32.mrb[0].mxu0
    %v3334 = vpop.f32.mrb[0].mxu0
    %v3335 = vpop.f32.mrb[0].mxu0
    %3336 = vdwg.mxu0
    %v3337 = vadd.f32 %v2958, %v3332
    %v3338 = vsel %vm2648, %v3337, -inf
    %3339 = vmax.xlane.f32.xlu0 %v3338
    %v3340 = vpop.xlane.xlu0 %3339
    %v3341 = vsub.f32 %v3337, %v3340
    %v3342 = vmul.f32 %v3341, 1.442695
    %v3343 = vpow.pop %v3342
    %v3344 = vsel %vm2648, %v3343, 0.0
    %3345 = vadd.xlane.f32.xlu0 %v3344
    %v3346 = vpop.xlane.xlu0 %3345
    %v3347 = vrcp.pop %v3346
    %v3348 = vmul.f32 %v3343, %v3347
    %v3349 = vpack.c.bf16 %v3348, %v3348
    %v3351 = vsel %vm2648, %v3349, 0
    %vm3353 = vcmask 1043456
    %v3355 = vsel %vm3353, %v3290, 0
    %3357 = vmatprep.subr.bf16.mxu0 0
    %3358 = vmatpush1.bf16.msra.mxu0 %v3355
    %3359 = vmatprep.subr.bf16.mxu0 0
    %3360 = vmatpush1.bf16.msra.mxu0 0
    %3361 = vmatprep.subr.bf16.mxu0 0
    %3362 = vmatpush1.bf16.msra.mxu0 0
    %3363 = vmatprep.subr.bf16.mxu0 0
    %3364 = vmatpush1.bf16.msra.mxu0 0
    %3365 = vmatprep.subr.bf16.mxu0 0
    %3366 = vmatpush1.bf16.msra.mxu0 0
    %3367 = vmatprep.subr.bf16.mxu0 0
    %3368 = vmatpush1.bf16.msra.mxu0 0
    %3369 = vmatprep.subr.bf16.mxu0 0
    %3370 = vmatpush1.bf16.msra.mxu0 0
    %3371 = vmatprep.subr.bf16.mxu0 0
    %3372 = vmatpush1.bf16.msra.mxu0 0
    %3373 = vmatprep.subr.bf16.mxu0 0
    %3374 = vmatpush1.bf16.msra.mxu0 0
    %3375 = vmatprep.subr.bf16.mxu0 0
    %3376 = vmatpush1.bf16.msra.mxu0 0
    %3377 = vmatprep.subr.bf16.mxu0 0
    %3378 = vmatpush1.bf16.msra.mxu0 0
    %3379 = vmatprep.subr.bf16.mxu0 0
    %3380 = vmatpush1.bf16.msra.mxu0 0
    %3381 = vmatprep.subr.bf16.mxu0 0
    %3382 = vmatpush1.bf16.msra.mxu0 0
    %3383 = vmatprep.subr.bf16.mxu0 0
    %3384 = vmatpush1.bf16.msra.mxu0 0
    %3385 = vmatprep.subr.bf16.mxu0 0
    %3386 = vmatpush1.bf16.msra.mxu0 0
    %3387 = vmatprep.subr.bf16.mxu0 0
    %3388 = vmatpush1.bf16.msra.mxu0 0
    %3389 = vmatprep.mubr.bf16.mxu0 0
    %3390 = vmatmul.mubr.bf16.gmra.mrb[0].mxu0 %v3351
    %v3391 = vpop.f32.mrb[0].mxu0
    %v3392 = vadd.f32 0.0, %v3391
    %v3393 = vpop.f32.mrb[0].mxu0
    %v3394 = vpop.f32.mrb[0].mxu0
    %v3395 = vpop.f32.mrb[0].mxu0
    %3396 = vdwg.mxu0
    %3398 = vrot.lane.b32.xlu0 %v3200, 96
    %v3399 = vpop.permute.xlu0 %3398
    %3401 = vrot.lane.b32.xlu0 %v3201, 96
    %v3402 = vpop.permute.xlu0 %3401
    %v3404 = vsel %vm489, %v3399, 0
    %v3407 = vsel %vm489, %v3402, 0
    %3409 = vmatprep.subr.bf16.mxu0 0
    %3410 = vmatpush1.bf16.xpose.msra.mxu0 %v3407
    %3411 = vmatprep.subr.bf16.mxu0 0
    %3412 = vmatpush1.bf16.xpose.msra.mxu0 0
    %3413 = vmatprep.subr.bf16.mxu0 0
    %3414 = vmatpush1.bf16.xpose.msra.mxu0 0
    %3415 = vmatprep.subr.bf16.mxu0 0
    %3416 = vmatpush1.bf16.xpose.msra.mxu0 0
    %3417 = vmatprep.subr.bf16.mxu0 0
    %3418 = vmatpush1.bf16.xpose.msra.mxu0 0
    %3419 = vmatprep.subr.bf16.mxu0 0
    %3420 = vmatpush1.bf16.xpose.msra.mxu0 0
    %3421 = vmatprep.subr.bf16.mxu0 0
    %3422 = vmatpush1.bf16.xpose.msra.mxu0 0
    %3423 = vmatprep.subr.bf16.mxu0 0
    %3424 = vmatpush1.bf16.xpose.msra.mxu0 0
    %3425 = vmatprep.subr.bf16.mxu0 0
    %3426 = vmatpush1.bf16.xpose.msra.mxu0 0
    %3427 = vmatprep.subr.bf16.mxu0 0
    %3428 = vmatpush1.bf16.xpose.msra.mxu0 0
    %3429 = vmatprep.subr.bf16.mxu0 0
    %3430 = vmatpush1.bf16.xpose.msra.mxu0 0
    %3431 = vmatprep.subr.bf16.mxu0 0
    %3432 = vmatpush1.bf16.xpose.msra.mxu0 0
    %3433 = vmatprep.subr.bf16.mxu0 0
    %3434 = vmatpush1.bf16.xpose.msra.mxu0 0
    %3435 = vmatprep.subr.bf16.mxu0 0
    %3436 = vmatpush1.bf16.xpose.msra.mxu0 0
    %3437 = vmatprep.subr.bf16.mxu0 0
    %3438 = vmatpush1.bf16.xpose.msra.mxu0 0
    %3439 = vmatprep.subr.bf16.mxu0 0
    %3440 = vmatpush1.bf16.xpose.msra.mxu0 0
    %3441 = vmatprep.mubr.bf16.mxu0 0
    %3442 = vmatmul.mubr.bf16.gmra.mrb[0].mxu0 %v3404
    %v3443 = vpop.f32.mrb[0].mxu0
    %v3444 = vadd.f32 0.0, %v3443
    %v3445 = vpop.f32.mrb[0].mxu0
    %v3446 = vpop.f32.mrb[0].mxu0
    %v3447 = vpop.f32.mrb[0].mxu0
    %3448 = vdwg.mxu0
    %3450 = vrot.lane.b32.xlu0 %v3444, 8
    %v3451 = vpop.permute.xlu0 %3450
    %v3453 = vadd.f32 %v2958, %v3451
    %vm3454 = vcmask 130112
    %v3455 = vsel %vm3454, %v3453, -inf
    %3456 = vmax.xlane.f32.xlu0 %v3455
    %v3457 = vpop.xlane.xlu0 %3456
    %v3458 = vsub.f32 %v3453, %v3457
    %v3459 = vmul.f32 %v3458, 1.442695
    %v3460 = vpow.pop %v3459
    %3462 = vrot.lane.b32.xlu0 %v3460, 120
    %v3463 = vpop.permute.xlu0 %3462
    %v3465 = vsel %vm2648, %v3463, 0.0
    %3466 = vadd.xlane.f32.xlu0 %v3465
    %v3467 = vpop.xlane.xlu0 %3466
    %v3468 = vrcp.pop %v3467
    %v3469 = vmul.f32 %v3460, %v3468
    %v3470 = vpack.c.bf16 %v3469, %v3469
    %3472 = vrot.lane.b32.xlu0 %v3470, 120
    %v3473 = vpop.permute.xlu0 %3472
    %3475 = vrot.lane.b32.xlu0 %v3290, 96
    %v3476 = vpop.permute.xlu0 %3475
    %v3478 = vsel %vm2648, %v3473, 0
    %v3481 = vsel %vm3353, %v3476, 0
    %3483 = vmatprep.subr.bf16.mxu0 0
    %3484 = vmatpush1.bf16.msra.mxu0 %v3481
    %3485 = vmatprep.subr.bf16.mxu0 0
    %3486 = vmatpush1.bf16.msra.mxu0 0
    %3487 = vmatprep.subr.bf16.mxu0 0
    %3488 = vmatpush1.bf16.msra.mxu0 0
    %3489 = vmatprep.subr.bf16.mxu0 0
    %3490 = vmatpush1.bf16.msra.mxu0 0
    %3491 = vmatprep.subr.bf16.mxu0 0
    %3492 = vmatpush1.bf16.msra.mxu0 0
    %3493 = vmatprep.subr.bf16.mxu0 0
    %3494 = vmatpush1.bf16.msra.mxu0 0
    %3495 = vmatprep.subr.bf16.mxu0 0
    %3496 = vmatpush1.bf16.msra.mxu0 0
    %3497 = vmatprep.subr.bf16.mxu0 0
    %3498 = vmatpush1.bf16.msra.mxu0 0
    %3499 = vmatprep.subr.bf16.mxu0 0
    %3500 = vmatpush1.bf16.msra.mxu0 0
    %3501 = vmatprep.subr.bf16.mxu0 0
    %3502 = vmatpush1.bf16.msra.mxu0 0
    %3503 = vmatprep.subr.bf16.mxu0 0
    %3504 = vmatpush1.bf16.msra.mxu0 0
    %3505 = vmatprep.subr.bf16.mxu0 0
    %3506 = vmatpush1.bf16.msra.mxu0 0
    %3507 = vmatprep.subr.bf16.mxu0 0
    %3508 = vmatpush1.bf16.msra.mxu0 0
    %3509 = vmatprep.subr.bf16.mxu0 0
    %3510 = vmatpush1.bf16.msra.mxu0 0
    %3511 = vmatprep.subr.bf16.mxu0 0
    %3512 = vmatpush1.bf16.msra.mxu0 0
    %3513 = vmatprep.subr.bf16.mxu0 0
    %3514 = vmatpush1.bf16.msra.mxu0 0
    %3515 = vmatprep.mubr.bf16.mxu0 0
    %3516 = vmatmul.mubr.bf16.gmra.mrb[0].mxu0 %v3478
    %v3517 = vpop.f32.mrb[0].mxu0
    %v3518 = vadd.f32 0.0, %v3517
    %v3519 = vpop.f32.mrb[0].mxu0
    %v3520 = vpop.f32.mrb[0].mxu0
    %v3521 = vpop.f32.mrb[0].mxu0
    %3522 = vdwg.mxu0
    %3523 = vrot.lane.b32.xlu0 %v3200, 64
    %v3524 = vpop.permute.xlu0 %3523
    %3525 = vrot.lane.b32.xlu0 %v3201, 64
    %v3526 = vpop.permute.xlu0 %3525
    %v3528 = vsel %vm489, %v3524, 0
    %v3531 = vsel %vm489, %v3526, 0
    %3533 = vmatprep.subr.bf16.mxu0 0
    %3534 = vmatpush1.bf16.xpose.msra.mxu0 %v3531
    %3535 = vmatprep.subr.bf16.mxu0 0
    %3536 = vmatpush1.bf16.xpose.msra.mxu0 0
    %3537 = vmatprep.subr.bf16.mxu0 0
    %3538 = vmatpush1.bf16.xpose.msra.mxu0 0
    %3539 = vmatprep.subr.bf16.mxu0 0
    %3540 = vmatpush1.bf16.xpose.msra.mxu0 0
    %3541 = vmatprep.subr.bf16.mxu0 0
    %3542 = vmatpush1.bf16.xpose.msra.mxu0 0
    %3543 = vmatprep.subr.bf16.mxu0 0
    %3544 = vmatpush1.bf16.xpose.msra.mxu0 0
    %3545 = vmatprep.subr.bf16.mxu0 0
    %3546 = vmatpush1.bf16.xpose.msra.mxu0 0
    %3547 = vmatprep.subr.bf16.mxu0 0
    %3548 = vmatpush1.bf16.xpose.msra.mxu0 0
    %3549 = vmatprep.subr.bf16.mxu0 0
    %3550 = vmatpush1.bf16.xpose.msra.mxu0 0
    %3551 = vmatprep.subr.bf16.mxu0 0
    %3552 = vmatpush1.bf16.xpose.msra.mxu0 0
    %3553 = vmatprep.subr.bf16.mxu0 0
    %3554 = vmatpush1.bf16.xpose.msra.mxu0 0
    %3555 = vmatprep.subr.bf16.mxu0 0
    %3556 = vmatpush1.bf16.xpose.msra.mxu0 0
    %3557 = vmatprep.subr.bf16.mxu0 0
    %3558 = vmatpush1.bf16.xpose.msra.mxu0 0
    %3559 = vmatprep.subr.bf16.mxu0 0
    %3560 = vmatpush1.bf16.xpose.msra.mxu0 0
    %3561 = vmatprep.subr.bf16.mxu0 0
    %3562 = vmatpush1.bf16.xpose.msra.mxu0 0
    %3563 = vmatprep.subr.bf16.mxu0 0
    %3564 = vmatpush1.bf16.xpose.msra.mxu0 0
    %3565 = vmatprep.mubr.bf16.mxu0 0
    %3566 = vmatmul.mubr.bf16.gmra.mrb[0].mxu0 %v3528
    %v3567 = vpop.f32.mrb[0].mxu0
    %v3568 = vadd.f32 0.0, %v3567
    %v3569 = vpop.f32.mrb[0].mxu0
    %v3570 = vpop.f32.mrb[0].mxu0
    %v3571 = vpop.f32.mrb[0].mxu0
    %3572 = vdwg.mxu0
    %3574 = vrot.lane.b32.xlu0 %v3568, 16
    %v3575 = vpop.permute.xlu0 %3574
    %v3577 = vadd.f32 %v2958, %v3575
    %vm3578 = vcmask 195712
    %v3579 = vsel %vm3578, %v3577, -inf
    %3580 = vmax.xlane.f32.xlu0 %v3579
    %v3581 = vpop.xlane.xlu0 %3580
    %v3582 = vsub.f32 %v3577, %v3581
    %v3583 = vmul.f32 %v3582, 1.442695
    %v3584 = vpow.pop %v3583
    %3586 = vrot.lane.b32.xlu0 %v3584, 112
    %v3587 = vpop.permute.xlu0 %3586
    %v3589 = vsel %vm2648, %v3587, 0.0
    %3590 = vadd.xlane.f32.xlu0 %v3589
    %v3591 = vpop.xlane.xlu0 %3590
    %v3592 = vrcp.pop %v3591
    %v3593 = vmul.f32 %v3584, %v3592
    %v3594 = vpack.c.bf16 %v3593, %v3593
    %3596 = vrot.lane.b32.xlu0 %v3594, 112
    %v3597 = vpop.permute.xlu0 %3596
    %3598 = vrot.lane.b32.xlu0 %v3290, 64
    %v3599 = vpop.permute.xlu0 %3598
    %v3601 = vsel %vm2648, %v3597, 0
    %v3604 = vsel %vm3353, %v3599, 0
    %3606 = vmatprep.subr.bf16.mxu0 0
    %3607 = vmatpush1.bf16.msra.mxu0 %v3604
    %3608 = vmatprep.subr.bf16.mxu0 0
    %3609 = vmatpush1.bf16.msra.mxu0 0
    %3610 = vmatprep.subr.bf16.mxu0 0
    %3611 = vmatpush1.bf16.msra.mxu0 0
    %3612 = vmatprep.subr.bf16.mxu0 0
    %3613 = vmatpush1.bf16.msra.mxu0 0
    %3614 = vmatprep.subr.bf16.mxu0 0
    %3615 = vmatpush1.bf16.msra.mxu0 0
    %3616 = vmatprep.subr.bf16.mxu0 0
    %3617 = vmatpush1.bf16.msra.mxu0 0
    %3618 = vmatprep.subr.bf16.mxu0 0
    %3619 = vmatpush1.bf16.msra.mxu0 0
    %3620 = vmatprep.subr.bf16.mxu0 0
    %3621 = vmatpush1.bf16.msra.mxu0 0
    %3622 = vmatprep.subr.bf16.mxu0 0
    %3623 = vmatpush1.bf16.msra.mxu0 0
    %3624 = vmatprep.subr.bf16.mxu0 0
    %3625 = vmatpush1.bf16.msra.mxu0 0
    %3626 = vmatprep.subr.bf16.mxu0 0
    %3627 = vmatpush1.bf16.msra.mxu0 0
    %3628 = vmatprep.subr.bf16.mxu0 0
    %3629 = vmatpush1.bf16.msra.mxu0 0
    %3630 = vmatprep.subr.bf16.mxu0 0
    %3631 = vmatpush1.bf16.msra.mxu0 0
    %3632 = vmatprep.subr.bf16.mxu0 0
    %3633 = vmatpush1.bf16.msra.mxu0 0
    %3634 = vmatprep.subr.bf16.mxu0 0
    %3635 = vmatpush1.bf16.msra.mxu0 0
    %3636 = vmatprep.subr.bf16.mxu0 0
    %3637 = vmatpush1.bf16.msra.mxu0 0
    %3638 = vmatprep.mubr.bf16.mxu0 0
    %3639 = vmatmul.mubr.bf16.gmra.mrb[0].mxu0 %v3601
    %v3640 = vpop.f32.mrb[0].mxu0
    %v3641 = vadd.f32 0.0, %v3640
    %v3642 = vpop.f32.mrb[0].mxu0
    %v3643 = vpop.f32.mrb[0].mxu0
    %v3644 = vpop.f32.mrb[0].mxu0
    %3645 = vdwg.mxu0
    %3646 = vrot.lane.b32.xlu0 %v3200, 32
    %v3647 = vpop.permute.xlu0 %3646
    %3648 = vrot.lane.b32.xlu0 %v3201, 32
    %v3649 = vpop.permute.xlu0 %3648
    %v3651 = vsel %vm489, %v3647, 0
    %v3654 = vsel %vm489, %v3649, 0
    %3656 = vmatprep.subr.bf16.mxu0 0
    %3657 = vmatpush1.bf16.xpose.msra.mxu0 %v3654
    %3658 = vmatprep.subr.bf16.mxu0 0
    %3659 = vmatpush1.bf16.xpose.msra.mxu0 0
    %3660 = vmatprep.subr.bf16.mxu0 0
    %3661 = vmatpush1.bf16.xpose.msra.mxu0 0
    %3662 = vmatprep.subr.bf16.mxu0 0
    %3663 = vmatpush1.bf16.xpose.msra.mxu0 0
    %3664 = vmatprep.subr.bf16.mxu0 0
    %3665 = vmatpush1.bf16.xpose.msra.mxu0 0
    %3666 = vmatprep.subr.bf16.mxu0 0
    %3667 = vmatpush1.bf16.xpose.msra.mxu0 0
    %3668 = vmatprep.subr.bf16.mxu0 0
    %3669 = vmatpush1.bf16.xpose.msra.mxu0 0
    %3670 = vmatprep.subr.bf16.mxu0 0
    %3671 = vmatpush1.bf16.xpose.msra.mxu0 0
    %3672 = vmatprep.subr.bf16.mxu0 0
    %3673 = vmatpush1.bf16.xpose.msra.mxu0 0
    %3674 = vmatprep.subr.bf16.mxu0 0
    %3675 = vmatpush1.bf16.xpose.msra.mxu0 0
    %3676 = vmatprep.subr.bf16.mxu0 0
    %3677 = vmatpush1.bf16.xpose.msra.mxu0 0
    %3678 = vmatprep.subr.bf16.mxu0 0
    %3679 = vmatpush1.bf16.xpose.msra.mxu0 0
    %3680 = vmatprep.subr.bf16.mxu0 0
    %3681 = vmatpush1.bf16.xpose.msra.mxu0 0
    %3682 = vmatprep.subr.bf16.mxu0 0
    %3683 = vmatpush1.bf16.xpose.msra.mxu0 0
    %3684 = vmatprep.subr.bf16.mxu0 0
    %3685 = vmatpush1.bf16.xpose.msra.mxu0 0
    %3686 = vmatprep.subr.bf16.mxu0 0
    %3687 = vmatpush1.bf16.xpose.msra.mxu0 0
    %3688 = vmatprep.mubr.bf16.mxu0 0
    %3689 = vmatmul.mubr.bf16.gmra.mrb[0].mxu0 %v3651
    %v3690 = vpop.f32.mrb[0].mxu0
    %v3691 = vadd.f32 0.0, %v3690
    %v3692 = vpop.f32.mrb[0].mxu0
    %v3693 = vpop.f32.mrb[0].mxu0
    %v3694 = vpop.f32.mrb[0].mxu0
    %3695 = vdwg.mxu0
    %3697 = vrot.lane.b32.xlu0 %v3691, 24
    %v3698 = vpop.permute.xlu0 %3697
    %v3700 = vadd.f32 %v2958, %v3698
    %vm3701 = vcmask 261312
    %v3702 = vsel %vm3701, %v3700, -inf
    %3703 = vmax.xlane.f32.xlu0 %v3702
    %v3704 = vpop.xlane.xlu0 %3703
    %v3705 = vsub.f32 %v3700, %v3704
    %v3706 = vmul.f32 %v3705, 1.442695
    %v3707 = vpow.pop %v3706
    %3709 = vrot.lane.b32.xlu0 %v3707, 104
    %v3710 = vpop.permute.xlu0 %3709
    %v3712 = vsel %vm2648, %v3710, 0.0
    %3713 = vadd.xlane.f32.xlu0 %v3712
    %v3714 = vpop.xlane.xlu0 %3713
    %v3715 = vrcp.pop %v3714
    %v3716 = vmul.f32 %v3707, %v3715
    %v3717 = vpack.c.bf16 %v3716, %v3716
    %3719 = vrot.lane.b32.xlu0 %v3717, 104
    %v3720 = vpop.permute.xlu0 %3719
    %3721 = vrot.lane.b32.xlu0 %v3290, 32
    %v3722 = vpop.permute.xlu0 %3721
    %v3724 = vsel %vm2648, %v3720, 0
    %v3727 = vsel %vm3353, %v3722, 0
    %3729 = vmatprep.subr.bf16.mxu0 0
    %3730 = vmatpush1.bf16.msra.mxu0 %v3727
    %3731 = vmatprep.subr.bf16.mxu0 0
    %3732 = vmatpush1.bf16.msra.mxu0 0
    %3733 = vmatprep.subr.bf16.mxu0 0
    %3734 = vmatpush1.bf16.msra.mxu0 0
    %3735 = vmatprep.subr.bf16.mxu0 0
    %3736 = vmatpush1.bf16.msra.mxu0 0
    %3737 = vmatprep.subr.bf16.mxu0 0
    %3738 = vmatpush1.bf16.msra.mxu0 0
    %3739 = vmatprep.subr.bf16.mxu0 0
    %3740 = vmatpush1.bf16.msra.mxu0 0
    %3741 = vmatprep.subr.bf16.mxu0 0
    %3742 = vmatpush1.bf16.msra.mxu0 0
    %3743 = vmatprep.subr.bf16.mxu0 0
    %3744 = vmatpush1.bf16.msra.mxu0 0
    %3745 = vmatprep.subr.bf16.mxu0 0
    %3746 = vmatpush1.bf16.msra.mxu0 0
    %3747 = vmatprep.subr.bf16.mxu0 0
    %3748 = vmatpush1.bf16.msra.mxu0 0
    %3749 = vmatprep.subr.bf16.mxu0 0
    %3750 = vmatpush1.bf16.msra.mxu0 0
    %3751 = vmatprep.subr.bf16.mxu0 0
    %3752 = vmatpush1.bf16.msra.mxu0 0
    %3753 = vmatprep.subr.bf16.mxu0 0
    %3754 = vmatpush1.bf16.msra.mxu0 0
    %3755 = vmatprep.subr.bf16.mxu0 0
    %3756 = vmatpush1.bf16.msra.mxu0 0
    %3757 = vmatprep.subr.bf16.mxu0 0
    %3758 = vmatpush1.bf16.msra.mxu0 0
    %3759 = vmatprep.subr.bf16.mxu0 0
    %3760 = vmatpush1.bf16.msra.mxu0 0
    %3761 = vmatprep.mubr.bf16.mxu0 0
    %3762 = vmatmul.mubr.bf16.gmra.mrb[0].mxu0 %v3724
    %v3763 = vpop.f32.mrb[0].mxu0
    %v3764 = vadd.f32 0.0, %v3763
    %v3765 = vpop.f32.mrb[0].mxu0
    %v3766 = vpop.f32.mrb[0].mxu0
    %v3767 = vpop.f32.mrb[0].mxu0
    %3768 = vdwg.mxu0
    %3770 = vrot.lane.b32.xlu0 %v3518, 32
    %v3771 = vpop.permute.xlu0 %3770
    %3774 = vrot.lane.b32.xlu0 %v3641, 64
    %v3775 = vpop.permute.xlu0 %3774
    %3778 = vrot.lane.b32.xlu0 %v3764, 96
    %v3779 = vpop.permute.xlu0 %3778
    %v3781 = vsel %vm489, %v3392, %v3771
    %v3782 = vsel %vm519, %v3781, %v3775
    %v3783 = vsel %vm2429, %v3782, %v3779
    %v3785 = vlaneseq
    %v3786 = vshrl.u32 %v3785, 7
    %v3787 = vsub.s32 0, %v3786
    %v3788 = vrot.slane %v3199, %v3787
    %v3790 = vadd.f32 %v3783, %v3788
    %v3791 = vadd.f32 %v2555, %v3790
    %3792 = vst [vmem:[#allocation2] sm:$0xff] %v3791
    // Predicated region
    $region110: #{lstfe_forward.1} parent=1 // pred_check
      _
    $region111: #{lstfe_forward.1} parent=1 // pred_check_branch
      %3794 = sbr.rel (0) target = $region113
    $region112: #{lstfe_forward.1} parent=1 // pred_region
      %s3796 = ssub.s32 128, 128
      %3797 = vsyncadd [#allocation3], %s3796
      %s3799 = sshll.u32 [#allocation2], 4
      %s3800 = int_to_ptr.vmem [resolvable:$true] %s3799
      %3802 = dma.vmem_to_hbm [thread:$0]  %s3800, 128, %s27, [#allocation3]
    $region113: #{lstfe_forward.1} parent=1 // pred_fallthru
      _
    // Predicated region
    $region114: #{lstfe_forward.1} parent=1 // pred_check
      _
    $region115: #{lstfe_forward.1} parent=1 // pred_check_branch
      %3804 = sbr.rel (0) target = $region117
    $region116: #{lstfe_forward.1} parent=1 // pred_region
      %3805 = dma.done [#allocation3], 128
    $region117: #{lstfe_forward.1} parent=1 // pred_fallthru
      _
    %3806 = vsyncpa [#allocation3], 1

</llo_original>
